<compile_context>
chip_gen: v7x
topology: tpu7x:2x2x1
jax: 0.10.0
libtpu: 0.0.40
codegen_flags: <defaults>
</compile_context>

<pallas_src>
import math
import functools

import jax
import jax.numpy as jnp
from jax.experimental import pallas as pl
from jax.experimental.pallas import tpu as pltpu

# ----------------------------- config --------------------------------------
VOCAB = 64          # vocab size (reference: ~30k, scaled down)
VOCAB_PAD = 128     # decoder logits padded to a 128-lane multiple (lane-dense store)
MAXLEN = 32         # max positions
N_SEG = 2           # segment types
D_MODEL = 128       # reference: 768 (scaled down)
N_LAYERS = 2        # reference: 12  (scaled down)
N_HEADS = 4
D_K = D_MODEL // N_HEADS
D_FF = 512
EPS = 1e-5          # nn.LayerNorm default

ACT_DTYPE = jnp.bfloat16   # MXU-input dtype (f32 accumulation in-kernel)


def _gelu(x):
    # matches torch reference:  x * 0.5 * (1 + erf(x / sqrt(2)))
    return x * 0.5 * (1.0 + jax.lax.erf(x / math.sqrt(2.0)))


def _layernorm(x, gamma, beta):
    mu = jnp.mean(x, axis=-1, keepdims=True)
    var = jnp.mean(jnp.square(x - mu), axis=-1, keepdims=True)
    return (x - mu) * jax.lax.rsqrt(var + EPS) * gamma + beta


# --------------------- fused encoder-stack kernel ---------------------------
def _encoder_stack_kernel(emb_ref, maskb_ref, embg_ref, embb_ref,
                          wqkv_ref, bqkv_ref, wo_ref, bo_ref, lng_ref, lnb_ref,
                          w1_ref, b1_ref, w2_ref, b2_ref,
                          out_ref, x_carry, *, batch, seq):
    """One grid step == one encoder layer; activation carried across layers in VMEM."""
    l = pl.program_id(0)

    # Layer-0 preamble: embedding LayerNorm (embedding sum arrives f32).
    @pl.when(l == 0)
    def _():
        x_carry[...] = _layernorm(emb_ref[...], embg_ref[...], embb_ref[...])

    x = x_carry[...]                          # [B*S, D] f32, resident in VMEM
    scale = 1.0 / math.sqrt(D_K)

    # ---- fused QKV projection: one [D, 3D] matmul, bf16 in / f32 accumulate ----
    qkv = jnp.dot(x.astype(ACT_DTYPE), wqkv_ref[0],
                  preferred_element_type=jnp.float32) + bqkv_ref[0]
    qkv = qkv.astype(ACT_DTYPE)               # [B*S, 3D] bf16, never leaves VMEM

    # ---- multi-head self-attention ---------------------------------------------
    # Batch and head handled with static (8-sublane / 128- and 32-lane aligned) slices.
    # A head-batched dot_general would need a lane-splitting [S,128]->[S,H,dk] relayout;
    # at H=4, S=16 this static-slice loop emits the same vmatmuls — revisit if S/H grow.
    ctx_rows = []
    for b in range(batch):
        r0 = b * seq
        q_b = qkv[r0:r0 + seq, 0:D_MODEL]
        k_b = qkv[r0:r0 + seq, D_MODEL:2 * D_MODEL]
        v_b = qkv[r0:r0 + seq, 2 * D_MODEL:3 * D_MODEL]
        bias_b = maskb_ref[b]                 # [1, S] additive pad-mask bias (0 / -1e9)
        heads = []
        for h in range(N_HEADS):
            lo = h * D_K
            qh = q_b[:, lo:lo + D_K]
            kh = k_b[:, lo:lo + D_K]
            vh = v_b[:, lo:lo + D_K]
            s = jax.lax.dot_general(qh, kh, (((1,), (1,)), ((), ())),
                                    preferred_element_type=jnp.float32) * scale
            s = s + bias_b                                   # mask over key axis
            s = s - jnp.max(s, axis=-1, keepdims=True)
            p = jnp.exp(s)
            p = p / jnp.sum(p, axis=-1, keepdims=True)       # exact divide (parity)
            heads.append(jnp.dot(p.astype(ACT_DTYPE), vh,
                                 preferred_element_type=jnp.float32))
        ctx_rows.append(jnp.concatenate(heads, axis=-1))     # [S, D] f32, lane-dense
    ctx = jnp.concatenate(ctx_rows, axis=0)                  # [B*S, D] f32

    # ---- output projection + bias + residual + LayerNorm (fused) ----------------
    y = jnp.dot(ctx.astype(ACT_DTYPE), wo_ref[0],
                preferred_element_type=jnp.float32) + bo_ref[0] + x
    y = _layernorm(y, lng_ref[0], lnb_ref[0])

    # ---- position-wise FFN: fc2(gelu(fc1(y))), intermediate stays in VMEM -------
    hdn = jnp.dot(y.astype(ACT_DTYPE), w1_ref[0],
                  preferred_element_type=jnp.float32) + b1_ref[0]
    hdn = _gelu(hdn)
    z = jnp.dot(hdn.astype(ACT_DTYPE), w2_ref[0],
                preferred_element_type=jnp.float32) + b2_ref[0]

    x_carry[...] = z                           # carry to the next layer (VMEM only)
    out_ref[...] = z.astype(out_ref.dtype)     # resident block; single HBM writeback


def encoder_stack(emb_sum, mask_bias, p, *, batch, seq):
    m = batch * seq
    kernel = functools.partial(_encoder_stack_kernel, batch=batch, seq=seq)
    full2 = lambda l: (0, 0)
    full3 = lambda l: (0, 0, 0)
    per_layer = lambda l: (l, 0, 0)
    return pl.pallas_call(
        kernel,
        out_shape=jax.ShapeDtypeStruct((m, D_MODEL), jnp.float32),
        grid=(N_LAYERS,),
        in_specs=[
            pl.BlockSpec((m, D_MODEL), full2),                    # embedding sum
            pl.BlockSpec((batch, 1, seq), full3),                 # additive pad-mask bias
            pl.BlockSpec((1, D_MODEL), full2),                    # emb LN gamma
            pl.BlockSpec((1, D_MODEL), full2),                    # emb LN beta
            pl.BlockSpec((1, D_MODEL, 3 * D_MODEL), per_layer),   # w_qkv   [L,D,3D] bf16
            pl.BlockSpec((1, 1, 3 * D_MODEL), per_layer),         # b_qkv
            pl.BlockSpec((1, D_MODEL, D_MODEL), per_layer),       # wo      [L,D,D]  bf16
            pl.BlockSpec((1, 1, D_MODEL), per_layer),             # bo
            pl.BlockSpec((1, 1, D_MODEL), per_layer),             # ln gamma
            pl.BlockSpec((1, 1, D_MODEL), per_layer),             # ln beta
            pl.BlockSpec((1, D_MODEL, D_FF), per_layer),          # w1      [L,D,F]  bf16
            pl.BlockSpec((1, 1, D_FF), per_layer),                # b1
            pl.BlockSpec((1, D_FF, D_MODEL), per_layer),          # w2      [L,F,D]  bf16
            pl.BlockSpec((1, 1, D_MODEL), per_layer),             # b2
        ],
        out_specs=pl.BlockSpec((m, D_MODEL), full2),
        scratch_shapes=[pltpu.VMEM((m, D_MODEL), jnp.float32)],
        compiler_params=pltpu.CompilerParams(
            dimension_semantics=("arbitrary",)),   # layer axis is a sequential carry
    )(emb_sum, mask_bias, p["emb_ln_g"], p["emb_ln_b"],
      p["w_qkv"], p["b_qkv"], p["wo"], p["bo"], p["ln_g"], p["ln_b"],
      p["w1"], p["b1"], p["w2"], p["b2"])


# ------------------------- fused masked-LM head ------------------------------
def _mlm_head_kernel(h_ref, lw_ref, lb_ref, ng_ref, nb_ref, dw_ref, db_ref, o_ref):
    h = h_ref[...]                                         # [B*P, D] f32
    g = jnp.dot(h.astype(ACT_DTYPE), lw_ref[...],
                preferred_element_type=jnp.float32) + lb_ref[...]
    g = _gelu(g)
    g = _layernorm(g, ng_ref[...], nb_ref[...])
    logits = jnp.dot(g.astype(ACT_DTYPE), dw_ref[...],
                     preferred_element_type=jnp.float32) + db_ref[...]
    o_ref[...] = logits                                    # [B*P, 128] lane-dense store


def mlm_head(h_rows, p):
    m = h_rows.shape[0]
    full = lambda i: (0, 0)
    return pl.pallas_call(
        _mlm_head_kernel,
        out_shape=jax.ShapeDtypeStruct((m, VOCAB_PAD), jnp.float32),
        grid=(1,),
        in_specs=[
            pl.BlockSpec((m, D_MODEL), full),
            pl.BlockSpec((D_MODEL, D_MODEL), full),
            pl.BlockSpec((1, D_MODEL), full),
            pl.BlockSpec((1, D_MODEL), full),
            pl.BlockSpec((1, D_MODEL), full),
            pl.BlockSpec((D_MODEL, VOCAB_PAD), full),
            pl.BlockSpec((1, VOCAB_PAD), full),
        ],
        out_specs=pl.BlockSpec((m, VOCAB_PAD), full),
    )(h_rows, p["lin_w"], p["lin_b"], p["norm_g"], p["norm_b"],
      p["decoder_wt"], p["decoder_b"])


# ------------------------ parameter initialization --------------------------
def init_params(key):
    keys = iter(jax.random.split(key, 32))

    def nrm(shape):
        return jax.random.normal(next(keys), shape, jnp.float32) * 0.02

    tok_embed = nrm((VOCAB, D_MODEL))
    p = {
        # embeddings (gathers happen in XLA; tables stay f32)
        "tok_embed": tok_embed,
        "pos_embed": nrm((MAXLEN, D_MODEL)),
        "seg_embed": nrm((N_SEG, D_MODEL)),
        "emb_ln_g": jnp.ones((1, D_MODEL), jnp.float32),
        "emb_ln_b": jnp.zeros((1, D_MODEL), jnp.float32),
        # pooled / classification head (tiny -> plain JAX)
        "fc_w": nrm((D_MODEL, D_MODEL)), "fc_b": jnp.zeros((D_MODEL,), jnp.float32),
        "cls_w": nrm((D_MODEL, 2)), "cls_b": jnp.zeros((2,), jnp.float32),
        # masked-LM head (fused Pallas kernel; matmul weight bf16 at init)
        "lin_w": nrm((D_MODEL, D_MODEL)).astype(ACT_DTYPE),
        "lin_b": jnp.zeros((1, D_MODEL), jnp.float32),
        "norm_g": jnp.ones((1, D_MODEL), jnp.float32),
        "norm_b": jnp.zeros((1, D_MODEL), jnp.float32),
        "decoder_b": jnp.zeros((1, VOCAB_PAD), jnp.float32),
    }
    # Tied decoder weight: tok_embed.T, zero-padded to 128 lanes and cast to bf16 ONCE
    # at init.  NOTE: the tie is a copy — valid only for this forward-only model.
    dec = jnp.zeros((D_MODEL, VOCAB_PAD), jnp.float32).at[:, :VOCAB].set(tok_embed.T)
    p["decoder_wt"] = dec.astype(ACT_DTYPE)

    # encoder weights stacked with a leading layer axis (matmul weights bf16 at init)
    wqkv, wo, w1, w2 = [], [], [], []
    for _ in range(N_LAYERS):
        wq, wk, wv = nrm((D_MODEL, D_MODEL)), nrm((D_MODEL, D_MODEL)), nrm((D_MODEL, D_MODEL))
        wqkv.append(jnp.concatenate([wq, wk, wv], axis=1))   # fused QKV [D, 3D]
        wo.append(nrm((D_MODEL, D_MODEL)))
        w1.append(nrm((D_MODEL, D_FF)))
        w2.append(nrm((D_FF, D_MODEL)))
    p["w_qkv"] = jnp.stack(wqkv).astype(ACT_DTYPE)                       # [L, D, 3D]
    p["b_qkv"] = jnp.zeros((N_LAYERS, 1, 3 * D_MODEL), jnp.float32)
    p["wo"] = jnp.stack(wo).astype(ACT_DTYPE)                            # [L, D, D]
    p["bo"] = jnp.zeros((N_LAYERS, 1, D_MODEL), jnp.float32)
    p["ln_g"] = jnp.ones((N_LAYERS, 1, D_MODEL), jnp.float32)
    p["ln_b"] = jnp.zeros((N_LAYERS, 1, D_MODEL), jnp.float32)
    p["w1"] = jnp.stack(w1).astype(ACT_DTYPE)                            # [L, D, F]
    p["b1"] = jnp.zeros((N_LAYERS, 1, D_FF), jnp.float32)
    p["w2"] = jnp.stack(w2).astype(ACT_DTYPE)                            # [L, F, D]
    p["b2"] = jnp.zeros((N_LAYERS, 1, D_MODEL), jnp.float32)
    return p


# ------------------------------ forward -------------------------------------
def bert_forward(params, input_ids, segment_ids, masked_pos):
    B, S = input_ids.shape
    P = masked_pos.shape[1]

    # Embedding sum: tok + pos + seg (gathers are XLA glue); the embedding
    # LayerNorm itself is fused into layer 0 of the encoder-stack kernel.
    tok = params["tok_embed"][input_ids]                       # [B, S, D]
    pos = params["pos_embed"][jnp.arange(S)][None, :, :]       # [1, S, D]
    seg = params["seg_embed"][segment_ids]                     # [B, S, D]
    emb = (tok + pos + seg).reshape(B * S, D_MODEL)            # [B*S, D] f32

    # get_attn_pad_mask as a precomputed additive bias over keys (-1e9 where key is PAD).
    mask_bias = jnp.where(input_ids == 0, -1e9, 0.0).astype(jnp.float32).reshape(B, 1, S)

    # Whole encoder stack (embedding LN + N_LAYERS encoder layers) in ONE pallas_call.
    x = encoder_stack(emb, mask_bias, params, batch=B, seq=S)  # [B*S, D] f32
    x = x.reshape(B, S, D_MODEL)

    # ---- classification head: tanh(fc(output[:, 0])) -> classifier ----
    # Tiny (M=B, N=2): plain JAX — a sub-(8,128) Pallas tile is all masked stores.
    h_pooled = jnp.tanh(x[:, 0, :] @ params["fc_w"] + params["fc_b"])
    logits_clsf = h_pooled @ params["cls_w"] + params["cls_b"]          # [B, 2]

    # ---- masked LM head: torch.gather in XLA, then one fused Pallas kernel ----
    idx = jnp.broadcast_to(masked_pos[:, :, None], (B, P, D_MODEL))
    h_masked = jnp.take_along_axis(x, idx, axis=1).reshape(B * P, D_MODEL)
    logits_lm = mlm_head(h_masked, params)[:, :VOCAB].reshape(B, P, VOCAB)

    return logits_lm, logits_clsf


# -------------------------------- main ---------------------------------------
if __name__ == "__main__":
    B, S, P = 2, 16, 4

    key = jax.random.PRNGKey(0)
    k_par, k_ids, k_pos = jax.random.split(key, 3)

    params = init_params(k_par)

    input_ids = jax.random.randint(k_ids, (B, S), 1, VOCAB, dtype=jnp.int32)
    # introduce some PAD (id 0) tokens so the attention pad-mask is exercised
    input_ids = input_ids.at[1, S - 3:].set(0)
    segment_ids = jnp.concatenate(
        [jnp.zeros((B, S // 2), jnp.int32), jnp.ones((B, S - S // 2), jnp.int32)], axis=1)
    masked_pos = jax.random.randint(k_pos, (B, P), 0, S, dtype=jnp.int32)

    fwd = jax.jit(bert_forward)
    logits_lm, logits_clsf = fwd(params, input_ids, segment_ids, masked_pos)
    jax.block_until_ready((logits_lm, logits_clsf))

    assert logits_lm.shape == (B, P, VOCAB)
    assert logits_clsf.shape == (B, 2)
    assert bool(jnp.all(jnp.isfinite(logits_lm))) and bool(jnp.all(jnp.isfinite(logits_clsf)))
    print("KERNEL_OK")
</pallas_src>

<mosaic_0001>
module attributes {stable_mosaic.version = 11 : i64} {
  func.func @_encoder_stack_kernel(%arg0: i32, %arg1: memref<32x128xf32, #tpu.memory_space<vmem>>, %arg2: memref<2x1x16xf32, #tpu.memory_space<vmem>>, %arg3: memref<1x128xf32, #tpu.memory_space<vmem>>, %arg4: memref<1x128xf32, #tpu.memory_space<vmem>>, %arg5: memref<1x128x384xbf16, #tpu.memory_space<vmem>>, %arg6: memref<1x1x384xf32, #tpu.memory_space<vmem>>, %arg7: memref<1x128x128xbf16, #tpu.memory_space<vmem>>, %arg8: memref<1x1x128xf32, #tpu.memory_space<vmem>>, %arg9: memref<1x1x128xf32, #tpu.memory_space<vmem>>, %arg10: memref<1x1x128xf32, #tpu.memory_space<vmem>>, %arg11: memref<1x128x512xbf16, #tpu.memory_space<vmem>>, %arg12: memref<1x1x512xf32, #tpu.memory_space<vmem>>, %arg13: memref<1x512x128xbf16, #tpu.memory_space<vmem>>, %arg14: memref<1x1x128xf32, #tpu.memory_space<vmem>>, %arg15: memref<32x128xf32, #tpu.memory_space<vmem>>, %arg16: memref<32x128xf32, #tpu.memory_space<vmem>>) attributes {dimension_semantics = [#tpu.dimension_semantics<arbitrary>], iteration_bounds = array<i64: 2>, scalar_prefetch = 0 : i64, scratch_operands = 1 : i64, tpu.core_type = #tpu.core_type<tc>, window_params = [{pipeline_mode = #tpu.pipeline_mode<synchronous>, transform_indices = @transform_0, window_bounds = array<i64: 32, 128>}, {pipeline_mode = #tpu.pipeline_mode<synchronous>, transform_indices = @transform_1, window_bounds = array<i64: 2, 1, 16>}, {pipeline_mode = #tpu.pipeline_mode<synchronous>, transform_indices = @transform_2, window_bounds = array<i64: 1, 128>}, {pipeline_mode = #tpu.pipeline_mode<synchronous>, transform_indices = @transform_3, window_bounds = array<i64: 1, 128>}, {transform_indices = @transform_4, window_bounds = array<i64: 1, 128, 384>}, {transform_indices = @transform_5, window_bounds = array<i64: 1, 1, 384>}, {transform_indices = @transform_6, window_bounds = array<i64: 1, 128, 128>}, {transform_indices = @transform_7, window_bounds = array<i64: 1, 1, 128>}, {transform_indices = @transform_8, window_bounds = array<i64: 1, 1, 128>}, {transform_indices = @transform_9, window_bounds = array<i64: 1, 1, 128>}, {transform_indices = @transform_10, window_bounds = array<i64: 1, 128, 512>}, {transform_indices = @transform_11, window_bounds = array<i64: 1, 1, 512>}, {transform_indices = @transform_12, window_bounds = array<i64: 1, 512, 128>}, {transform_indices = @transform_13, window_bounds = array<i64: 1, 1, 128>}, {pipeline_mode = #tpu.pipeline_mode<synchronous>, transform_indices = @transform_14, window_bounds = array<i64: 32, 128>}]} {
    %c0_i32 = arith.constant 0 : i32
    %0 = arith.cmpi eq, %arg0, %c0_i32 : i32
    %1 = arith.extui %0 : i1 to i32
    %c0_i32_0 = arith.constant 0 : i32
    %2 = arith.cmpi ne, %1, %c0_i32_0 : i32
    scf.if %2 {
      %c0_92 = arith.constant 0 : index
      %c0_93 = arith.constant 0 : index
      %239 = vector.load %arg1[%c0_92, %c0_93] : memref<32x128xf32, #tpu.memory_space<vmem>>, vector<32x128xf32>
      %c0_94 = arith.constant 0 : index
      %c0_95 = arith.constant 0 : index
      %240 = vector.load %arg3[%c0_94, %c0_95] : memref<1x128xf32, #tpu.memory_space<vmem>>, vector<1x128xf32>
      %c0_96 = arith.constant 0 : index
      %c0_97 = arith.constant 0 : index
      %241 = vector.load %arg4[%c0_96, %c0_97] : memref<1x128xf32, #tpu.memory_space<vmem>>, vector<1x128xf32>
      %cst_98 = arith.constant dense<0.000000e+00> : vector<32xf32>
      %242 = vector.multi_reduction <add>, %239, %cst_98 [1] : vector<32x128xf32> to vector<32xf32>
      %243 = vector.shape_cast %242 : vector<32xf32> to vector<32x1xf32>
      %cst_99 = arith.constant 1.280000e+02 : f32
      %244 = vector.broadcast %cst_99 : f32 to vector<32x1xf32>
      %245 = arith.divf %243, %244 : vector<32x1xf32>
      %246 = vector.broadcast %245 : vector<32x1xf32> to vector<32x128xf32>
      %247 = arith.subf %239, %246 : vector<32x128xf32>
      %248 = arith.mulf %247, %247 : vector<32x128xf32>
      %cst_100 = arith.constant dense<0.000000e+00> : vector<32xf32>
      %249 = vector.multi_reduction <add>, %248, %cst_100 [1] : vector<32x128xf32> to vector<32xf32>
      %250 = vector.shape_cast %249 : vector<32xf32> to vector<32x1xf32>
      %cst_101 = arith.constant 1.280000e+02 : f32
      %251 = vector.broadcast %cst_101 : f32 to vector<32x1xf32>
      %252 = arith.divf %250, %251 : vector<32x1xf32>
      %253 = vector.broadcast %245 : vector<32x1xf32> to vector<32x128xf32>
      %254 = arith.subf %239, %253 : vector<32x128xf32>
      %cst_102 = arith.constant 9.99999974E-6 : f32
      %255 = vector.broadcast %cst_102 : f32 to vector<32x1xf32>
      %256 = arith.addf %252, %255 : vector<32x1xf32>
      %257 = math.rsqrt %256 : vector<32x1xf32>
      %258 = vector.broadcast %257 : vector<32x1xf32> to vector<32x128xf32>
      %259 = arith.mulf %254, %258 : vector<32x128xf32>
      %260 = vector.broadcast %240 : vector<1x128xf32> to vector<32x128xf32>
      %261 = arith.mulf %259, %260 : vector<32x128xf32>
      %262 = vector.broadcast %241 : vector<1x128xf32> to vector<32x128xf32>
      %263 = arith.addf %261, %262 : vector<32x128xf32>
      %c0_103 = arith.constant 0 : index
      %c0_104 = arith.constant 0 : index
      %264 = vector.load %arg16[%c0_103, %c0_104] : memref<32x128xf32, #tpu.memory_space<vmem>>, vector<32x128xf32>
      tpu.vector_store %arg16[%c0_103, %c0_104], %263 {strides = array<i32>} : memref<32x128xf32, #tpu.memory_space<vmem>>, vector<32x128xf32>,
    } else {
    }
    %c0 = arith.constant 0 : index
    %c0_1 = arith.constant 0 : index
    %3 = vector.load %arg16[%c0, %c0_1] : memref<32x128xf32, #tpu.memory_space<vmem>>, vector<32x128xf32>
    %4 = arith.truncf %3 : vector<32x128xf32> to vector<32x128xbf16>
    %c0_2 = arith.constant 0 : index
    %c0_3 = arith.constant 0 : index
    %c0_4 = arith.constant 0 : index
    %5 = vector.load %arg5[%c0_2, %c0_3, %c0_4] : memref<1x128x384xbf16, #tpu.memory_space<vmem>>, vector<1x128x384xbf16>
    %6 = vector.shape_cast %5 : vector<1x128x384xbf16> to vector<128x384xbf16>
    %cst = arith.constant dense<0.000000e+00> : vector<32x384xf32>
    %7 = tpu.matmul %4, %6, %cst {dimension_numbers = #tpu.dot_dimension_numbers<[1], [0], [0], [1], [0, 0, 1, 1], [], []>} : vector<32x128xbf16>, vector<128x384xbf16>, vector<32x384xf32> -> vector<32x384xf32>
    %c0_5 = arith.constant 0 : index
    %c0_6 = arith.constant 0 : index
    %c0_7 = arith.constant 0 : index
    %8 = vector.load %arg6[%c0_5, %c0_6, %c0_7] : memref<1x1x384xf32, #tpu.memory_space<vmem>>, vector<1x1x384xf32>
    %9 = vector.shape_cast %8 : vector<1x1x384xf32> to vector<1x384xf32>
    %10 = vector.broadcast %9 : vector<1x384xf32> to vector<32x384xf32>
    %11 = arith.addf %7, %10 : vector<32x384xf32>
    %12 = arith.truncf %11 : vector<32x384xf32> to vector<32x384xbf16>
    %13 = vector.extract_strided_slice %12 {offsets = [0, 0], sizes = [16, 128], strides = [1, 1]} : vector<32x384xbf16> to vector<16x128xbf16>
    %14 = vector.extract_strided_slice %12 {offsets = [0, 128], sizes = [16, 128], strides = [1, 1]} : vector<32x384xbf16> to vector<16x128xbf16>
    %15 = vector.extract_strided_slice %12 {offsets = [0, 256], sizes = [16, 128], strides = [1, 1]} : vector<32x384xbf16> to vector<16x128xbf16>
    %c0_8 = arith.constant 0 : index
    %c0_9 = arith.constant 0 : index
    %c0_10 = arith.constant 0 : index
    %16 = vector.load %arg2[%c0_8, %c0_9, %c0_10] : memref<2x1x16xf32, #tpu.memory_space<vmem>>, vector<1x1x16xf32>
    %17 = vector.shape_cast %16 : vector<1x1x16xf32> to vector<1x16xf32>
    %18 = vector.extract_strided_slice %13 {offsets = [0, 0], sizes = [16, 32], strides = [1, 1]} : vector<16x128xbf16> to vector<16x32xbf16>
    %19 = vector.extract_strided_slice %14 {offsets = [0, 0], sizes = [16, 32], strides = [1, 1]} : vector<16x128xbf16> to vector<16x32xbf16>
    %20 = vector.extract_strided_slice %15 {offsets = [0, 0], sizes = [16, 32], strides = [1, 1]} : vector<16x128xbf16> to vector<16x32xbf16>
    %cst_11 = arith.constant dense<0.000000e+00> : vector<16x16xf32>
    %21 = tpu.matmul %18, %19, %cst_11 {dimension_numbers = #tpu.dot_dimension_numbers<[1], [1], [0], [0], [0, 0, 1, 0], [], []>} : vector<16x32xbf16>, vector<16x32xbf16>, vector<16x16xf32> -> vector<16x16xf32>
    %cst_12 = arith.constant 0.176776692 : f32
    %22 = vector.broadcast %cst_12 : f32 to vector<16x16xf32>
    %23 = arith.mulf %21, %22 : vector<16x16xf32>
    %24 = vector.broadcast %17 : vector<1x16xf32> to vector<16x16xf32>
    %25 = arith.addf %23, %24 : vector<16x16xf32>
    %cst_13 = arith.constant dense<0xFF800000> : vector<16xf32>
    %26 = vector.multi_reduction <maximumf>, %25, %cst_13 [1] : vector<16x16xf32> to vector<16xf32>
    %27 = vector.shape_cast %26 : vector<16xf32> to vector<16x1xf32>
    %28 = vector.broadcast %27 : vector<16x1xf32> to vector<16x16xf32>
    %29 = arith.subf %25, %28 : vector<16x16xf32>
    %30 = math.exp %29 : vector<16x16xf32>
    %cst_14 = arith.constant dense<0.000000e+00> : vector<16xf32>
    %31 = vector.multi_reduction <add>, %30, %cst_14 [1] : vector<16x16xf32> to vector<16xf32>
    %32 = vector.shape_cast %31 : vector<16xf32> to vector<16x1xf32>
    %33 = vector.broadcast %32 : vector<16x1xf32> to vector<16x16xf32>
    %34 = arith.divf %30, %33 : vector<16x16xf32>
    %35 = arith.truncf %34 : vector<16x16xf32> to vector<16x16xbf16>
    %cst_15 = arith.constant dense<0.000000e+00> : vector<16x32xf32>
    %36 = tpu.matmul %35, %20, %cst_15 {dimension_numbers = #tpu.dot_dimension_numbers<[1], [0], [0], [1], [0, 0, 1, 1], [], []>} : vector<16x16xbf16>, vector<16x32xbf16>, vector<16x32xf32> -> vector<16x32xf32>
    %37 = vector.extract_strided_slice %13 {offsets = [0, 32], sizes = [16, 32], strides = [1, 1]} : vector<16x128xbf16> to vector<16x32xbf16>
    %38 = vector.extract_strided_slice %14 {offsets = [0, 32], sizes = [16, 32], strides = [1, 1]} : vector<16x128xbf16> to vector<16x32xbf16>
    %39 = vector.extract_strided_slice %15 {offsets = [0, 32], sizes = [16, 32], strides = [1, 1]} : vector<16x128xbf16> to vector<16x32xbf16>
    %cst_16 = arith.constant dense<0.000000e+00> : vector<16x16xf32>
    %40 = tpu.matmul %37, %38, %cst_16 {dimension_numbers = #tpu.dot_dimension_numbers<[1], [1], [0], [0], [0, 0, 1, 0], [], []>} : vector<16x32xbf16>, vector<16x32xbf16>, vector<16x16xf32> -> vector<16x16xf32>
    %cst_17 = arith.constant 0.176776692 : f32
    %41 = vector.broadcast %cst_17 : f32 to vector<16x16xf32>
    %42 = arith.mulf %40, %41 : vector<16x16xf32>
    %43 = vector.broadcast %17 : vector<1x16xf32> to vector<16x16xf32>
    %44 = arith.addf %42, %43 : vector<16x16xf32>
    %cst_18 = arith.constant dense<0xFF800000> : vector<16xf32>
    %45 = vector.multi_reduction <maximumf>, %44, %cst_18 [1] : vector<16x16xf32> to vector<16xf32>
    %46 = vector.shape_cast %45 : vector<16xf32> to vector<16x1xf32>
    %47 = vector.broadcast %46 : vector<16x1xf32> to vector<16x16xf32>
    %48 = arith.subf %44, %47 : vector<16x16xf32>
    %49 = math.exp %48 : vector<16x16xf32>
    %cst_19 = arith.constant dense<0.000000e+00> : vector<16xf32>
    %50 = vector.multi_reduction <add>, %49, %cst_19 [1] : vector<16x16xf32> to vector<16xf32>
    %51 = vector.shape_cast %50 : vector<16xf32> to vector<16x1xf32>
    %52 = vector.broadcast %51 : vector<16x1xf32> to vector<16x16xf32>
    %53 = arith.divf %49, %52 : vector<16x16xf32>
    %54 = arith.truncf %53 : vector<16x16xf32> to vector<16x16xbf16>
    %cst_20 = arith.constant dense<0.000000e+00> : vector<16x32xf32>
    %55 = tpu.matmul %54, %39, %cst_20 {dimension_numbers = #tpu.dot_dimension_numbers<[1], [0], [0], [1], [0, 0, 1, 1], [], []>} : vector<16x16xbf16>, vector<16x32xbf16>, vector<16x32xf32> -> vector<16x32xf32>
    %56 = vector.extract_strided_slice %13 {offsets = [0, 64], sizes = [16, 32], strides = [1, 1]} : vector<16x128xbf16> to vector<16x32xbf16>
    %57 = vector.extract_strided_slice %14 {offsets = [0, 64], sizes = [16, 32], strides = [1, 1]} : vector<16x128xbf16> to vector<16x32xbf16>
    %58 = vector.extract_strided_slice %15 {offsets = [0, 64], sizes = [16, 32], strides = [1, 1]} : vector<16x128xbf16> to vector<16x32xbf16>
    %cst_21 = arith.constant dense<0.000000e+00> : vector<16x16xf32>
    %59 = tpu.matmul %56, %57, %cst_21 {dimension_numbers = #tpu.dot_dimension_numbers<[1], [1], [0], [0], [0, 0, 1, 0], [], []>} : vector<16x32xbf16>, vector<16x32xbf16>, vector<16x16xf32> -> vector<16x16xf32>
    %cst_22 = arith.constant 0.176776692 : f32
    %60 = vector.broadcast %cst_22 : f32 to vector<16x16xf32>
    %61 = arith.mulf %59, %60 : vector<16x16xf32>
    %62 = vector.broadcast %17 : vector<1x16xf32> to vector<16x16xf32>
    %63 = arith.addf %61, %62 : vector<16x16xf32>
    %cst_23 = arith.constant dense<0xFF800000> : vector<16xf32>
    %64 = vector.multi_reduction <maximumf>, %63, %cst_23 [1] : vector<16x16xf32> to vector<16xf32>
    %65 = vector.shape_cast %64 : vector<16xf32> to vector<16x1xf32>
    %66 = vector.broadcast %65 : vector<16x1xf32> to vector<16x16xf32>
    %67 = arith.subf %63, %66 : vector<16x16xf32>
    %68 = math.exp %67 : vector<16x16xf32>
    %cst_24 = arith.constant dense<0.000000e+00> : vector<16xf32>
    %69 = vector.multi_reduction <add>, %68, %cst_24 [1] : vector<16x16xf32> to vector<16xf32>
    %70 = vector.shape_cast %69 : vector<16xf32> to vector<16x1xf32>
    %71 = vector.broadcast %70 : vector<16x1xf32> to vector<16x16xf32>
    %72 = arith.divf %68, %71 : vector<16x16xf32>
    %73 = arith.truncf %72 : vector<16x16xf32> to vector<16x16xbf16>
    %cst_25 = arith.constant dense<0.000000e+00> : vector<16x32xf32>
    %74 = tpu.matmul %73, %58, %cst_25 {dimension_numbers = #tpu.dot_dimension_numbers<[1], [0], [0], [1], [0, 0, 1, 1], [], []>} : vector<16x16xbf16>, vector<16x32xbf16>, vector<16x32xf32> -> vector<16x32xf32>
    %75 = vector.extract_strided_slice %13 {offsets = [0, 96], sizes = [16, 32], strides = [1, 1]} : vector<16x128xbf16> to vector<16x32xbf16>
    %76 = vector.extract_strided_slice %14 {offsets = [0, 96], sizes = [16, 32], strides = [1, 1]} : vector<16x128xbf16> to vector<16x32xbf16>
    %77 = vector.extract_strided_slice %15 {offsets = [0, 96], sizes = [16, 32], strides = [1, 1]} : vector<16x128xbf16> to vector<16x32xbf16>
    %cst_26 = arith.constant dense<0.000000e+00> : vector<16x16xf32>
    %78 = tpu.matmul %75, %76, %cst_26 {dimension_numbers = #tpu.dot_dimension_numbers<[1], [1], [0], [0], [0, 0, 1, 0], [], []>} : vector<16x32xbf16>, vector<16x32xbf16>, vector<16x16xf32> -> vector<16x16xf32>
    %cst_27 = arith.constant 0.176776692 : f32
    %79 = vector.broadcast %cst_27 : f32 to vector<16x16xf32>
    %80 = arith.mulf %78, %79 : vector<16x16xf32>
    %81 = vector.broadcast %17 : vector<1x16xf32> to vector<16x16xf32>
    %82 = arith.addf %80, %81 : vector<16x16xf32>
    %cst_28 = arith.constant dense<0xFF800000> : vector<16xf32>
    %83 = vector.multi_reduction <maximumf>, %82, %cst_28 [1] : vector<16x16xf32> to vector<16xf32>
    %84 = vector.shape_cast %83 : vector<16xf32> to vector<16x1xf32>
    %85 = vector.broadcast %84 : vector<16x1xf32> to vector<16x16xf32>
    %86 = arith.subf %82, %85 : vector<16x16xf32>
    %87 = math.exp %86 : vector<16x16xf32>
    %cst_29 = arith.constant dense<0.000000e+00> : vector<16xf32>
    %88 = vector.multi_reduction <add>, %87, %cst_29 [1] : vector<16x16xf32> to vector<16xf32>
    %89 = vector.shape_cast %88 : vector<16xf32> to vector<16x1xf32>
    %90 = vector.broadcast %89 : vector<16x1xf32> to vector<16x16xf32>
    %91 = arith.divf %87, %90 : vector<16x16xf32>
    %92 = arith.truncf %91 : vector<16x16xf32> to vector<16x16xbf16>
    %cst_30 = arith.constant dense<0.000000e+00> : vector<16x32xf32>
    %93 = tpu.matmul %92, %77, %cst_30 {dimension_numbers = #tpu.dot_dimension_numbers<[1], [0], [0], [1], [0, 0, 1, 1], [], []>} : vector<16x16xbf16>, vector<16x32xbf16>, vector<16x32xf32> -> vector<16x32xf32>
    %94 = tpu.concatenate %36, %55, %74, %93 in 1 : vector<16x32xf32>, vector<16x32xf32>, vector<16x32xf32>, vector<16x32xf32> -> vector<16x128xf32>
    %95 = vector.extract_strided_slice %12 {offsets = [16, 0], sizes = [16, 128], strides = [1, 1]} : vector<32x384xbf16> to vector<16x128xbf16>
    %96 = vector.extract_strided_slice %12 {offsets = [16, 128], sizes = [16, 128], strides = [1, 1]} : vector<32x384xbf16> to vector<16x128xbf16>
    %97 = vector.extract_strided_slice %12 {offsets = [16, 256], sizes = [16, 128], strides = [1, 1]} : vector<32x384xbf16> to vector<16x128xbf16>
    %c1 = arith.constant 1 : index
    %c0_31 = arith.constant 0 : index
    %c0_32 = arith.constant 0 : index
    %98 = vector.load %arg2[%c1, %c0_31, %c0_32] : memref<2x1x16xf32, #tpu.memory_space<vmem>>, vector<1x1x16xf32>
    %99 = vector.shape_cast %98 : vector<1x1x16xf32> to vector<1x16xf32>
    %100 = vector.extract_strided_slice %95 {offsets = [0, 0], sizes = [16, 32], strides = [1, 1]} : vector<16x128xbf16> to vector<16x32xbf16>
    %101 = vector.extract_strided_slice %96 {offsets = [0, 0], sizes = [16, 32], strides = [1, 1]} : vector<16x128xbf16> to vector<16x32xbf16>
    %102 = vector.extract_strided_slice %97 {offsets = [0, 0], sizes = [16, 32], strides = [1, 1]} : vector<16x128xbf16> to vector<16x32xbf16>
    %cst_33 = arith.constant dense<0.000000e+00> : vector<16x16xf32>
    %103 = tpu.matmul %100, %101, %cst_33 {dimension_numbers = #tpu.dot_dimension_numbers<[1], [1], [0], [0], [0, 0, 1, 0], [], []>} : vector<16x32xbf16>, vector<16x32xbf16>, vector<16x16xf32> -> vector<16x16xf32>
    %cst_34 = arith.constant 0.176776692 : f32
    %104 = vector.broadcast %cst_34 : f32 to vector<16x16xf32>
    %105 = arith.mulf %103, %104 : vector<16x16xf32>
    %106 = vector.broadcast %99 : vector<1x16xf32> to vector<16x16xf32>
    %107 = arith.addf %105, %106 : vector<16x16xf32>
    %cst_35 = arith.constant dense<0xFF800000> : vector<16xf32>
    %108 = vector.multi_reduction <maximumf>, %107, %cst_35 [1] : vector<16x16xf32> to vector<16xf32>
    %109 = vector.shape_cast %108 : vector<16xf32> to vector<16x1xf32>
    %110 = vector.broadcast %109 : vector<16x1xf32> to vector<16x16xf32>
    %111 = arith.subf %107, %110 : vector<16x16xf32>
    %112 = math.exp %111 : vector<16x16xf32>
    %cst_36 = arith.constant dense<0.000000e+00> : vector<16xf32>
    %113 = vector.multi_reduction <add>, %112, %cst_36 [1] : vector<16x16xf32> to vector<16xf32>
    %114 = vector.shape_cast %113 : vector<16xf32> to vector<16x1xf32>
    %115 = vector.broadcast %114 : vector<16x1xf32> to vector<16x16xf32>
    %116 = arith.divf %112, %115 : vector<16x16xf32>
    %117 = arith.truncf %116 : vector<16x16xf32> to vector<16x16xbf16>
    %cst_37 = arith.constant dense<0.000000e+00> : vector<16x32xf32>
    %118 = tpu.matmul %117, %102, %cst_37 {dimension_numbers = #tpu.dot_dimension_numbers<[1], [0], [0], [1], [0, 0, 1, 1], [], []>} : vector<16x16xbf16>, vector<16x32xbf16>, vector<16x32xf32> -> vector<16x32xf32>
    %119 = vector.extract_strided_slice %95 {offsets = [0, 32], sizes = [16, 32], strides = [1, 1]} : vector<16x128xbf16> to vector<16x32xbf16>
    %120 = vector.extract_strided_slice %96 {offsets = [0, 32], sizes = [16, 32], strides = [1, 1]} : vector<16x128xbf16> to vector<16x32xbf16>
    %121 = vector.extract_strided_slice %97 {offsets = [0, 32], sizes = [16, 32], strides = [1, 1]} : vector<16x128xbf16> to vector<16x32xbf16>
    %cst_38 = arith.constant dense<0.000000e+00> : vector<16x16xf32>
    %122 = tpu.matmul %119, %120, %cst_38 {dimension_numbers = #tpu.dot_dimension_numbers<[1], [1], [0], [0], [0, 0, 1, 0], [], []>} : vector<16x32xbf16>, vector<16x32xbf16>, vector<16x16xf32> -> vector<16x16xf32>
    %cst_39 = arith.constant 0.176776692 : f32
    %123 = vector.broadcast %cst_39 : f32 to vector<16x16xf32>
    %124 = arith.mulf %122, %123 : vector<16x16xf32>
    %125 = vector.broadcast %99 : vector<1x16xf32> to vector<16x16xf32>
    %126 = arith.addf %124, %125 : vector<16x16xf32>
    %cst_40 = arith.constant dense<0xFF800000> : vector<16xf32>
    %127 = vector.multi_reduction <maximumf>, %126, %cst_40 [1] : vector<16x16xf32> to vector<16xf32>
    %128 = vector.shape_cast %127 : vector<16xf32> to vector<16x1xf32>
    %129 = vector.broadcast %128 : vector<16x1xf32> to vector<16x16xf32>
    %130 = arith.subf %126, %129 : vector<16x16xf32>
    %131 = math.exp %130 : vector<16x16xf32>
    %cst_41 = arith.constant dense<0.000000e+00> : vector<16xf32>
    %132 = vector.multi_reduction <add>, %131, %cst_41 [1] : vector<16x16xf32> to vector<16xf32>
    %133 = vector.shape_cast %132 : vector<16xf32> to vector<16x1xf32>
    %134 = vector.broadcast %133 : vector<16x1xf32> to vector<16x16xf32>
    %135 = arith.divf %131, %134 : vector<16x16xf32>
    %136 = arith.truncf %135 : vector<16x16xf32> to vector<16x16xbf16>
    %cst_42 = arith.constant dense<0.000000e+00> : vector<16x32xf32>
    %137 = tpu.matmul %136, %121, %cst_42 {dimension_numbers = #tpu.dot_dimension_numbers<[1], [0], [0], [1], [0, 0, 1, 1], [], []>} : vector<16x16xbf16>, vector<16x32xbf16>, vector<16x32xf32> -> vector<16x32xf32>
    %138 = vector.extract_strided_slice %95 {offsets = [0, 64], sizes = [16, 32], strides = [1, 1]} : vector<16x128xbf16> to vector<16x32xbf16>
    %139 = vector.extract_strided_slice %96 {offsets = [0, 64], sizes = [16, 32], strides = [1, 1]} : vector<16x128xbf16> to vector<16x32xbf16>
    %140 = vector.extract_strided_slice %97 {offsets = [0, 64], sizes = [16, 32], strides = [1, 1]} : vector<16x128xbf16> to vector<16x32xbf16>
    %cst_43 = arith.constant dense<0.000000e+00> : vector<16x16xf32>
    %141 = tpu.matmul %138, %139, %cst_43 {dimension_numbers = #tpu.dot_dimension_numbers<[1], [1], [0], [0], [0, 0, 1, 0], [], []>} : vector<16x32xbf16>, vector<16x32xbf16>, vector<16x16xf32> -> vector<16x16xf32>
    %cst_44 = arith.constant 0.176776692 : f32
    %142 = vector.broadcast %cst_44 : f32 to vector<16x16xf32>
    %143 = arith.mulf %141, %142 : vector<16x16xf32>
    %144 = vector.broadcast %99 : vector<1x16xf32> to vector<16x16xf32>
    %145 = arith.addf %143, %144 : vector<16x16xf32>
    %cst_45 = arith.constant dense<0xFF800000> : vector<16xf32>
    %146 = vector.multi_reduction <maximumf>, %145, %cst_45 [1] : vector<16x16xf32> to vector<16xf32>
    %147 = vector.shape_cast %146 : vector<16xf32> to vector<16x1xf32>
    %148 = vector.broadcast %147 : vector<16x1xf32> to vector<16x16xf32>
    %149 = arith.subf %145, %148 : vector<16x16xf32>
    %150 = math.exp %149 : vector<16x16xf32>
    %cst_46 = arith.constant dense<0.000000e+00> : vector<16xf32>
    %151 = vector.multi_reduction <add>, %150, %cst_46 [1] : vector<16x16xf32> to vector<16xf32>
    %152 = vector.shape_cast %151 : vector<16xf32> to vector<16x1xf32>
    %153 = vector.broadcast %152 : vector<16x1xf32> to vector<16x16xf32>
    %154 = arith.divf %150, %153 : vector<16x16xf32>
    %155 = arith.truncf %154 : vector<16x16xf32> to vector<16x16xbf16>
    %cst_47 = arith.constant dense<0.000000e+00> : vector<16x32xf32>
    %156 = tpu.matmul %155, %140, %cst_47 {dimension_numbers = #tpu.dot_dimension_numbers<[1], [0], [0], [1], [0, 0, 1, 1], [], []>} : vector<16x16xbf16>, vector<16x32xbf16>, vector<16x32xf32> -> vector<16x32xf32>
    %157 = vector.extract_strided_slice %95 {offsets = [0, 96], sizes = [16, 32], strides = [1, 1]} : vector<16x128xbf16> to vector<16x32xbf16>
    %158 = vector.extract_strided_slice %96 {offsets = [0, 96], sizes = [16, 32], strides = [1, 1]} : vector<16x128xbf16> to vector<16x32xbf16>
    %159 = vector.extract_strided_slice %97 {offsets = [0, 96], sizes = [16, 32], strides = [1, 1]} : vector<16x128xbf16> to vector<16x32xbf16>
    %cst_48 = arith.constant dense<0.000000e+00> : vector<16x16xf32>
    %160 = tpu.matmul %157, %158, %cst_48 {dimension_numbers = #tpu.dot_dimension_numbers<[1], [1], [0], [0], [0, 0, 1, 0], [], []>} : vector<16x32xbf16>, vector<16x32xbf16>, vector<16x16xf32> -> vector<16x16xf32>
    %cst_49 = arith.constant 0.176776692 : f32
    %161 = vector.broadcast %cst_49 : f32 to vector<16x16xf32>
    %162 = arith.mulf %160, %161 : vector<16x16xf32>
    %163 = vector.broadcast %99 : vector<1x16xf32> to vector<16x16xf32>
    %164 = arith.addf %162, %163 : vector<16x16xf32>
    %cst_50 = arith.constant dense<0xFF800000> : vector<16xf32>
    %165 = vector.multi_reduction <maximumf>, %164, %cst_50 [1] : vector<16x16xf32> to vector<16xf32>
    %166 = vector.shape_cast %165 : vector<16xf32> to vector<16x1xf32>
    %167 = vector.broadcast %166 : vector<16x1xf32> to vector<16x16xf32>
    %168 = arith.subf %164, %167 : vector<16x16xf32>
    %169 = math.exp %168 : vector<16x16xf32>
    %cst_51 = arith.constant dense<0.000000e+00> : vector<16xf32>
    %170 = vector.multi_reduction <add>, %169, %cst_51 [1] : vector<16x16xf32> to vector<16xf32>
    %171 = vector.shape_cast %170 : vector<16xf32> to vector<16x1xf32>
    %172 = vector.broadcast %171 : vector<16x1xf32> to vector<16x16xf32>
    %173 = arith.divf %169, %172 : vector<16x16xf32>
    %174 = arith.truncf %173 : vector<16x16xf32> to vector<16x16xbf16>
    %cst_52 = arith.constant dense<0.000000e+00> : vector<16x32xf32>
    %175 = tpu.matmul %174, %159, %cst_52 {dimension_numbers = #tpu.dot_dimension_numbers<[1], [0], [0], [1], [0, 0, 1, 1], [], []>} : vector<16x16xbf16>, vector<16x32xbf16>, vector<16x32xf32> -> vector<16x32xf32>
    %176 = tpu.concatenate %118, %137, %156, %175 in 1 : vector<16x32xf32>, vector<16x32xf32>, vector<16x32xf32>, vector<16x32xf32> -> vector<16x128xf32>
    %177 = tpu.concatenate %94, %176 in 0 : vector<16x128xf32>, vector<16x128xf32> -> vector<32x128xf32>
    %178 = arith.truncf %177 : vector<32x128xf32> to vector<32x128xbf16>
    %c0_53 = arith.constant 0 : index
    %c0_54 = arith.constant 0 : index
    %c0_55 = arith.constant 0 : index
    %179 = vector.load %arg7[%c0_53, %c0_54, %c0_55] : memref<1x128x128xbf16, #tpu.memory_space<vmem>>, vector<1x128x128xbf16>
    %180 = vector.shape_cast %179 : vector<1x128x128xbf16> to vector<128x128xbf16>
    %cst_56 = arith.constant dense<0.000000e+00> : vector<32x128xf32>
    %181 = tpu.matmul %178, %180, %cst_56 {dimension_numbers = #tpu.dot_dimension_numbers<[1], [0], [0], [1], [0, 0, 1, 1], [], []>} : vector<32x128xbf16>, vector<128x128xbf16>, vector<32x128xf32> -> vector<32x128xf32>
    %c0_57 = arith.constant 0 : index
    %c0_58 = arith.constant 0 : index
    %c0_59 = arith.constant 0 : index
    %182 = vector.load %arg8[%c0_57, %c0_58, %c0_59] : memref<1x1x128xf32, #tpu.memory_space<vmem>>, vector<1x1x128xf32>
    %183 = vector.shape_cast %182 : vector<1x1x128xf32> to vector<1x128xf32>
    %184 = vector.broadcast %183 : vector<1x128xf32> to vector<32x128xf32>
    %185 = arith.addf %181, %184 : vector<32x128xf32>
    %186 = arith.addf %185, %3 : vector<32x128xf32>
    %c0_60 = arith.constant 0 : index
    %c0_61 = arith.constant 0 : index
    %c0_62 = arith.constant 0 : index
    %187 = vector.load %arg9[%c0_60, %c0_61, %c0_62] : memref<1x1x128xf32, #tpu.memory_space<vmem>>, vector<1x1x128xf32>
    %188 = vector.shape_cast %187 : vector<1x1x128xf32> to vector<1x128xf32>
    %c0_63 = arith.constant 0 : index
    %c0_64 = arith.constant 0 : index
    %c0_65 = arith.constant 0 : index
    %189 = vector.load %arg10[%c0_63, %c0_64, %c0_65] : memref<1x1x128xf32, #tpu.memory_space<vmem>>, vector<1x1x128xf32>
    %190 = vector.shape_cast %189 : vector<1x1x128xf32> to vector<1x128xf32>
    %cst_66 = arith.constant dense<0.000000e+00> : vector<32xf32>
    %191 = vector.multi_reduction <add>, %186, %cst_66 [1] : vector<32x128xf32> to vector<32xf32>
    %192 = vector.shape_cast %191 : vector<32xf32> to vector<32x1xf32>
    %cst_67 = arith.constant 1.280000e+02 : f32
    %193 = vector.broadcast %cst_67 : f32 to vector<32x1xf32>
    %194 = arith.divf %192, %193 : vector<32x1xf32>
    %195 = vector.broadcast %194 : vector<32x1xf32> to vector<32x128xf32>
    %196 = arith.subf %186, %195 : vector<32x128xf32>
    %197 = arith.mulf %196, %196 : vector<32x128xf32>
    %cst_68 = arith.constant dense<0.000000e+00> : vector<32xf32>
    %198 = vector.multi_reduction <add>, %197, %cst_68 [1] : vector<32x128xf32> to vector<32xf32>
    %199 = vector.shape_cast %198 : vector<32xf32> to vector<32x1xf32>
    %cst_69 = arith.constant 1.280000e+02 : f32
    %200 = vector.broadcast %cst_69 : f32 to vector<32x1xf32>
    %201 = arith.divf %199, %200 : vector<32x1xf32>
    %202 = vector.broadcast %194 : vector<32x1xf32> to vector<32x128xf32>
    %203 = arith.subf %186, %202 : vector<32x128xf32>
    %cst_70 = arith.constant 9.99999974E-6 : f32
    %204 = vector.broadcast %cst_70 : f32 to vector<32x1xf32>
    %205 = arith.addf %201, %204 : vector<32x1xf32>
    %206 = math.rsqrt %205 : vector<32x1xf32>
    %207 = vector.broadcast %206 : vector<32x1xf32> to vector<32x128xf32>
    %208 = arith.mulf %203, %207 : vector<32x128xf32>
    %209 = vector.broadcast %188 : vector<1x128xf32> to vector<32x128xf32>
    %210 = arith.mulf %208, %209 : vector<32x128xf32>
    %211 = vector.broadcast %190 : vector<1x128xf32> to vector<32x128xf32>
    %212 = arith.addf %210, %211 : vector<32x128xf32>
    %213 = arith.truncf %212 : vector<32x128xf32> to vector<32x128xbf16>
    %c0_71 = arith.constant 0 : index
    %c0_72 = arith.constant 0 : index
    %c0_73 = arith.constant 0 : index
    %214 = vector.load %arg11[%c0_71, %c0_72, %c0_73] : memref<1x128x512xbf16, #tpu.memory_space<vmem>>, vector<1x128x512xbf16>
    %215 = vector.shape_cast %214 : vector<1x128x512xbf16> to vector<128x512xbf16>
    %cst_74 = arith.constant dense<0.000000e+00> : vector<32x512xf32>
    %216 = tpu.matmul %213, %215, %cst_74 {dimension_numbers = #tpu.dot_dimension_numbers<[1], [0], [0], [1], [0, 0, 1, 1], [], []>} : vector<32x128xbf16>, vector<128x512xbf16>, vector<32x512xf32> -> vector<32x512xf32>
    %c0_75 = arith.constant 0 : index
    %c0_76 = arith.constant 0 : index
    %c0_77 = arith.constant 0 : index
    %217 = vector.load %arg12[%c0_75, %c0_76, %c0_77] : memref<1x1x512xf32, #tpu.memory_space<vmem>>, vector<1x1x512xf32>
    %218 = vector.shape_cast %217 : vector<1x1x512xf32> to vector<1x512xf32>
    %219 = vector.broadcast %218 : vector<1x512xf32> to vector<32x512xf32>
    %220 = arith.addf %216, %219 : vector<32x512xf32>
    %cst_78 = arith.constant 5.000000e-01 : f32
    %221 = vector.broadcast %cst_78 : f32 to vector<32x512xf32>
    %222 = arith.mulf %220, %221 : vector<32x512xf32>
    %cst_79 = arith.constant 1.41421354 : f32
    %223 = vector.broadcast %cst_79 : f32 to vector<32x512xf32>
    %224 = arith.divf %220, %223 : vector<32x512xf32>
    %225 = math.erf %224 : vector<32x512xf32>
    %cst_80 = arith.constant 1.000000e+00 : f32
    %226 = vector.broadcast %cst_80 : f32 to vector<32x512xf32>
    %227 = arith.addf %226, %225 : vector<32x512xf32>
    %228 = arith.mulf %222, %227 : vector<32x512xf32>
    %229 = arith.truncf %228 : vector<32x512xf32> to vector<32x512xbf16>
    %c0_81 = arith.constant 0 : index
    %c0_82 = arith.constant 0 : index
    %c0_83 = arith.constant 0 : index
    %230 = vector.load %arg13[%c0_81, %c0_82, %c0_83] : memref<1x512x128xbf16, #tpu.memory_space<vmem>>, vector<1x512x128xbf16>
    %231 = vector.shape_cast %230 : vector<1x512x128xbf16> to vector<512x128xbf16>
    %cst_84 = arith.constant dense<0.000000e+00> : vector<32x128xf32>
    %232 = tpu.matmul %229, %231, %cst_84 {dimension_numbers = #tpu.dot_dimension_numbers<[1], [0], [0], [1], [0, 0, 1, 1], [], []>} : vector<32x512xbf16>, vector<512x128xbf16>, vector<32x128xf32> -> vector<32x128xf32>
    %c0_85 = arith.constant 0 : index
    %c0_86 = arith.constant 0 : index
    %c0_87 = arith.constant 0 : index
    %233 = vector.load %arg14[%c0_85, %c0_86, %c0_87] : memref<1x1x128xf32, #tpu.memory_space<vmem>>, vector<1x1x128xf32>
    %234 = vector.shape_cast %233 : vector<1x1x128xf32> to vector<1x128xf32>
    %235 = vector.broadcast %234 : vector<1x128xf32> to vector<32x128xf32>
    %236 = arith.addf %232, %235 : vector<32x128xf32>
    %c0_88 = arith.constant 0 : index
    %c0_89 = arith.constant 0 : index
    %237 = vector.load %arg16[%c0_88, %c0_89] : memref<32x128xf32, #tpu.memory_space<vmem>>, vector<32x128xf32>
    tpu.vector_store %arg16[%c0_88, %c0_89], %236 {strides = array<i32>} : memref<32x128xf32, #tpu.memory_space<vmem>>, vector<32x128xf32>,
    %c0_90 = arith.constant 0 : index
    %c0_91 = arith.constant 0 : index
    %238 = vector.load %arg15[%c0_90, %c0_91] : memref<32x128xf32, #tpu.memory_space<vmem>>, vector<32x128xf32>
    tpu.vector_store %arg15[%c0_90, %c0_91], %236 {strides = array<i32>} : memref<32x128xf32, #tpu.memory_space<vmem>>, vector<32x128xf32>,
    return
  }
  func.func @transform_0(%arg0: i32) -> (i32, i32) {
    %c0_i32 = arith.constant 0 : i32
    %c0_i32_0 = arith.constant 0 : i32
    %c0_i32_1 = arith.constant 0 : i32
    return %c0_i32, %c0_i32_0 : i32, i32
  }
  func.func @transform_1(%arg0: i32) -> (i32, i32, i32) {
    %c0_i32 = arith.constant 0 : i32
    %c0_i32_0 = arith.constant 0 : i32
    %c0_i32_1 = arith.constant 0 : i32
    %c0_i32_2 = arith.constant 0 : i32
    return %c0_i32, %c0_i32_0, %c0_i32_1 : i32, i32, i32
  }
  func.func @transform_2(%arg0: i32) -> (i32, i32) {
    %c0_i32 = arith.constant 0 : i32
    %c0_i32_0 = arith.constant 0 : i32
    %c0_i32_1 = arith.constant 0 : i32
    return %c0_i32, %c0_i32_0 : i32, i32
  }
  func.func @transform_3(%arg0: i32) -> (i32, i32) {
    %c0_i32 = arith.constant 0 : i32
    %c0_i32_0 = arith.constant 0 : i32
    %c0_i32_1 = arith.constant 0 : i32
    return %c0_i32, %c0_i32_0 : i32, i32
  }
  func.func @transform_4(%arg0: i32) -> (i32, i32, i32) {
    %c0_i32 = arith.constant 0 : i32
    %c0_i32_0 = arith.constant 0 : i32
    %c0_i32_1 = arith.constant 0 : i32
    return %arg0, %c0_i32, %c0_i32_0 : i32, i32, i32
  }
  func.func @transform_5(%arg0: i32) -> (i32, i32, i32) {
    %c0_i32 = arith.constant 0 : i32
    %c0_i32_0 = arith.constant 0 : i32
    %c0_i32_1 = arith.constant 0 : i32
    return %arg0, %c0_i32, %c0_i32_0 : i32, i32, i32
  }
  func.func @transform_6(%arg0: i32) -> (i32, i32, i32) {
    %c0_i32 = arith.constant 0 : i32
    %c0_i32_0 = arith.constant 0 : i32
    %c0_i32_1 = arith.constant 0 : i32
    return %arg0, %c0_i32, %c0_i32_0 : i32, i32, i32
  }
  func.func @transform_7(%arg0: i32) -> (i32, i32, i32) {
    %c0_i32 = arith.constant 0 : i32
    %c0_i32_0 = arith.constant 0 : i32
    %c0_i32_1 = arith.constant 0 : i32
    return %arg0, %c0_i32, %c0_i32_0 : i32, i32, i32
  }
  func.func @transform_8(%arg0: i32) -> (i32, i32, i32) {
    %c0_i32 = arith.constant 0 : i32
    %c0_i32_0 = arith.constant 0 : i32
    %c0_i32_1 = arith.constant 0 : i32
    return %arg0, %c0_i32, %c0_i32_0 : i32, i32, i32
  }
  func.func @transform_9(%arg0: i32) -> (i32, i32, i32) {
    %c0_i32 = arith.constant 0 : i32
    %c0_i32_0 = arith.constant 0 : i32
    %c0_i32_1 = arith.constant 0 : i32
    return %arg0, %c0_i32, %c0_i32_0 : i32, i32, i32
  }
  func.func @transform_10(%arg0: i32) -> (i32, i32, i32) {
    %c0_i32 = arith.constant 0 : i32
    %c0_i32_0 = arith.constant 0 : i32
    %c0_i32_1 = arith.constant 0 : i32
    return %arg0, %c0_i32, %c0_i32_0 : i32, i32, i32
  }
  func.func @transform_11(%arg0: i32) -> (i32, i32, i32) {
    %c0_i32 = arith.constant 0 : i32
    %c0_i32_0 = arith.constant 0 : i32
    %c0_i32_1 = arith.constant 0 : i32
    return %arg0, %c0_i32, %c0_i32_0 : i32, i32, i32
  }
  func.func @transform_12(%arg0: i32) -> (i32, i32, i32) {
    %c0_i32 = arith.constant 0 : i32
    %c0_i32_0 = arith.constant 0 : i32
    %c0_i32_1 = arith.constant 0 : i32
    return %arg0, %c0_i32, %c0_i32_0 : i32, i32, i32
  }
  func.func @transform_13(%arg0: i32) -> (i32, i32, i32) {
    %c0_i32 = arith.constant 0 : i32
    %c0_i32_0 = arith.constant 0 : i32
    %c0_i32_1 = arith.constant 0 : i32
    return %arg0, %c0_i32, %c0_i32_0 : i32, i32, i32
  }
  func.func @transform_14(%arg0: i32) -> (i32, i32) {
    %c0_i32 = arith.constant 0 : i32
    %c0_i32_0 = arith.constant 0 : i32
    %c0_i32_1 = arith.constant 0 : i32
    return %c0_i32, %c0_i32_0 : i32, i32
  }
}

module attributes {stable_mosaic.version = 11 : i64} {
  func.func @_mlm_head_kernel(%arg0: i32, %arg1: memref<8x128xf32, #tpu.memory_space<vmem>>, %arg2: memref<128x128xbf16, #tpu.memory_space<vmem>>, %arg3: memref<1x128xf32, #tpu.memory_space<vmem>>, %arg4: memref<1x128xf32, #tpu.memory_space<vmem>>, %arg5: memref<1x128xf32, #tpu.memory_space<vmem>>, %arg6: memref<128x128xbf16, #tpu.memory_space<vmem>>, %arg7: memref<1x128xf32, #tpu.memory_space<vmem>>, %arg8: memref<8x128xf32, #tpu.memory_space<vmem>>) attributes {dimension_semantics = [#tpu.dimension_semantics<arbitrary>], iteration_bounds = array<i64: 1>, scalar_prefetch = 0 : i64, scratch_operands = 0 : i64, tpu.core_type = #tpu.core_type<tc>, window_params = [{pipeline_mode = #tpu.pipeline_mode<synchronous>, transform_indices = @transform_0, window_bounds = array<i64: 8, 128>}, {pipeline_mode = #tpu.pipeline_mode<synchronous>, transform_indices = @transform_1, window_bounds = array<i64: 128, 128>}, {pipeline_mode = #tpu.pipeline_mode<synchronous>, transform_indices = @transform_2, window_bounds = array<i64: 1, 128>}, {pipeline_mode = #tpu.pipeline_mode<synchronous>, transform_indices = @transform_3, window_bounds = array<i64: 1, 128>}, {pipeline_mode = #tpu.pipeline_mode<synchronous>, transform_indices = @transform_4, window_bounds = array<i64: 1, 128>}, {pipeline_mode = #tpu.pipeline_mode<synchronous>, transform_indices = @transform_5, window_bounds = array<i64: 128, 128>}, {pipeline_mode = #tpu.pipeline_mode<synchronous>, transform_indices = @transform_6, window_bounds = array<i64: 1, 128>}, {pipeline_mode = #tpu.pipeline_mode<synchronous>, transform_indices = @transform_7, window_bounds = array<i64: 8, 128>}]} {
    %c0 = arith.constant 0 : index
    %c0_0 = arith.constant 0 : index
    %0 = vector.load %arg1[%c0, %c0_0] : memref<8x128xf32, #tpu.memory_space<vmem>>, vector<8x128xf32>
    %1 = arith.truncf %0 : vector<8x128xf32> to vector<8x128xbf16>
    %c0_1 = arith.constant 0 : index
    %c0_2 = arith.constant 0 : index
    %2 = vector.load %arg2[%c0_1, %c0_2] : memref<128x128xbf16, #tpu.memory_space<vmem>>, vector<128x128xbf16>
    %cst = arith.constant dense<0.000000e+00> : vector<8x128xf32>
    %3 = tpu.matmul %1, %2, %cst {dimension_numbers = #tpu.dot_dimension_numbers<[1], [0], [0], [1], [0, 0, 1, 1], [], []>} : vector<8x128xbf16>, vector<128x128xbf16>, vector<8x128xf32> -> vector<8x128xf32>
    %c0_3 = arith.constant 0 : index
    %c0_4 = arith.constant 0 : index
    %4 = vector.load %arg3[%c0_3, %c0_4] : memref<1x128xf32, #tpu.memory_space<vmem>>, vector<1x128xf32>
    %5 = vector.broadcast %4 : vector<1x128xf32> to vector<8x128xf32>
    %6 = arith.addf %3, %5 : vector<8x128xf32>
    %cst_5 = arith.constant 5.000000e-01 : f32
    %7 = vector.broadcast %cst_5 : f32 to vector<8x128xf32>
    %8 = arith.mulf %6, %7 : vector<8x128xf32>
    %cst_6 = arith.constant 1.41421354 : f32
    %9 = vector.broadcast %cst_6 : f32 to vector<8x128xf32>
    %10 = arith.divf %6, %9 : vector<8x128xf32>
    %11 = math.erf %10 : vector<8x128xf32>
    %cst_7 = arith.constant 1.000000e+00 : f32
    %12 = vector.broadcast %cst_7 : f32 to vector<8x128xf32>
    %13 = arith.addf %12, %11 : vector<8x128xf32>
    %14 = arith.mulf %8, %13 : vector<8x128xf32>
    %c0_8 = arith.constant 0 : index
    %c0_9 = arith.constant 0 : index
    %15 = vector.load %arg4[%c0_8, %c0_9] : memref<1x128xf32, #tpu.memory_space<vmem>>, vector<1x128xf32>
    %c0_10 = arith.constant 0 : index
    %c0_11 = arith.constant 0 : index
    %16 = vector.load %arg5[%c0_10, %c0_11] : memref<1x128xf32, #tpu.memory_space<vmem>>, vector<1x128xf32>
    %cst_12 = arith.constant dense<0.000000e+00> : vector<8xf32>
    %17 = vector.multi_reduction <add>, %14, %cst_12 [1] : vector<8x128xf32> to vector<8xf32>
    %18 = vector.shape_cast %17 : vector<8xf32> to vector<8x1xf32>
    %cst_13 = arith.constant 1.280000e+02 : f32
    %19 = vector.broadcast %cst_13 : f32 to vector<8x1xf32>
    %20 = arith.divf %18, %19 : vector<8x1xf32>
    %21 = vector.broadcast %20 : vector<8x1xf32> to vector<8x128xf32>
    %22 = arith.subf %14, %21 : vector<8x128xf32>
    %23 = arith.mulf %22, %22 : vector<8x128xf32>
    %cst_14 = arith.constant dense<0.000000e+00> : vector<8xf32>
    %24 = vector.multi_reduction <add>, %23, %cst_14 [1] : vector<8x128xf32> to vector<8xf32>
    %25 = vector.shape_cast %24 : vector<8xf32> to vector<8x1xf32>
    %cst_15 = arith.constant 1.280000e+02 : f32
    %26 = vector.broadcast %cst_15 : f32 to vector<8x1xf32>
    %27 = arith.divf %25, %26 : vector<8x1xf32>
    %28 = vector.broadcast %20 : vector<8x1xf32> to vector<8x128xf32>
    %29 = arith.subf %14, %28 : vector<8x128xf32>
    %cst_16 = arith.constant 9.99999974E-6 : f32
    %30 = vector.broadcast %cst_16 : f32 to vector<8x1xf32>
    %31 = arith.addf %27, %30 : vector<8x1xf32>
    %32 = math.rsqrt %31 : vector<8x1xf32>
    %33 = vector.broadcast %32 : vector<8x1xf32> to vector<8x128xf32>
    %34 = arith.mulf %29, %33 : vector<8x128xf32>
    %35 = vector.broadcast %15 : vector<1x128xf32> to vector<8x128xf32>
    %36 = arith.mulf %34, %35 : vector<8x128xf32>
    %37 = vector.broadcast %16 : vector<1x128xf32> to vector<8x128xf32>
    %38 = arith.addf %36, %37 : vector<8x128xf32>
    %39 = arith.truncf %38 : vector<8x128xf32> to vector<8x128xbf16>
    %c0_17 = arith.constant 0 : index
    %c0_18 = arith.constant 0 : index
    %40 = vector.load %arg6[%c0_17, %c0_18] : memref<128x128xbf16, #tpu.memory_space<vmem>>, vector<128x128xbf16>
    %cst_19 = arith.constant dense<0.000000e+00> : vector<8x128xf32>
    %41 = tpu.matmul %39, %40, %cst_19 {dimension_numbers = #tpu.dot_dimension_numbers<[1], [0], [0], [1], [0, 0, 1, 1], [], []>} : vector<8x128xbf16>, vector<128x128xbf16>, vector<8x128xf32> -> vector<8x128xf32>
    %c0_20 = arith.constant 0 : index
    %c0_21 = arith.constant 0 : index
    %42 = vector.load %arg7[%c0_20, %c0_21] : memref<1x128xf32, #tpu.memory_space<vmem>>, vector<1x128xf32>
    %43 = vector.broadcast %42 : vector<1x128xf32> to vector<8x128xf32>
    %44 = arith.addf %41, %43 : vector<8x128xf32>
    %c0_22 = arith.constant 0 : index
    %c0_23 = arith.constant 0 : index
    %45 = vector.load %arg8[%c0_22, %c0_23] : memref<8x128xf32, #tpu.memory_space<vmem>>, vector<8x128xf32>
    tpu.vector_store %arg8[%c0_22, %c0_23], %44 {strides = array<i32>} : memref<8x128xf32, #tpu.memory_space<vmem>>, vector<8x128xf32>,
    return
  }
  func.func @transform_0(%arg0: i32) -> (i32, i32) {
    %c0_i32 = arith.constant 0 : i32
    %c0_i32_0 = arith.constant 0 : i32
    %c0_i32_1 = arith.constant 0 : i32
    return %c0_i32, %c0_i32_0 : i32, i32
  }
  func.func @transform_1(%arg0: i32) -> (i32, i32) {
    %c0_i32 = arith.constant 0 : i32
    %c0_i32_0 = arith.constant 0 : i32
    %c0_i32_1 = arith.constant 0 : i32
    return %c0_i32, %c0_i32_0 : i32, i32
  }
  func.func @transform_2(%arg0: i32) -> (i32, i32) {
    %c0_i32 = arith.constant 0 : i32
    %c0_i32_0 = arith.constant 0 : i32
    %c0_i32_1 = arith.constant 0 : i32
    return %c0_i32, %c0_i32_0 : i32, i32
  }
  func.func @transform_3(%arg0: i32) -> (i32, i32) {
    %c0_i32 = arith.constant 0 : i32
    %c0_i32_0 = arith.constant 0 : i32
    %c0_i32_1 = arith.constant 0 : i32
    return %c0_i32, %c0_i32_0 : i32, i32
  }
  func.func @transform_4(%arg0: i32) -> (i32, i32) {
    %c0_i32 = arith.constant 0 : i32
    %c0_i32_0 = arith.constant 0 : i32
    %c0_i32_1 = arith.constant 0 : i32
    return %c0_i32, %c0_i32_0 : i32, i32
  }
  func.func @transform_5(%arg0: i32) -> (i32, i32) {
    %c0_i32 = arith.constant 0 : i32
    %c0_i32_0 = arith.constant 0 : i32
    %c0_i32_1 = arith.constant 0 : i32
    return %c0_i32, %c0_i32_0 : i32, i32
  }
  func.func @transform_6(%arg0: i32) -> (i32, i32) {
    %c0_i32 = arith.constant 0 : i32
    %c0_i32_0 = arith.constant 0 : i32
    %c0_i32_1 = arith.constant 0 : i32
    return %c0_i32, %c0_i32_0 : i32, i32
  }
  func.func @transform_7(%arg0: i32) -> (i32, i32) {
    %c0_i32 = arith.constant 0 : i32
    %c0_i32_0 = arith.constant 0 : i32
    %c0_i32_1 = arith.constant 0 : i32
    return %c0_i32, %c0_i32_0 : i32, i32
  }
}

</mosaic_0001>

<llo_original>
// kernel: bert_forward.3
$region0: #{bert_forward.3}
  #allocation0 [shape = 'u32[]', space=smem, size = 0x4, offset = 0x4, fixed_abs, tag = 'smem constant byte address 0x4 - core index']
  #allocation1 [shape = 'u32[144,128]{1,0:T(1,128)}', space=vmem, size = 0x12000, scoped, tag = 'internal scratch']
  %s0 = inlined_call_operand.vmem [shape: f32[8,128], index: 0, kind: input, shape index: {}]
  %s1 = inlined_call_operand.vmem [shape: bf16[128,128], index: 1, kind: input, shape index: {}]
  %s2 = inlined_call_operand.vmem [shape: f32[1,128], index: 2, kind: input, shape index: {}]
  %s3 = inlined_call_operand.vmem [shape: f32[1,128], index: 3, kind: input, shape index: {}]
  %s4 = inlined_call_operand.vmem [shape: f32[1,128], index: 4, kind: input, shape index: {}]
  %s5 = inlined_call_operand.vmem [shape: bf16[128,128], index: 5, kind: input, shape index: {}]
  %s6 = inlined_call_operand.vmem [shape: f32[1,128], index: 6, kind: input, shape index: {}]
  %s7 = inlined_call_operand.hbm [shape: f32[8,128], index: 7, kind: output, shape index: {}]
  %s8 = sld [smem:[#allocation0]]
  $region38: #{bert_forward.3} parent=0
    _
  %s10 = ssub.s32 1, %s8
  %s11 = scalar_select 0, %s10, %s8
  $region1: #{bert_forward.3} parent=0
    #allocation2 [shape = 'u8[4096]{0}', space=vmem, size = 0x1000, scoped, tag = 'output window, operand 0, single buffered']
    #allocation3 [shape = 's32[1]{0}', space=sflag, size = 0x4, scoped, tag = 'scoped memory for bert_forward.3']
    %12 = vsyncpa [#allocation3], 0
    // Predicated region
    $region2: #{bert_forward.3} parent=1 // pred_check
      _
    $region3: #{bert_forward.3} parent=1 // pred_check_branch
      %14 = sbr.rel (0) target = $region5
    $region4: #{bert_forward.3} parent=1 // pred_region
      _
    $region5: #{bert_forward.3} parent=1 // pred_fallthru
      _
    // Predicated region
    $region6: #{bert_forward.3} parent=1 // pred_check
      _
    $region7: #{bert_forward.3} parent=1 // pred_check_branch
      %16 = sbr.rel (0) target = $region9
    $region8: #{bert_forward.3} parent=1 // pred_region
      _
    $region9: #{bert_forward.3} parent=1 // pred_fallthru
      _
    // Predicated region
    $region10: #{bert_forward.3} parent=1 // pred_check
      _
    $region11: #{bert_forward.3} parent=1 // pred_check_branch
      %18 = sbr.rel (0) target = $region13
    $region12: #{bert_forward.3} parent=1 // pred_region
      _
    $region13: #{bert_forward.3} parent=1 // pred_fallthru
      _
    // Predicated region
    $region14: #{bert_forward.3} parent=1 // pred_check
      _
    $region15: #{bert_forward.3} parent=1 // pred_check_branch
      %20 = sbr.rel (0) target = $region17
    $region16: #{bert_forward.3} parent=1 // pred_region
      _
    $region17: #{bert_forward.3} parent=1 // pred_fallthru
      _
    // Predicated region
    $region18: #{bert_forward.3} parent=1 // pred_check
      _
    $region19: #{bert_forward.3} parent=1 // pred_check_branch
      %22 = sbr.rel (0) target = $region21
    $region20: #{bert_forward.3} parent=1 // pred_region
      _
    $region21: #{bert_forward.3} parent=1 // pred_fallthru
      _
    // Predicated region
    $region22: #{bert_forward.3} parent=1 // pred_check
      _
    $region23: #{bert_forward.3} parent=1 // pred_check_branch
      %24 = sbr.rel (0) target = $region25
    $region24: #{bert_forward.3} parent=1 // pred_region
      _
    $region25: #{bert_forward.3} parent=1 // pred_fallthru
      _
    // Predicated region
    $region26: #{bert_forward.3} parent=1 // pred_check
      _
    $region27: #{bert_forward.3} parent=1 // pred_check_branch
      %26 = sbr.rel (0) target = $region29
    $region28: #{bert_forward.3} parent=1 // pred_region
      _
    $region29: #{bert_forward.3} parent=1 // pred_fallthru
      _
    %v28 = vld [vmem:[%s0] sm:$0xff]
    %v29 = vpack.c.bf16 %v28, %v28
    %v30 = vld [vmem:[%s1] sm:$0xf]
    %v31 = vld [vmem:[%s1 + $0x4] sm:$0xf]
    %v32 = vld [vmem:[%s1 + $0x8] sm:$0xf]
    %v33 = vld [vmem:[%s1 + $0xc] sm:$0xf]
    %v34 = vld [vmem:[%s1 + $0x10] sm:$0xf]
    %v35 = vld [vmem:[%s1 + $0x14] sm:$0xf]
    %v36 = vld [vmem:[%s1 + $0x18] sm:$0xf]
    %v37 = vld [vmem:[%s1 + $0x1c] sm:$0xf]
    %v38 = vld [vmem:[%s1 + $0x20] sm:$0xf]
    %v39 = vld [vmem:[%s1 + $0x24] sm:$0xf]
    %v40 = vld [vmem:[%s1 + $0x28] sm:$0xf]
    %v41 = vld [vmem:[%s1 + $0x2c] sm:$0xf]
    %v42 = vld [vmem:[%s1 + $0x30] sm:$0xf]
    %v43 = vld [vmem:[%s1 + $0x34] sm:$0xf]
    %v44 = vld [vmem:[%s1 + $0x38] sm:$0xf]
    %v45 = vld [vmem:[%s1 + $0x3c] sm:$0xf]
    %v46 = vld [vmem:[%s2] sm:$0x1]
    %v48 = vlaneseq
    %v49 = vshrl.u32 %v48, 7
    %v50 = vsub.s32 0, %v49
    %v51 = vrot.slane %v46, %v50
    %v69 = vunpack.c.l.b16 %v30
    %v70 = vunpack.c.l.b16 %v31
    %v71 = vunpack.c.l.b16 %v32
    %v72 = vunpack.c.l.b16 %v33
    %v73 = vunpack.c.l.b16 %v34
    %v74 = vunpack.c.l.b16 %v35
    %v75 = vunpack.c.l.b16 %v36
    %v76 = vunpack.c.l.b16 %v37
    %v77 = vunpack.c.l.b16 %v38
    %v78 = vunpack.c.l.b16 %v39
    %v79 = vunpack.c.l.b16 %v40
    %v80 = vunpack.c.l.b16 %v41
    %v81 = vunpack.c.l.b16 %v42
    %v82 = vunpack.c.l.b16 %v43
    %v83 = vunpack.c.l.b16 %v44
    %v84 = vunpack.c.l.b16 %v45
    %v85 = vpack.c.b16 %v70, %v69
    %v86 = vpack.c.b16 %v72, %v71
    %v87 = vpack.c.b16 %v74, %v73
    %v88 = vpack.c.b16 %v76, %v75
    %v89 = vpack.c.b16 %v78, %v77
    %v90 = vpack.c.b16 %v80, %v79
    %v91 = vpack.c.b16 %v82, %v81
    %v92 = vpack.c.b16 %v84, %v83
    %101 = vmatprep.subr.bf16.mxu0 0
    %102 = vmatpush1.bf16.msra.mxu0 %v85
    %103 = vmatprep.subr.bf16.mxu0 0
    %104 = vmatpush1.bf16.msra.mxu0 %v86
    %105 = vmatprep.subr.bf16.mxu0 0
    %106 = vmatpush1.bf16.msra.mxu0 %v87
    %107 = vmatprep.subr.bf16.mxu0 0
    %108 = vmatpush1.bf16.msra.mxu0 %v88
    %109 = vmatprep.subr.bf16.mxu0 0
    %110 = vmatpush1.bf16.msra.mxu0 %v89
    %111 = vmatprep.subr.bf16.mxu0 0
    %112 = vmatpush1.bf16.msra.mxu0 %v90
    %113 = vmatprep.subr.bf16.mxu0 0
    %114 = vmatpush1.bf16.msra.mxu0 %v91
    %115 = vmatprep.subr.bf16.mxu0 0
    %116 = vmatpush1.bf16.msra.mxu0 %v92
    %117 = vmatprep.subr.bf16.mxu0 0
    %118 = vmatpush1.bf16.msra.mxu0 0
    %119 = vmatprep.subr.bf16.mxu0 0
    %120 = vmatpush1.bf16.msra.mxu0 0
    %121 = vmatprep.subr.bf16.mxu0 0
    %122 = vmatpush1.bf16.msra.mxu0 0
    %123 = vmatprep.subr.bf16.mxu0 0
    %124 = vmatpush1.bf16.msra.mxu0 0
    %125 = vmatprep.subr.bf16.mxu0 0
    %126 = vmatpush1.bf16.msra.mxu0 0
    %127 = vmatprep.subr.bf16.mxu0 0
    %128 = vmatpush1.bf16.msra.mxu0 0
    %129 = vmatprep.subr.bf16.mxu0 0
    %130 = vmatpush1.bf16.msra.mxu0 0
    %131 = vmatprep.subr.bf16.mxu0 0
    %132 = vmatpush1.bf16.msra.mxu0 0
    %133 = vmatprep.mubr.bf16.mxu0 0
    %134 = vmatmul.mubr.bf16.gmra.mrb[0].mxu0 %v29
    %v135 = vpop.f32.mrb[0].mxu0
    %v136 = vadd.f32 %v51, %v135
    %v137 = vpop.f32.mrb[0].mxu0
    %v138 = vpop.f32.mrb[0].mxu0
    %v139 = vpop.f32.mrb[0].mxu0
    %140 = vdwg.mxu0
    %v141 = vmul.f32 %v136, 0.5
    %v142 = vrcp.pop 1.4142135
    %v143 = vmul.f32 %v136, %v142
    %v144 = verf.f32.pop %v143
    %v145 = vadd.f32 %v144, 1.0
    %v146 = vmul.f32 %v141, %v145
    %v147 = vld [vmem:[%s3] sm:$0x1]
    %v148 = vld [vmem:[%s4] sm:$0x1]
    %149 = vadd.xlane.f32.xlu0 %v146
    %v150 = vpop.xlane.xlu0 %149
    %v151 = vrcp.pop 128.0
    %v152 = vmul.f32 %v150, %v151
    %v153 = vsub.f32 %v146, %v152
    %v154 = vmul.f32 %v153, %v153
    %155 = vadd.xlane.f32.xlu0 %v154
    %v156 = vpop.xlane.xlu0 %155
    %v157 = vmul.f32 %v156, %v151
    %v158 = vadd.f32 %v157, 1e-05
    %v159 = vrsqrt.pop %v158
    %v160 = vmul.f32 %v153, %v159
    %v162 = vlaneseq
    %v163 = vshrl.u32 %v162, 7
    %v164 = vsub.s32 0, %v163
    %v165 = vrot.slane %v147, %v164
    %v167 = vmul.f32 %v160, %v165
    %v169 = vlaneseq
    %v170 = vshrl.u32 %v169, 7
    %v171 = vsub.s32 0, %v170
    %v172 = vrot.slane %v148, %v171
    %v174 = vadd.f32 %v167, %v172
    %v175 = vpack.c.bf16 %v174, %v174
    %v176 = vld [vmem:[%s5] sm:$0xf]
    %v177 = vld [vmem:[%s5 + $0x4] sm:$0xf]
    %v178 = vld [vmem:[%s5 + $0x8] sm:$0xf]
    %v179 = vld [vmem:[%s5 + $0xc] sm:$0xf]
    %v180 = vld [vmem:[%s5 + $0x10] sm:$0xf]
    %v181 = vld [vmem:[%s5 + $0x14] sm:$0xf]
    %v182 = vld [vmem:[%s5 + $0x18] sm:$0xf]
    %v183 = vld [vmem:[%s5 + $0x1c] sm:$0xf]
    %v184 = vld [vmem:[%s5 + $0x20] sm:$0xf]
    %v185 = vld [vmem:[%s5 + $0x24] sm:$0xf]
    %v186 = vld [vmem:[%s5 + $0x28] sm:$0xf]
    %v187 = vld [vmem:[%s5 + $0x2c] sm:$0xf]
    %v188 = vld [vmem:[%s5 + $0x30] sm:$0xf]
    %v189 = vld [vmem:[%s5 + $0x34] sm:$0xf]
    %v190 = vld [vmem:[%s5 + $0x38] sm:$0xf]
    %v191 = vld [vmem:[%s5 + $0x3c] sm:$0xf]
    %v192 = vld [vmem:[%s6] sm:$0x1]
    %v194 = vlaneseq
    %v195 = vshrl.u32 %v194, 7
    %v196 = vsub.s32 0, %v195
    %v197 = vrot.slane %v192, %v196
    %v215 = vunpack.c.l.b16 %v176
    %v216 = vunpack.c.l.b16 %v177
    %v217 = vunpack.c.l.b16 %v178
    %v218 = vunpack.c.l.b16 %v179
    %v219 = vunpack.c.l.b16 %v180
    %v220 = vunpack.c.l.b16 %v181
    %v221 = vunpack.c.l.b16 %v182
    %v222 = vunpack.c.l.b16 %v183
    %v223 = vunpack.c.l.b16 %v184
    %v224 = vunpack.c.l.b16 %v185
    %v225 = vunpack.c.l.b16 %v186
    %v226 = vunpack.c.l.b16 %v187
    %v227 = vunpack.c.l.b16 %v188
    %v228 = vunpack.c.l.b16 %v189
    %v229 = vunpack.c.l.b16 %v190
    %v230 = vunpack.c.l.b16 %v191
    %v231 = vpack.c.b16 %v216, %v215
    %v232 = vpack.c.b16 %v218, %v217
    %v233 = vpack.c.b16 %v220, %v219
    %v234 = vpack.c.b16 %v222, %v221
    %v235 = vpack.c.b16 %v224, %v223
    %v236 = vpack.c.b16 %v226, %v225
    %v237 = vpack.c.b16 %v228, %v227
    %v238 = vpack.c.b16 %v230, %v229
    %247 = vmatprep.subr.bf16.mxu0 0
    %248 = vmatpush1.bf16.msra.mxu0 %v231
    %249 = vmatprep.subr.bf16.mxu0 0
    %250 = vmatpush1.bf16.msra.mxu0 %v232
    %251 = vmatprep.subr.bf16.mxu0 0
    %252 = vmatpush1.bf16.msra.mxu0 %v233
    %253 = vmatprep.subr.bf16.mxu0 0
    %254 = vmatpush1.bf16.msra.mxu0 %v234
    %255 = vmatprep.subr.bf16.mxu0 0
    %256 = vmatpush1.bf16.msra.mxu0 %v235
    %257 = vmatprep.subr.bf16.mxu0 0
    %258 = vmatpush1.bf16.msra.mxu0 %v236
    %259 = vmatprep.subr.bf16.mxu0 0
    %260 = vmatpush1.bf16.msra.mxu0 %v237
    %261 = vmatprep.subr.bf16.mxu0 0
    %262 = vmatpush1.bf16.msra.mxu0 %v238
    %263 = vmatprep.subr.bf16.mxu0 0
    %264 = vmatpush1.bf16.msra.mxu0 0
    %265 = vmatprep.subr.bf16.mxu0 0
    %266 = vmatpush1.bf16.msra.mxu0 0
    %267 = vmatprep.subr.bf16.mxu0 0
    %268 = vmatpush1.bf16.msra.mxu0 0
    %269 = vmatprep.subr.bf16.mxu0 0
    %270 = vmatpush1.bf16.msra.mxu0 0
    %271 = vmatprep.subr.bf16.mxu0 0
    %272 = vmatpush1.bf16.msra.mxu0 0
    %273 = vmatprep.subr.bf16.mxu0 0
    %274 = vmatpush1.bf16.msra.mxu0 0
    %275 = vmatprep.subr.bf16.mxu0 0
    %276 = vmatpush1.bf16.msra.mxu0 0
    %277 = vmatprep.subr.bf16.mxu0 0
    %278 = vmatpush1.bf16.msra.mxu0 0
    %279 = vmatprep.mubr.bf16.mxu0 0
    %280 = vmatmul.mubr.bf16.gmra.mrb[0].mxu0 %v175
    %v281 = vpop.f32.mrb[0].mxu0
    %v282 = vadd.f32 %v197, %v281
    %v283 = vpop.f32.mrb[0].mxu0
    %v284 = vpop.f32.mrb[0].mxu0
    %v285 = vpop.f32.mrb[0].mxu0
    %286 = vdwg.mxu0
    %287 = vst [vmem:[#allocation2] sm:$0xff] %v282
    // Predicated region
    $region30: #{bert_forward.3} parent=1 // pred_check
      _
    $region31: #{bert_forward.3} parent=1 // pred_check_branch
      %289 = sbr.rel (0) target = $region33
    $region32: #{bert_forward.3} parent=1 // pred_region
      %s291 = ssub.s32 128, 128
      %292 = vsyncadd [#allocation3], %s291
      %s294 = sshll.u32 [#allocation2], 4
      %s295 = int_to_ptr.vmem [resolvable:$true] %s294
      %297 = dma.vmem_to_hbm [thread:$0]  %s295, 128, %s7, [#allocation3]
    $region33: #{bert_forward.3} parent=1 // pred_fallthru
      _
    // Predicated region
    $region34: #{bert_forward.3} parent=1 // pred_check
      _
    $region35: #{bert_forward.3} parent=1 // pred_check_branch
      %299 = sbr.rel (0) target = $region37
    $region36: #{bert_forward.3} parent=1 // pred_region
      %300 = dma.done [#allocation3], 128
    $region37: #{bert_forward.3} parent=1 // pred_fallthru
      _
    %301 = vsyncpa [#allocation3], 1

// kernel: bert_forward.2
$region0: #{bert_forward.2}
  #allocation0 [shape = 'u32[]', space=smem, size = 0x4, offset = 0x4, fixed_abs, tag = 'smem constant byte address 0x4 - core index']
  #allocation1 [shape = 'u32[144,128]{1,0:T(1,128)}', space=vmem, size = 0x12000, scoped, tag = 'internal scratch']
  #allocation2 [shape = 'f32[32,128]{1,0:T(8,128)}', space=vmem, size = 0x4000, scoped, tag = 'scratch operand']
  %s0 = inlined_call_operand.vmem [shape: f32[32,128], index: 0, kind: input, shape index: {}]
  %s1 = inlined_call_operand.vmem [shape: f32[2,1,16], index: 1, kind: input, shape index: {}]
  %s2 = inlined_call_operand.vmem [shape: f32[1,128], index: 2, kind: input, shape index: {}]
  %s3 = inlined_call_operand.vmem [shape: f32[1,128], index: 3, kind: input, shape index: {}]
  %s4 = inlined_call_operand.hbm [shape: bf16[2,128,384], index: 4, kind: input, shape index: {}]
  %s5 = inlined_call_operand.vmem [shape: f32[2,1,384], index: 5, kind: input, shape index: {}]
  %s6 = inlined_call_operand.vmem [shape: bf16[2,128,128], index: 6, kind: input, shape index: {}]
  %s7 = inlined_call_operand.vmem [shape: f32[2,1,128], index: 7, kind: input, shape index: {}]
  %s8 = inlined_call_operand.vmem [shape: f32[2,1,128], index: 8, kind: input, shape index: {}]
  %s9 = inlined_call_operand.vmem [shape: f32[2,1,128], index: 9, kind: input, shape index: {}]
  %s10 = inlined_call_operand.vmem [shape: bf16[2,128,512], index: 10, kind: input, shape index: {}]
  %s11 = inlined_call_operand.vmem [shape: f32[2,1,512], index: 11, kind: input, shape index: {}]
  %s12 = inlined_call_operand.hbm [shape: bf16[2,512,128], index: 12, kind: input, shape index: {}]
  %s13 = inlined_call_operand.vmem [shape: f32[2,1,128], index: 13, kind: input, shape index: {}]
  %s14 = inlined_call_operand.vmem [shape: f32[32,128], index: 14, kind: output, shape index: {}]
  %s15 = sld [smem:[#allocation0]]
  $region101: #{bert_forward.2} parent=0
    _
  %s17 = ssub.s32 1, %s15
  %s18 = scalar_select 0, %s17, %s15
  $region1: #{bert_forward.2} parent=0
    #allocation3 [shape = 'u8[196608]{0}', space=vmem, size = 0x30000, scoped, tag = 'input window, operand 4']
    #allocation4 [shape = 's32[2]{0}', space=sflag, size = 0x8, scoped, tag = 'scoped memory for bert_forward.2']
    #allocation5 [shape = 'u8[262144]{0}', space=vmem, size = 0x40000, scoped, tag = 'input window, operand 12']
    #allocation6 [shape = 's32[2]{0}', space=sflag, size = 0x8, scoped, tag = 'scoped memory for bert_forward.2']
    %19 = vsyncpa [#allocation4], 0
    %s20 = scalar_lea.sflag [#allocation4], 1
    %21 = vsyncpa %s20, 0
    %22 = vsyncpa [#allocation6], 0
    %s23 = scalar_lea.sflag [#allocation6], 1
    %24 = vsyncpa %s23, 0
    loop: start=0, step=1, limit=4
    $region2: #{bert_forward.2} parent=1 // loop_pre_header
      _
    $region3: #{bert_forward.2} parent=1 // loop_header
      %s26 = sphi 0, %s30
      %p27 = scmp.ge.s32.totalorder %s26, 4
      %s34 = sphi 0, %s34
      %s36 = sphi 0, %s34
      %s37 = sphi 0, %s36
      %s51 = sphi 0, %s37
      %s55 = sphi 0, %s55
      %s57 = sphi 0, %s55
      %s58 = sphi 0, %s57
      %s72 = sphi 0, %s58
      %s76 = sphi 0, %s76
      %s78 = sphi 0, %s76
      %s79 = sphi 0, %s78
      %s93 = sphi 0, %s79
      %s97 = sphi 0, %s97
      %s99 = sphi 0, %s97
      %s100 = sphi 0, %s99
      %s114 = sphi 0, %s100
      %s120 = sphi 0, %s122
      %s123 = sphi 0, %s120
      %s124 = sphi 0, %s123
      %s140 = sphi 0, %s124
      %s146 = sphi 0, %s148
      %s149 = sphi 0, %s146
      %s150 = sphi 0, %s149
      %s166 = sphi 0, %s150
      %s172 = sphi 0, %s174
      %s175 = sphi 0, %s172
      %s176 = sphi 0, %s175
      %s192 = sphi 0, %s176
      %s198 = sphi 0, %s200
      %s201 = sphi 0, %s198
      %s202 = sphi 0, %s201
      %s218 = sphi 0, %s202
      %s224 = sphi 0, %s226
      %s227 = sphi 0, %s224
      %s228 = sphi 0, %s227
      %s244 = sphi 0, %s228
      %s250 = sphi 0, %s252
      %s253 = sphi 0, %s250
      %s254 = sphi 0, %s253
      %s270 = sphi 0, %s254
      %s276 = sphi 0, %s278
      %s279 = sphi 0, %s276
      %s280 = sphi 0, %s279
      %s296 = sphi 0, %s280
      %s302 = sphi 0, %s304
      %s305 = sphi 0, %s302
      %s306 = sphi 0, %s305
      %s322 = sphi 0, %s306
      %s328 = sphi 0, %s330
      %s331 = sphi 0, %s328
      %s332 = sphi 0, %s331
      %s348 = sphi 0, %s332
      %s354 = sphi 0, %s356
      %s357 = sphi 0, %s354
      %s358 = sphi 0, %s357
      %s374 = sphi 0, %s358
      %s378 = sphi 0, %s378
      %s380 = sphi 0, %s378
      %s381 = sphi 0, %s380
      %s395 = sphi 0, %s381
    $region4: #{bert_forward.2} parent=1 // loop_header_branch
      %29 = sbr.rel (%p27) target = $region8
    $region5: #{bert_forward.2} parent=1 // loop_body
      %s31 = ssub.s32 %s26, 1
      %s32 = ssub.s32 %s26, 2
      %s33 = sadd.s32 %s26, 1
      %s35 = sadd.s32 %s34, 1
      %p38 = scmp.eq.s32.totalorder %s26, 1
      %p39 = scmp.ne.s32.totalorder %s34, %s36
      %p40 = scmp.eq.s32.totalorder %s26, 0
      %p41 = por %p39, %p40
      %p42 = scmp.ne.s32.totalorder %s34, %s36
      %p43 = scmp.eq.s32.totalorder %s31, 1
      %p44 = por %p42, %p43
      %p45 = scmp.ne.s32.totalorder %s36, %s37
      %p46 = scmp.eq.s32.totalorder %s31, 0
      %p47 = por %p45, %p46
      %p48 = scmp.ne.s32.totalorder %s36, %s37
      %p49 = scmp.eq.s32.totalorder %s32, 1
      %p50 = por %p48, %p49
      %p52 = scmp.ne.s32.totalorder %s37, %s51
      %p53 = scmp.eq.s32.totalorder %s32, 0
      %p54 = por %p52, %p53
      %s56 = sadd.s32 %s55, 1
      %p59 = scmp.eq.s32.totalorder %s26, 1
      %p60 = scmp.ne.s32.totalorder %s55, %s57
      %p61 = scmp.eq.s32.totalorder %s26, 0
      %p62 = por %p60, %p61
      %p63 = scmp.ne.s32.totalorder %s55, %s57
      %p64 = scmp.eq.s32.totalorder %s31, 1
      %p65 = por %p63, %p64
      %p66 = scmp.ne.s32.totalorder %s57, %s58
      %p67 = scmp.eq.s32.totalorder %s31, 0
      %p68 = por %p66, %p67
      %p69 = scmp.ne.s32.totalorder %s57, %s58
      %p70 = scmp.eq.s32.totalorder %s32, 1
      %p71 = por %p69, %p70
      %p73 = scmp.ne.s32.totalorder %s58, %s72
      %p74 = scmp.eq.s32.totalorder %s32, 0
      %p75 = por %p73, %p74
      %s77 = sadd.s32 %s76, 1
      %p80 = scmp.eq.s32.totalorder %s26, 1
      %p81 = scmp.ne.s32.totalorder %s76, %s78
      %p82 = scmp.eq.s32.totalorder %s26, 0
      %p83 = por %p81, %p82
      %p84 = scmp.ne.s32.totalorder %s76, %s78
      %p85 = scmp.eq.s32.totalorder %s31, 1
      %p86 = por %p84, %p85
      %p87 = scmp.ne.s32.totalorder %s78, %s79
      %p88 = scmp.eq.s32.totalorder %s31, 0
      %p89 = por %p87, %p88
      %p90 = scmp.ne.s32.totalorder %s78, %s79
      %p91 = scmp.eq.s32.totalorder %s32, 1
      %p92 = por %p90, %p91
      %p94 = scmp.ne.s32.totalorder %s79, %s93
      %p95 = scmp.eq.s32.totalorder %s32, 0
      %p96 = por %p94, %p95
      %s98 = sadd.s32 %s97, 1
      %p101 = scmp.eq.s32.totalorder %s26, 1
      %p102 = scmp.ne.s32.totalorder %s97, %s99
      %p103 = scmp.eq.s32.totalorder %s26, 0
      %p104 = por %p102, %p103
      %p105 = scmp.ne.s32.totalorder %s97, %s99
      %p106 = scmp.eq.s32.totalorder %s31, 1
      %p107 = por %p105, %p106
      %p108 = scmp.ne.s32.totalorder %s99, %s100
      %p109 = scmp.eq.s32.totalorder %s31, 0
      %p110 = por %p108, %p109
      %p111 = scmp.ne.s32.totalorder %s99, %s100
      %p112 = scmp.eq.s32.totalorder %s32, 1
      %p113 = por %p111, %p112
      %p115 = scmp.ne.s32.totalorder %s100, %s114
      %p116 = scmp.eq.s32.totalorder %s32, 0
      %p117 = por %p115, %p116
      %s118 = ssub.s32 %s26, %s33
      %p119 = scmp.eq.s32.totalorder %s118, 0
      %s121 = sadd.s32 %s120, 1
      %s122 = scalar_select %p119, %s120, %s121
      %p125 = pneg %p119
      %p126 = scmp.eq.s32.totalorder %s26, 1
      %p127 = por %p125, %p126
      %p128 = scmp.ne.s32.totalorder %s120, %s123
      %p129 = scmp.eq.s32.totalorder %s26, 0
      %p130 = por %p128, %p129
      %p131 = scmp.ne.s32.totalorder %s120, %s123
      %p132 = scmp.eq.s32.totalorder %s31, 1
      %p133 = por %p131, %p132
      %p134 = scmp.ne.s32.totalorder %s123, %s124
      %p135 = scmp.eq.s32.totalorder %s31, 0
      %p136 = por %p134, %p135
      %p137 = scmp.ne.s32.totalorder %s123, %s124
      %p138 = scmp.eq.s32.totalorder %s32, 1
      %p139 = por %p137, %p138
      %p141 = scmp.ne.s32.totalorder %s124, %s140
      %p142 = scmp.eq.s32.totalorder %s32, 0
      %p143 = por %p141, %p142
      %s144 = ssub.s32 %s26, %s33
      %p145 = scmp.eq.s32.totalorder %s144, 0
      %s147 = sadd.s32 %s146, 1
      %s148 = scalar_select %p145, %s146, %s147
      %p151 = pneg %p145
      %p152 = scmp.eq.s32.totalorder %s26, 1
      %p153 = por %p151, %p152
      %p154 = scmp.ne.s32.totalorder %s146, %s149
      %p155 = scmp.eq.s32.totalorder %s26, 0
      %p156 = por %p154, %p155
      %p157 = scmp.ne.s32.totalorder %s146, %s149
      %p158 = scmp.eq.s32.totalorder %s31, 1
      %p159 = por %p157, %p158
      %p160 = scmp.ne.s32.totalorder %s149, %s150
      %p161 = scmp.eq.s32.totalorder %s31, 0
      %p162 = por %p160, %p161
      %p163 = scmp.ne.s32.totalorder %s149, %s150
      %p164 = scmp.eq.s32.totalorder %s32, 1
      %p165 = por %p163, %p164
      %p167 = scmp.ne.s32.totalorder %s150, %s166
      %p168 = scmp.eq.s32.totalorder %s32, 0
      %p169 = por %p167, %p168
      %s170 = ssub.s32 %s26, %s33
      %p171 = scmp.eq.s32.totalorder %s170, 0
      %s173 = sadd.s32 %s172, 1
      %s174 = scalar_select %p171, %s172, %s173
      %p177 = pneg %p171
      %p178 = scmp.eq.s32.totalorder %s26, 1
      %p179 = por %p177, %p178
      %p180 = scmp.ne.s32.totalorder %s172, %s175
      %p181 = scmp.eq.s32.totalorder %s26, 0
      %p182 = por %p180, %p181
      %p183 = scmp.ne.s32.totalorder %s172, %s175
      %p184 = scmp.eq.s32.totalorder %s31, 1
      %p185 = por %p183, %p184
      %p186 = scmp.ne.s32.totalorder %s175, %s176
      %p187 = scmp.eq.s32.totalorder %s31, 0
      %p188 = por %p186, %p187
      %p189 = scmp.ne.s32.totalorder %s175, %s176
      %p190 = scmp.eq.s32.totalorder %s32, 1
      %p191 = por %p189, %p190
      %p193 = scmp.ne.s32.totalorder %s176, %s192
      %p194 = scmp.eq.s32.totalorder %s32, 0
      %p195 = por %p193, %p194
      %s196 = ssub.s32 %s26, %s33
      %p197 = scmp.eq.s32.totalorder %s196, 0
      %s199 = sadd.s32 %s198, 1
      %s200 = scalar_select %p197, %s198, %s199
      %p203 = pneg %p197
      %p204 = scmp.eq.s32.totalorder %s26, 1
      %p205 = por %p203, %p204
      %p206 = scmp.ne.s32.totalorder %s198, %s201
      %p207 = scmp.eq.s32.totalorder %s26, 0
      %p208 = por %p206, %p207
      %p209 = scmp.ne.s32.totalorder %s198, %s201
      %p210 = scmp.eq.s32.totalorder %s31, 1
      %p211 = por %p209, %p210
      %p212 = scmp.ne.s32.totalorder %s201, %s202
      %p213 = scmp.eq.s32.totalorder %s31, 0
      %p214 = por %p212, %p213
      %p215 = scmp.ne.s32.totalorder %s201, %s202
      %p216 = scmp.eq.s32.totalorder %s32, 1
      %p217 = por %p215, %p216
      %p219 = scmp.ne.s32.totalorder %s202, %s218
      %p220 = scmp.eq.s32.totalorder %s32, 0
      %p221 = por %p219, %p220
      %s222 = ssub.s32 %s26, %s33
      %p223 = scmp.eq.s32.totalorder %s222, 0
      %s225 = sadd.s32 %s224, 1
      %s226 = scalar_select %p223, %s224, %s225
      %p229 = pneg %p223
      %p230 = scmp.eq.s32.totalorder %s26, 1
      %p231 = por %p229, %p230
      %p232 = scmp.ne.s32.totalorder %s224, %s227
      %p233 = scmp.eq.s32.totalorder %s26, 0
      %p234 = por %p232, %p233
      %p235 = scmp.ne.s32.totalorder %s224, %s227
      %p236 = scmp.eq.s32.totalorder %s31, 1
      %p237 = por %p235, %p236
      %p238 = scmp.ne.s32.totalorder %s227, %s228
      %p239 = scmp.eq.s32.totalorder %s31, 0
      %p240 = por %p238, %p239
      %p241 = scmp.ne.s32.totalorder %s227, %s228
      %p242 = scmp.eq.s32.totalorder %s32, 1
      %p243 = por %p241, %p242
      %p245 = scmp.ne.s32.totalorder %s228, %s244
      %p246 = scmp.eq.s32.totalorder %s32, 0
      %p247 = por %p245, %p246
      %s248 = ssub.s32 %s26, %s33
      %p249 = scmp.eq.s32.totalorder %s248, 0
      %s251 = sadd.s32 %s250, 1
      %s252 = scalar_select %p249, %s250, %s251
      %p255 = pneg %p249
      %p256 = scmp.eq.s32.totalorder %s26, 1
      %p257 = por %p255, %p256
      %p258 = scmp.ne.s32.totalorder %s250, %s253
      %p259 = scmp.eq.s32.totalorder %s26, 0
      %p260 = por %p258, %p259
      %p261 = scmp.ne.s32.totalorder %s250, %s253
      %p262 = scmp.eq.s32.totalorder %s31, 1
      %p263 = por %p261, %p262
      %p264 = scmp.ne.s32.totalorder %s253, %s254
      %p265 = scmp.eq.s32.totalorder %s31, 0
      %p266 = por %p264, %p265
      %p267 = scmp.ne.s32.totalorder %s253, %s254
      %p268 = scmp.eq.s32.totalorder %s32, 1
      %p269 = por %p267, %p268
      %p271 = scmp.ne.s32.totalorder %s254, %s270
      %p272 = scmp.eq.s32.totalorder %s32, 0
      %p273 = por %p271, %p272
      %s274 = ssub.s32 %s26, %s33
      %p275 = scmp.eq.s32.totalorder %s274, 0
      %s277 = sadd.s32 %s276, 1
      %s278 = scalar_select %p275, %s276, %s277
      %p281 = pneg %p275
      %p282 = scmp.eq.s32.totalorder %s26, 1
      %p283 = por %p281, %p282
      %p284 = scmp.ne.s32.totalorder %s276, %s279
      %p285 = scmp.eq.s32.totalorder %s26, 0
      %p286 = por %p284, %p285
      %p287 = scmp.ne.s32.totalorder %s276, %s279
      %p288 = scmp.eq.s32.totalorder %s31, 1
      %p289 = por %p287, %p288
      %p290 = scmp.ne.s32.totalorder %s279, %s280
      %p291 = scmp.eq.s32.totalorder %s31, 0
      %p292 = por %p290, %p291
      %p293 = scmp.ne.s32.totalorder %s279, %s280
      %p294 = scmp.eq.s32.totalorder %s32, 1
      %p295 = por %p293, %p294
      %p297 = scmp.ne.s32.totalorder %s280, %s296
      %p298 = scmp.eq.s32.totalorder %s32, 0
      %p299 = por %p297, %p298
      %s300 = ssub.s32 %s26, %s33
      %p301 = scmp.eq.s32.totalorder %s300, 0
      %s303 = sadd.s32 %s302, 1
      %s304 = scalar_select %p301, %s302, %s303
      %p307 = pneg %p301
      %p308 = scmp.eq.s32.totalorder %s26, 1
      %p309 = por %p307, %p308
      %p310 = scmp.ne.s32.totalorder %s302, %s305
      %p311 = scmp.eq.s32.totalorder %s26, 0
      %p312 = por %p310, %p311
      %p313 = scmp.ne.s32.totalorder %s302, %s305
      %p314 = scmp.eq.s32.totalorder %s31, 1
      %p315 = por %p313, %p314
      %p316 = scmp.ne.s32.totalorder %s305, %s306
      %p317 = scmp.eq.s32.totalorder %s31, 0
      %p318 = por %p316, %p317
      %p319 = scmp.ne.s32.totalorder %s305, %s306
      %p320 = scmp.eq.s32.totalorder %s32, 1
      %p321 = por %p319, %p320
      %p323 = scmp.ne.s32.totalorder %s306, %s322
      %p324 = scmp.eq.s32.totalorder %s32, 0
      %p325 = por %p323, %p324
      %s326 = ssub.s32 %s26, %s33
      %p327 = scmp.eq.s32.totalorder %s326, 0
      %s329 = sadd.s32 %s328, 1
      %s330 = scalar_select %p327, %s328, %s329
      %p333 = pneg %p327
      %p334 = scmp.eq.s32.totalorder %s26, 1
      %p335 = por %p333, %p334
      %p336 = scmp.ne.s32.totalorder %s328, %s331
      %p337 = scmp.eq.s32.totalorder %s26, 0
      %p338 = por %p336, %p337
      %p339 = scmp.ne.s32.totalorder %s328, %s331
      %p340 = scmp.eq.s32.totalorder %s31, 1
      %p341 = por %p339, %p340
      %p342 = scmp.ne.s32.totalorder %s331, %s332
      %p343 = scmp.eq.s32.totalorder %s31, 0
      %p344 = por %p342, %p343
      %p345 = scmp.ne.s32.totalorder %s331, %s332
      %p346 = scmp.eq.s32.totalorder %s32, 1
      %p347 = por %p345, %p346
      %p349 = scmp.ne.s32.totalorder %s332, %s348
      %p350 = scmp.eq.s32.totalorder %s32, 0
      %p351 = por %p349, %p350
      %s352 = ssub.s32 %s26, %s33
      %p353 = scmp.eq.s32.totalorder %s352, 0
      %s355 = sadd.s32 %s354, 1
      %s356 = scalar_select %p353, %s354, %s355
      %p359 = pneg %p353
      %p360 = scmp.eq.s32.totalorder %s26, 1
      %p361 = por %p359, %p360
      %p362 = scmp.ne.s32.totalorder %s354, %s357
      %p363 = scmp.eq.s32.totalorder %s26, 0
      %p364 = por %p362, %p363
      %p365 = scmp.ne.s32.totalorder %s354, %s357
      %p366 = scmp.eq.s32.totalorder %s31, 1
      %p367 = por %p365, %p366
      %p368 = scmp.ne.s32.totalorder %s357, %s358
      %p369 = scmp.eq.s32.totalorder %s31, 0
      %p370 = por %p368, %p369
      %p371 = scmp.ne.s32.totalorder %s357, %s358
      %p372 = scmp.eq.s32.totalorder %s32, 1
      %p373 = por %p371, %p372
      %p375 = scmp.ne.s32.totalorder %s358, %s374
      %p376 = scmp.eq.s32.totalorder %s32, 0
      %p377 = por %p375, %p376
      %s379 = sadd.s32 %s378, 1
      %p382 = scmp.eq.s32.totalorder %s26, 1
      %p383 = scmp.ne.s32.totalorder %s378, %s380
      %p384 = scmp.eq.s32.totalorder %s26, 0
      %p385 = por %p383, %p384
      %p386 = scmp.ne.s32.totalorder %s378, %s380
      %p387 = scmp.eq.s32.totalorder %s31, 1
      %p388 = por %p386, %p387
      %p389 = scmp.ne.s32.totalorder %s380, %s381
      %p390 = scmp.eq.s32.totalorder %s31, 0
      %p391 = por %p389, %p390
      %p392 = scmp.ne.s32.totalorder %s380, %s381
      %p393 = scmp.eq.s32.totalorder %s32, 1
      %p394 = por %p392, %p393
      %p396 = scmp.ne.s32.totalorder %s381, %s395
      %p397 = scmp.eq.s32.totalorder %s32, 0
      %p398 = por %p396, %p397
      %p399 = scmp.le.s32.totalorder 1, %s26
      %p400 = scmp.lt.s32.totalorder %s26, 3
      %p401 = pnand %p399, %p400
      %p402 = pneg %p401
      // Predicated region
      $region9: #{bert_forward.2} parent=5 // pred_check
        _
      $region10: #{bert_forward.2} parent=5 // pred_check_branch
        %404 = sbr.rel (%p401) target = $region12
      $region11: #{bert_forward.2} parent=5 // pred_region
        %s405 = ssub.s32 %s26, 1
        // Predicated region
        $region13: #{bert_forward.2} parent=11 // pred_check
          %p406 = pneg %p47
        $region14: #{bert_forward.2} parent=11 // pred_check_branch
          %408 = sbr.rel (%p406) target = $region16
        $region15: #{bert_forward.2} parent=11 // pred_region
          _
        $region16: #{bert_forward.2} parent=11 // pred_fallthru
          _
        // Predicated region
        $region17: #{bert_forward.2} parent=11 // pred_check
          %p409 = pneg %p68
        $region18: #{bert_forward.2} parent=11 // pred_check_branch
          %411 = sbr.rel (%p409) target = $region20
        $region19: #{bert_forward.2} parent=11 // pred_region
          _
        $region20: #{bert_forward.2} parent=11 // pred_fallthru
          _
        // Predicated region
        $region21: #{bert_forward.2} parent=11 // pred_check
          %p412 = pneg %p89
        $region22: #{bert_forward.2} parent=11 // pred_check_branch
          %414 = sbr.rel (%p412) target = $region24
        $region23: #{bert_forward.2} parent=11 // pred_region
          _
        $region24: #{bert_forward.2} parent=11 // pred_fallthru
          _
        // Predicated region
        $region25: #{bert_forward.2} parent=11 // pred_check
          %p415 = pneg %p110
        $region26: #{bert_forward.2} parent=11 // pred_check_branch
          %417 = sbr.rel (%p415) target = $region28
        $region27: #{bert_forward.2} parent=11 // pred_region
          _
        $region28: #{bert_forward.2} parent=11 // pred_fallthru
          _
      $region12: #{bert_forward.2} parent=5 // pred_fallthru
        _
      %p418 = scmp.lt.s32.totalorder %s26, 2
      // Predicated region
      $region29: #{bert_forward.2} parent=5 // pred_check
        %p419 = pneg %p418
      $region30: #{bert_forward.2} parent=5 // pred_check_branch
        %421 = sbr.rel (%p419) target = $region32
      $region31: #{bert_forward.2} parent=5 // pred_region
        // Predicated region
        $region33: #{bert_forward.2} parent=31 // pred_check
          %p422 = pneg %p130
        $region34: #{bert_forward.2} parent=31 // pred_check_branch
          %424 = sbr.rel (%p422) target = $region36
        $region35: #{bert_forward.2} parent=31 // pred_region
          %s425 = sand.u32 %s120, 1
          %s426 = scalar_lea.sflag [#allocation4], %s425
          %s427 = sand.u32 %s120, 1
          %s428 = smul.addr %s427, 192
          %s429 = scalar_lea.vmem [#allocation3], %s428
          %s431 = ssub.s32 3072, 3072
          %432 = vsyncadd %s426, %s431
          %s433 = smul.addr %s26, 48
          %s434 = smul.addr %s433, 64
          %s435 = scalar_lea.hbm %s4, %s434
          %s436 = sshll.u32 %s429, 4
          %s437 = int_to_ptr.vmem [resolvable:$true] %s436
          %442 = dma.hbm_to_vmem [thread:$0]  %s435, 3072, %s437, %s426, 192, 192, 12
        $region36: #{bert_forward.2} parent=31 // pred_fallthru
          _
        // Predicated region
        $region37: #{bert_forward.2} parent=31 // pred_check
          %p443 = pneg %p156
        $region38: #{bert_forward.2} parent=31 // pred_check_branch
          %445 = sbr.rel (%p443) target = $region40
        $region39: #{bert_forward.2} parent=31 // pred_region
          %p446 = scmp.lt.s32.totalorder %s26, 1
          %s447 = scalar_select %p446, %s26, 1
          %s448 = smul.addr %s447, 3
          %s449 = scalar_lea.vmem %s5, %s448
        $region40: #{bert_forward.2} parent=31 // pred_fallthru
          _
        // Predicated region
        $region41: #{bert_forward.2} parent=31 // pred_check
          %p450 = pneg %p182
        $region42: #{bert_forward.2} parent=31 // pred_check_branch
          %452 = sbr.rel (%p450) target = $region44
        $region43: #{bert_forward.2} parent=31 // pred_region
          %p453 = scmp.lt.s32.totalorder %s26, 1
          %s454 = scalar_select %p453, %s26, 1
          %s455 = smul.addr %s454, 16
          %s456 = smul.addr %s455, 4
          %s457 = scalar_lea.vmem %s6, %s456
        $region44: #{bert_forward.2} parent=31 // pred_fallthru
          _
        // Predicated region
        $region45: #{bert_forward.2} parent=31 // pred_check
          %p458 = pneg %p208
        $region46: #{bert_forward.2} parent=31 // pred_check_branch
          %460 = sbr.rel (%p458) target = $region48
        $region47: #{bert_forward.2} parent=31 // pred_region
          %p461 = scmp.lt.s32.totalorder %s26, 1
          %s462 = scalar_select %p461, %s26, 1
          %s463 = scalar_lea.vmem %s7, %s462
        $region48: #{bert_forward.2} parent=31 // pred_fallthru
          _
        // Predicated region
        $region49: #{bert_forward.2} parent=31 // pred_check
          %p464 = pneg %p234
        $region50: #{bert_forward.2} parent=31 // pred_check_branch
          %466 = sbr.rel (%p464) target = $region52
        $region51: #{bert_forward.2} parent=31 // pred_region
          %p467 = scmp.lt.s32.totalorder %s26, 1
          %s468 = scalar_select %p467, %s26, 1
          %s469 = scalar_lea.vmem %s8, %s468
        $region52: #{bert_forward.2} parent=31 // pred_fallthru
          _
        // Predicated region
        $region53: #{bert_forward.2} parent=31 // pred_check
          %p470 = pneg %p260
        $region54: #{bert_forward.2} parent=31 // pred_check_branch
          %472 = sbr.rel (%p470) target = $region56
        $region55: #{bert_forward.2} parent=31 // pred_region
          %p473 = scmp.lt.s32.totalorder %s26, 1
          %s474 = scalar_select %p473, %s26, 1
          %s475 = scalar_lea.vmem %s9, %s474
        $region56: #{bert_forward.2} parent=31 // pred_fallthru
          _
        // Predicated region
        $region57: #{bert_forward.2} parent=31 // pred_check
          %p476 = pneg %p286
        $region58: #{bert_forward.2} parent=31 // pred_check_branch
          %478 = sbr.rel (%p476) target = $region60
        $region59: #{bert_forward.2} parent=31 // pred_region
          %p479 = scmp.lt.s32.totalorder %s26, 1
          %s480 = scalar_select %p479, %s26, 1
          %s481 = smul.addr %s480, 64
          %s482 = smul.addr %s481, 4
          %s483 = scalar_lea.vmem %s10, %s482
        $region60: #{bert_forward.2} parent=31 // pred_fallthru
          _
        // Predicated region
        $region61: #{bert_forward.2} parent=31 // pred_check
          %p484 = pneg %p312
        $region62: #{bert_forward.2} parent=31 // pred_check_branch
          %486 = sbr.rel (%p484) target = $region64
        $region63: #{bert_forward.2} parent=31 // pred_region
          %p487 = scmp.lt.s32.totalorder %s26, 1
          %s488 = scalar_select %p487, %s26, 1
          %s489 = smul.addr %s488, 4
          %s490 = scalar_lea.vmem %s11, %s489
        $region64: #{bert_forward.2} parent=31 // pred_fallthru
          _
        // Predicated region
        $region65: #{bert_forward.2} parent=31 // pred_check
          %p491 = pneg %p338
        $region66: #{bert_forward.2} parent=31 // pred_check_branch
          %493 = sbr.rel (%p491) target = $region68
        $region67: #{bert_forward.2} parent=31 // pred_region
          %s494 = sand.u32 %s328, 1
          %s495 = scalar_lea.sflag [#allocation6], %s494
          %s496 = sand.u32 %s328, 1
          %s497 = smul.addr %s496, 256
          %s498 = scalar_lea.vmem [#allocation5], %s497
          %s500 = ssub.s32 4096, 4096
          %501 = vsyncadd %s495, %s500
          %s502 = smul.addr %s26, 64
          %s503 = smul.addr %s502, 64
          %s504 = scalar_lea.hbm %s12, %s503
          %s505 = sshll.u32 %s498, 4
          %s506 = int_to_ptr.vmem [resolvable:$true] %s505
          %511 = dma.hbm_to_vmem [thread:$0]  %s504, 4096, %s506, %s495, 64, 64, 4
        $region68: #{bert_forward.2} parent=31 // pred_fallthru
          _
        // Predicated region
        $region69: #{bert_forward.2} parent=31 // pred_check
          %p512 = pneg %p364
        $region70: #{bert_forward.2} parent=31 // pred_check_branch
          %514 = sbr.rel (%p512) target = $region72
        $region71: #{bert_forward.2} parent=31 // pred_region
          %p515 = scmp.lt.s32.totalorder %s26, 1
          %s516 = scalar_select %p515, %s26, 1
          %s517 = scalar_lea.vmem %s13, %s516
        $region72: #{bert_forward.2} parent=31 // pred_fallthru
          _
      $region32: #{bert_forward.2} parent=5 // pred_fallthru
        _
      %p518 = scmp.le.s32.totalorder 1, %s26
      %p519 = scmp.lt.s32.totalorder %s26, 3
      %p520 = pnand %p518, %p519
      %p521 = pneg %p520
      // Predicated region
      $region73: #{bert_forward.2} parent=5 // pred_check
        _
      $region74: #{bert_forward.2} parent=5 // pred_check_branch
        %523 = sbr.rel (%p520) target = $region76
      $region75: #{bert_forward.2} parent=5 // pred_region
        %s524 = ssub.s32 %s26, 1
        %s525 = sand.u32 %s123, 1
        %s526 = scalar_lea.sflag [#allocation4], %s525
        %s527 = sand.u32 %s123, 1
        %s528 = smul.addr %s527, 192
        %s529 = scalar_lea.vmem [#allocation3], %s528
        // Predicated region
        $region77: #{bert_forward.2} parent=75 // pred_check
          %p530 = pneg %p136
        $region78: #{bert_forward.2} parent=75 // pred_check_branch
          %532 = sbr.rel (%p530) target = $region80
        $region79: #{bert_forward.2} parent=75 // pred_region
          %533 = dma.done %s526, 3072
        $region80: #{bert_forward.2} parent=75 // pred_fallthru
          _
        %s534 = sand.u32 %s331, 1
        %s535 = scalar_lea.sflag [#allocation6], %s534
        %s536 = sand.u32 %s331, 1
        %s537 = smul.addr %s536, 256
        %s538 = scalar_lea.vmem [#allocation5], %s537
        // Predicated region
        $region81: #{bert_forward.2} parent=75 // pred_check
          %p539 = pneg %p344
        $region82: #{bert_forward.2} parent=75 // pred_check_branch
          %541 = sbr.rel (%p539) target = $region84
        $region83: #{bert_forward.2} parent=75 // pred_region
          %542 = dma.done %s535, 4096
        $region84: #{bert_forward.2} parent=75 // pred_fallthru
          _
        %p543 = pneg %p47
        %p544 = pneg %p44
        %p545 = pneg %p68
        %p546 = pneg %p65
        %p547 = pneg %p89
        %p548 = pneg %p86
        %p549 = pneg %p110
        %p550 = pneg %p107
        %s551 = sand.u32 %s123, 1
        %s552 = scalar_lea.sflag [#allocation4], %s551
        %s553 = sand.u32 %s123, 1
        %s554 = smul.addr %s553, 192
        %s555 = scalar_lea.vmem [#allocation3], %s554
        %p556 = pneg %p136
        %p557 = pneg %p133
        %p558 = scmp.lt.s32.totalorder %s31, 1
        %s559 = scalar_select %p558, %s31, 1
        %s560 = smul.addr %s559, 3
        %s561 = scalar_lea.vmem %s5, %s560
        %p562 = pneg %p162
        %p563 = pneg %p159
        %p564 = scmp.lt.s32.totalorder %s31, 1
        %s565 = scalar_select %p564, %s31, 1
        %s566 = smul.addr %s565, 16
        %s567 = smul.addr %s566, 4
        %s568 = scalar_lea.vmem %s6, %s567
        %p569 = pneg %p188
        %p570 = pneg %p185
        %p571 = scmp.lt.s32.totalorder %s31, 1
        %s572 = scalar_select %p571, %s31, 1
        %s573 = scalar_lea.vmem %s7, %s572
        %p574 = pneg %p214
        %p575 = pneg %p211
        %p576 = scmp.lt.s32.totalorder %s31, 1
        %s577 = scalar_select %p576, %s31, 1
        %s578 = scalar_lea.vmem %s8, %s577
        %p579 = pneg %p240
        %p580 = pneg %p237
        %p581 = scmp.lt.s32.totalorder %s31, 1
        %s582 = scalar_select %p581, %s31, 1
        %s583 = scalar_lea.vmem %s9, %s582
        %p584 = pneg %p266
        %p585 = pneg %p263
        %p586 = scmp.lt.s32.totalorder %s31, 1
        %s587 = scalar_select %p586, %s31, 1
        %s588 = smul.addr %s587, 64
        %s589 = smul.addr %s588, 4
        %s590 = scalar_lea.vmem %s10, %s589
        %p591 = pneg %p292
        %p592 = pneg %p289
        %p593 = scmp.lt.s32.totalorder %s31, 1
        %s594 = scalar_select %p593, %s31, 1
        %s595 = smul.addr %s594, 4
        %s596 = scalar_lea.vmem %s11, %s595
        %p597 = pneg %p318
        %p598 = pneg %p315
        %s599 = sand.u32 %s331, 1
        %s600 = scalar_lea.sflag [#allocation6], %s599
        %s601 = sand.u32 %s331, 1
        %s602 = smul.addr %s601, 256
        %s603 = scalar_lea.vmem [#allocation5], %s602
        %p604 = pneg %p344
        %p605 = pneg %p341
        %p606 = scmp.lt.s32.totalorder %s31, 1
        %s607 = scalar_select %p606, %s31, 1
        %s608 = scalar_lea.vmem %s13, %s607
        %p609 = pneg %p370
        %p610 = pneg %p367
        %p611 = pneg %p391
        %p612 = pneg %p388
        %p613 = scmp.lt.s32.totalorder %s31, 1
        %s614 = scalar_select %p613, %s31, 1
        %s615 = smul.addr %s614, 3
        %s616 = scalar_lea.vmem %s5, %s615
        %p617 = scmp.lt.s32.totalorder %s31, 1
        %s618 = scalar_select %p617, %s31, 1
        %s619 = smul.addr %s618, 16
        %s620 = smul.addr %s619, 4
        %s621 = scalar_lea.vmem %s6, %s620
        %p622 = scmp.lt.s32.totalorder %s31, 1
        %s623 = scalar_select %p622, %s31, 1
        %s624 = scalar_lea.vmem %s7, %s623
        %p625 = scmp.lt.s32.totalorder %s31, 1
        %s626 = scalar_select %p625, %s31, 1
        %s627 = scalar_lea.vmem %s8, %s626
        %p628 = scmp.lt.s32.totalorder %s31, 1
        %s629 = scalar_select %p628, %s31, 1
        %s630 = scalar_lea.vmem %s9, %s629
        %p631 = scmp.lt.s32.totalorder %s31, 1
        %s632 = scalar_select %p631, %s31, 1
        %s633 = smul.addr %s632, 64
        %s634 = smul.addr %s633, 4
        %s635 = scalar_lea.vmem %s10, %s634
        %p636 = scmp.lt.s32.totalorder %s31, 1
        %s637 = scalar_select %p636, %s31, 1
        %s638 = smul.addr %s637, 4
        %s639 = scalar_lea.vmem %s11, %s638
        %p640 = scmp.lt.s32.totalorder %s31, 1
        %s641 = scalar_select %p640, %s31, 1
        %s642 = scalar_lea.vmem %s13, %s641
        %p644 = scmp.eq.s32.totalorder %s31, 0
        // Predicated region
        $region85: #{bert_forward.2} parent=75 // pred_check
          %p645 = pneg %p644
        $region86: #{bert_forward.2} parent=75 // pred_check_branch
          %647 = sbr.rel (%p645) target = $region88
        $region87: #{bert_forward.2} parent=75 // pred_region
          %v648 = vld [vmem:[%s0] sm:$0xff]
          %v649 = vld [vmem:[%s0 + $0x8] sm:$0xff]
          %v650 = vld [vmem:[%s0 + $0x10] sm:$0xff]
          %v651 = vld [vmem:[%s0 + $0x18] sm:$0xff]
          %v652 = vld [vmem:[%s2] sm:$0x1]
          %v653 = vld [vmem:[%s3] sm:$0x1]
          %654 = vadd.xlane.f32.xlu0 %v648
          %v655 = vpop.xlane.xlu0 %654
          %656 = vadd.xlane.f32.xlu0 %v649
          %v657 = vpop.xlane.xlu0 %656
          %658 = vadd.xlane.f32.xlu0 %v650
          %v659 = vpop.xlane.xlu0 %658
          %660 = vadd.xlane.f32.xlu0 %v651
          %v661 = vpop.xlane.xlu0 %660
          %v662 = vrcp.pop 128.0
          %v663 = vmul.f32 %v655, %v662
          %v664 = vmul.f32 %v657, %v662
          %v665 = vmul.f32 %v659, %v662
          %v666 = vmul.f32 %v661, %v662
          %v667 = vsub.f32 %v648, %v663
          %v668 = vsub.f32 %v649, %v664
          %v669 = vsub.f32 %v650, %v665
          %v670 = vsub.f32 %v651, %v666
          %v671 = vmul.f32 %v667, %v667
          %v672 = vmul.f32 %v668, %v668
          %v673 = vmul.f32 %v669, %v669
          %v674 = vmul.f32 %v670, %v670
          %675 = vadd.xlane.f32.xlu0 %v671
          %v676 = vpop.xlane.xlu0 %675
          %677 = vadd.xlane.f32.xlu0 %v672
          %v678 = vpop.xlane.xlu0 %677
          %679 = vadd.xlane.f32.xlu0 %v673
          %v680 = vpop.xlane.xlu0 %679
          %681 = vadd.xlane.f32.xlu0 %v674
          %v682 = vpop.xlane.xlu0 %681
          %v683 = vmul.f32 %v676, %v662
          %v684 = vmul.f32 %v678, %v662
          %v685 = vmul.f32 %v680, %v662
          %v686 = vmul.f32 %v682, %v662
          %v687 = vadd.f32 %v683, 1e-05
          %v688 = vadd.f32 %v684, 1e-05
          %v689 = vadd.f32 %v685, 1e-05
          %v690 = vadd.f32 %v686, 1e-05
          %v691 = vrsqrt.pop %v687
          %v692 = vrsqrt.pop %v688
          %v693 = vrsqrt.pop %v689
          %v694 = vrsqrt.pop %v690
          %v695 = vmul.f32 %v667, %v691
          %v696 = vmul.f32 %v668, %v692
          %v697 = vmul.f32 %v669, %v693
          %v698 = vmul.f32 %v670, %v694
          %v700 = vlaneseq
          %v701 = vshrl.u32 %v700, 7
          %v702 = vsub.s32 0, %v701
          %v703 = vrot.slane %v652, %v702
          %v705 = vmul.f32 %v695, %v703
          %v706 = vmul.f32 %v696, %v703
          %v707 = vmul.f32 %v697, %v703
          %v708 = vmul.f32 %v698, %v703
          %v710 = vlaneseq
          %v711 = vshrl.u32 %v710, 7
          %v712 = vsub.s32 0, %v711
          %v713 = vrot.slane %v653, %v712
          %v715 = vadd.f32 %v705, %v713
          %v716 = vadd.f32 %v706, %v713
          %v717 = vadd.f32 %v707, %v713
          %v718 = vadd.f32 %v708, %v713
          %719 = vst [vmem:[#allocation2] sm:$0xff] %v715
          %720 = vst [vmem:[#allocation2 + $0x8] sm:$0xff] %v716
          %721 = vst [vmem:[#allocation2 + $0x10] sm:$0xff] %v717
          %722 = vst [vmem:[#allocation2 + $0x18] sm:$0xff] %v718
        $region88: #{bert_forward.2} parent=75 // pred_fallthru
          _
        %v723 = vld [vmem:[#allocation2] sm:$0xff]
        %v724 = vld [vmem:[#allocation2 + $0x8] sm:$0xff]
        %v725 = vld [vmem:[#allocation2 + $0x10] sm:$0xff]
        %v726 = vld [vmem:[#allocation2 + $0x18] sm:$0xff]
        %v727 = vpack.c.bf16 %v724, %v723
        %v728 = vpack.c.bf16 %v726, %v725
        %v729 = vld [vmem:[%s529] sm:$0xff]
        %v730 = vld [vmem:[%s529 + $0x8] sm:$0xf]
        %v731 = vld [vmem:[%s529 + $0xc] sm:$0xff]
        %v732 = vld [vmem:[%s529 + $0x14] sm:$0xf]
        %v733 = vld [vmem:[%s529 + $0x18] sm:$0xff]
        %v734 = vld [vmem:[%s529 + $0x20] sm:$0xf]
        %v735 = vld [vmem:[%s529 + $0x24] sm:$0xff]
        %v736 = vld [vmem:[%s529 + $0x2c] sm:$0xf]
        %v737 = vld [vmem:[%s529 + $0x30] sm:$0xff]
        %v738 = vld [vmem:[%s529 + $0x38] sm:$0xf]
        %v739 = vld [vmem:[%s529 + $0x3c] sm:$0xff]
        %v740 = vld [vmem:[%s529 + $0x44] sm:$0xf]
        %v741 = vld [vmem:[%s529 + $0x48] sm:$0xff]
        %v742 = vld [vmem:[%s529 + $0x50] sm:$0xf]
        %v743 = vld [vmem:[%s529 + $0x54] sm:$0xff]
        %v744 = vld [vmem:[%s529 + $0x5c] sm:$0xf]
        %v745 = vld [vmem:[%s529 + $0x60] sm:$0xff]
        %v746 = vld [vmem:[%s529 + $0x68] sm:$0xf]
        %v747 = vld [vmem:[%s529 + $0x6c] sm:$0xff]
        %v748 = vld [vmem:[%s529 + $0x74] sm:$0xf]
        %v749 = vld [vmem:[%s529 + $0x78] sm:$0xff]
        %v750 = vld [vmem:[%s529 + $0x80] sm:$0xf]
        %v751 = vld [vmem:[%s529 + $0x84] sm:$0xff]
        %v752 = vld [vmem:[%s529 + $0x8c] sm:$0xf]
        %v753 = vld [vmem:[%s529 + $0x90] sm:$0xff]
        %v754 = vld [vmem:[%s529 + $0x98] sm:$0xf]
        %v755 = vld [vmem:[%s529 + $0x9c] sm:$0xff]
        %v756 = vld [vmem:[%s529 + $0xa4] sm:$0xf]
        %v757 = vld [vmem:[%s529 + $0xa8] sm:$0xff]
        %v758 = vld [vmem:[%s529 + $0xb0] sm:$0xf]
        %v759 = vld [vmem:[%s529 + $0xb4] sm:$0xff]
        %v760 = vld [vmem:[%s529 + $0xbc] sm:$0xf]
        %v761 = vld [vmem:[%s616] sm:$0x7]
        %v763 = vlaneseq
        %v764 = vshrl.u32 %v763, 7
        %v765 = vsub.s32 0, %v764
        %v766 = vrot.slane %v761, %v765
        %v767 = vlaneseq
        %v768 = vshrl.u32 %v767, 7
        %v769 = vsub.s32 1, %v768
        %v770 = vrot.slane %v761, %v769
        %v771 = vlaneseq
        %v772 = vshrl.u32 %v771, 7
        %v773 = vsub.s32 2, %v772
        %v774 = vrot.slane %v761, %v773
        %v810 = vunpack.c.l.b16 %v729
        %v811 = vunpack.c.h.b16 %v729
        %v812 = vunpack.c.l.b16 %v730
        %v813 = vunpack.c.l.b16 %v731
        %v814 = vunpack.c.h.b16 %v731
        %v815 = vunpack.c.l.b16 %v732
        %v816 = vunpack.c.l.b16 %v733
        %v817 = vunpack.c.h.b16 %v733
        %v818 = vunpack.c.l.b16 %v734
        %v819 = vunpack.c.l.b16 %v735
        %v820 = vunpack.c.h.b16 %v735
        %v821 = vunpack.c.l.b16 %v736
        %v822 = vunpack.c.l.b16 %v737
        %v823 = vunpack.c.h.b16 %v737
        %v824 = vunpack.c.l.b16 %v738
        %v825 = vunpack.c.l.b16 %v739
        %v826 = vunpack.c.h.b16 %v739
        %v827 = vunpack.c.l.b16 %v740
        %v828 = vunpack.c.l.b16 %v741
        %v829 = vunpack.c.h.b16 %v741
        %v830 = vunpack.c.l.b16 %v742
        %v831 = vunpack.c.l.b16 %v743
        %v832 = vunpack.c.h.b16 %v743
        %v833 = vunpack.c.l.b16 %v744
        %v834 = vunpack.c.l.b16 %v745
        %v835 = vunpack.c.h.b16 %v745
        %v836 = vunpack.c.l.b16 %v746
        %v837 = vunpack.c.l.b16 %v747
        %v838 = vunpack.c.h.b16 %v747
        %v839 = vunpack.c.l.b16 %v748
        %v840 = vunpack.c.l.b16 %v749
        %v841 = vunpack.c.h.b16 %v749
        %v842 = vunpack.c.l.b16 %v750
        %v843 = vunpack.c.l.b16 %v751
        %v844 = vunpack.c.h.b16 %v751
        %v845 = vunpack.c.l.b16 %v752
        %v846 = vunpack.c.l.b16 %v753
        %v847 = vunpack.c.h.b16 %v753
        %v848 = vunpack.c.l.b16 %v754
        %v849 = vunpack.c.l.b16 %v755
        %v850 = vunpack.c.h.b16 %v755
        %v851 = vunpack.c.l.b16 %v756
        %v852 = vunpack.c.l.b16 %v757
        %v853 = vunpack.c.h.b16 %v757
        %v854 = vunpack.c.l.b16 %v758
        %v855 = vunpack.c.l.b16 %v759
        %v856 = vunpack.c.h.b16 %v759
        %v857 = vunpack.c.l.b16 %v760
        %v858 = vpack.c.b16 %v813, %v810
        %v859 = vpack.c.b16 %v814, %v811
        %v860 = vpack.c.b16 %v815, %v812
        %v861 = vpack.c.b16 %v819, %v816
        %v862 = vpack.c.b16 %v820, %v817
        %v863 = vpack.c.b16 %v821, %v818
        %v864 = vpack.c.b16 %v825, %v822
        %v865 = vpack.c.b16 %v826, %v823
        %v866 = vpack.c.b16 %v827, %v824
        %v867 = vpack.c.b16 %v831, %v828
        %v868 = vpack.c.b16 %v832, %v829
        %v869 = vpack.c.b16 %v833, %v830
        %v870 = vpack.c.b16 %v837, %v834
        %v871 = vpack.c.b16 %v838, %v835
        %v872 = vpack.c.b16 %v839, %v836
        %v873 = vpack.c.b16 %v843, %v840
        %v874 = vpack.c.b16 %v844, %v841
        %v875 = vpack.c.b16 %v845, %v842
        %v876 = vpack.c.b16 %v849, %v846
        %v877 = vpack.c.b16 %v850, %v847
        %v878 = vpack.c.b16 %v851, %v848
        %v879 = vpack.c.b16 %v855, %v852
        %v880 = vpack.c.b16 %v856, %v853
        %v881 = vpack.c.b16 %v857, %v854
        %906 = vmatprep.subr.bf16.mxu0 %v859
        %907 = vmatpush1.bf16.msra.mxu0 %v858
        %908 = vmatprep.subr.bf16.mxu0 %v862
        %909 = vmatpush1.bf16.msra.mxu0 %v861
        %910 = vmatprep.subr.bf16.mxu0 %v865
        %911 = vmatpush1.bf16.msra.mxu0 %v864
        %912 = vmatprep.subr.bf16.mxu0 %v868
        %913 = vmatpush1.bf16.msra.mxu0 %v867
        %914 = vmatprep.subr.bf16.mxu0 %v871
        %915 = vmatpush1.bf16.msra.mxu0 %v870
        %916 = vmatprep.subr.bf16.mxu0 %v874
        %917 = vmatpush1.bf16.msra.mxu0 %v873
        %918 = vmatprep.subr.bf16.mxu0 %v877
        %919 = vmatpush1.bf16.msra.mxu0 %v876
        %920 = vmatprep.subr.bf16.mxu0 %v880
        %921 = vmatpush1.bf16.msra.mxu0 %v879
        %922 = vmatprep.subr.bf16.mxu0 0
        %923 = vmatpush1.bf16.msra.mxu0 0
        %924 = vmatprep.subr.bf16.mxu0 0
        %925 = vmatpush1.bf16.msra.mxu0 0
        %926 = vmatprep.subr.bf16.mxu0 0
        %927 = vmatpush1.bf16.msra.mxu0 0
        %928 = vmatprep.subr.bf16.mxu0 0
        %929 = vmatpush1.bf16.msra.mxu0 0
        %930 = vmatprep.subr.bf16.mxu0 0
        %931 = vmatpush1.bf16.msra.mxu0 0
        %932 = vmatprep.subr.bf16.mxu0 0
        %933 = vmatpush1.bf16.msra.mxu0 0
        %934 = vmatprep.subr.bf16.mxu0 0
        %935 = vmatpush1.bf16.msra.mxu0 0
        %936 = vmatprep.subr.bf16.mxu0 0
        %937 = vmatpush1.bf16.msra.mxu0 0
        %938 = vmatprep.mubr.bf16.mxu0 0
        %939 = vmatmul.mubr.bf16.gmra.mrb[0].mxu0 %v727
        %v940 = vpop.f32.mrb[0].mxu0
        %v941 = vadd.f32 %v766, %v940
        %v942 = vpop.f32.mrb[0].mxu0
        %v943 = vadd.f32 %v770, %v942
        %v944 = vpop.f32.mrb[0].mxu0
        %v945 = vadd.f32 %v766, %v944
        %v946 = vpop.f32.mrb[0].mxu0
        %v947 = vadd.f32 %v770, %v946
        %948 = vmatprep.mubr.bf16.mxu0 0
        %949 = vmatmul.mubr.bf16.gmra.mrb[0].mxu0 %v728
        %v950 = vpop.f32.mrb[0].mxu0
        %v951 = vadd.f32 %v766, %v950
        %v952 = vpop.f32.mrb[0].mxu0
        %v953 = vadd.f32 %v770, %v952
        %v954 = vpop.f32.mrb[0].mxu0
        %v955 = vadd.f32 %v766, %v954
        %v956 = vpop.f32.mrb[0].mxu0
        %v957 = vadd.f32 %v770, %v956
        %958 = vdwg.mxu0
        %959 = vmatprep.subr.bf16.mxu0 0
        %960 = vmatpush1.bf16.msra.mxu0 %v860
        %961 = vmatprep.subr.bf16.mxu0 0
        %962 = vmatpush1.bf16.msra.mxu0 %v863
        %963 = vmatprep.subr.bf16.mxu0 0
        %964 = vmatpush1.bf16.msra.mxu0 %v866
        %965 = vmatprep.subr.bf16.mxu0 0
        %966 = vmatpush1.bf16.msra.mxu0 %v869
        %967 = vmatprep.subr.bf16.mxu0 0
        %968 = vmatpush1.bf16.msra.mxu0 %v872
        %969 = vmatprep.subr.bf16.mxu0 0
        %970 = vmatpush1.bf16.msra.mxu0 %v875
        %971 = vmatprep.subr.bf16.mxu0 0
        %972 = vmatpush1.bf16.msra.mxu0 %v878
        %973 = vmatprep.subr.bf16.mxu0 0
        %974 = vmatpush1.bf16.msra.mxu0 %v881
        %975 = vmatprep.subr.bf16.mxu0 0
        %976 = vmatpush1.bf16.msra.mxu0 0
        %977 = vmatprep.subr.bf16.mxu0 0
        %978 = vmatpush1.bf16.msra.mxu0 0
        %979 = vmatprep.subr.bf16.mxu0 0
        %980 = vmatpush1.bf16.msra.mxu0 0
        %981 = vmatprep.subr.bf16.mxu0 0
        %982 = vmatpush1.bf16.msra.mxu0 0
        %983 = vmatprep.subr.bf16.mxu0 0
        %984 = vmatpush1.bf16.msra.mxu0 0
        %985 = vmatprep.subr.bf16.mxu0 0
        %986 = vmatpush1.bf16.msra.mxu0 0
        %987 = vmatprep.subr.bf16.mxu0 0
        %988 = vmatpush1.bf16.msra.mxu0 0
        %989 = vmatprep.subr.bf16.mxu0 0
        %990 = vmatpush1.bf16.msra.mxu0 0
        %991 = vmatprep.mubr.bf16.mxu0 0
        %992 = vmatmul.mubr.bf16.gmra.mrb[0].mxu0 %v727
        %v993 = vpop.f32.mrb[0].mxu0
        %v994 = vadd.f32 %v774, %v993
        %v995 = vpop.f32.mrb[0].mxu0
        %v996 = vpop.f32.mrb[0].mxu0
        %v997 = vadd.f32 %v774, %v996
        %v998 = vpop.f32.mrb[0].mxu0
        %999 = vmatprep.mubr.bf16.mxu0 0
        %1000 = vmatmul.mubr.bf16.gmra.mrb[0].mxu0 %v728
        %v1001 = vpop.f32.mrb[0].mxu0
        %v1002 = vadd.f32 %v774, %v1001
        %v1003 = vpop.f32.mrb[0].mxu0
        %v1004 = vpop.f32.mrb[0].mxu0
        %v1005 = vadd.f32 %v774, %v1004
        %v1006 = vpop.f32.mrb[0].mxu0
        %1007 = vdwg.mxu0
        %v1008 = vpack.c.bf16 %v945, %v941
        %v1009 = vpack.c.bf16 %v947, %v943
        %v1010 = vpack.c.bf16 %v997, %v994
        %v1011 = vpack.c.bf16 %v955, %v951
        %v1012 = vpack.c.bf16 %v957, %v953
        %v1013 = vpack.c.bf16 %v1005, %v1002
        %v1014 = vld [vmem:[%s1] sm:$0x1]
        %vm1015 = vcmask 261120
        %v1017 = vsel %vm1015, %v1008, 0
        %v1020 = vsel %vm1015, %v1009, 0
        %1022 = vmatprep.subr.bf16.mxu0 0
        %1023 = vmatpush1.bf16.xpose.msra.mxu0 %v1020
        %1024 = vmatprep.subr.bf16.mxu0 0
        %1025 = vmatpush1.bf16.xpose.msra.mxu0 0
        %1026 = vmatprep.subr.bf16.mxu0 0
        %1027 = vmatpush1.bf16.xpose.msra.mxu0 0
        %1028 = vmatprep.subr.bf16.mxu0 0
        %1029 = vmatpush1.bf16.xpose.msra.mxu0 0
        %1030 = vmatprep.subr.bf16.mxu0 0
        %1031 = vmatpush1.bf16.xpose.msra.mxu0 0
        %1032 = vmatprep.subr.bf16.mxu0 0
        %1033 = vmatpush1.bf16.xpose.msra.mxu0 0
        %1034 = vmatprep.subr.bf16.mxu0 0
        %1035 = vmatpush1.bf16.xpose.msra.mxu0 0
        %1036 = vmatprep.subr.bf16.mxu0 0
        %1037 = vmatpush1.bf16.xpose.msra.mxu0 0
        %1038 = vmatprep.subr.bf16.mxu0 0
        %1039 = vmatpush1.bf16.xpose.msra.mxu0 0
        %1040 = vmatprep.subr.bf16.mxu0 0
        %1041 = vmatpush1.bf16.xpose.msra.mxu0 0
        %1042 = vmatprep.subr.bf16.mxu0 0
        %1043 = vmatpush1.bf16.xpose.msra.mxu0 0
        %1044 = vmatprep.subr.bf16.mxu0 0
        %1045 = vmatpush1.bf16.xpose.msra.mxu0 0
        %1046 = vmatprep.subr.bf16.mxu0 0
        %1047 = vmatpush1.bf16.xpose.msra.mxu0 0
        %1048 = vmatprep.subr.bf16.mxu0 0
        %1049 = vmatpush1.bf16.xpose.msra.mxu0 0
        %1050 = vmatprep.subr.bf16.mxu0 0
        %1051 = vmatpush1.bf16.xpose.msra.mxu0 0
        %1052 = vmatprep.subr.bf16.mxu0 0
        %1053 = vmatpush1.bf16.xpose.msra.mxu0 0
        %1054 = vmatprep.mubr.bf16.mxu0 0
        %1055 = vmatmul.mubr.bf16.gmra.mrb[0].mxu0 %v1017
        %v1056 = vpop.f32.mrb[0].mxu0
        %v1057 = vadd.f32 0.0, %v1056
        %v1058 = vpop.f32.mrb[0].mxu0
        %v1059 = vpop.f32.mrb[0].mxu0
        %v1060 = vadd.f32 0.0, %v1059
        %v1061 = vpop.f32.mrb[0].mxu0
        %1062 = vdwg.mxu0
        %v1063 = vmul.f32 %v1057, 0.17677669
        %v1064 = vmul.f32 %v1060, 0.17677669
        %v1066 = vlaneseq
        %v1067 = vshrl.u32 %v1066, 7
        %v1068 = vsub.s32 0, %v1067
        %v1069 = vrot.slane %v1014, %v1068
        %v1071 = vadd.f32 %v1063, %v1069
        %v1072 = vadd.f32 %v1064, %v1069
        %vm1073 = vcmask 130048
        %v1074 = vsel %vm1073, %v1071, -inf
        %1075 = vmax.xlane.f32.xlu0 %v1074
        %v1076 = vpop.xlane.xlu0 %1075
        %v1077 = vsel %vm1073, %v1072, -inf
        %1078 = vmax.xlane.f32.xlu0 %v1077
        %v1079 = vpop.xlane.xlu0 %1078
        %v1080 = vsub.f32 %v1071, %v1076
        %v1081 = vsub.f32 %v1072, %v1079
        %v1082 = vmul.f32 %v1080, 1.442695
        %v1083 = vpow.pop %v1082
        %v1084 = vmul.f32 %v1081, 1.442695
        %v1085 = vpow.pop %v1084
        %v1086 = vsel %vm1073, %v1083, 0.0
        %1087 = vadd.xlane.f32.xlu0 %v1086
        %v1088 = vpop.xlane.xlu0 %1087
        %v1089 = vsel %vm1073, %v1085, 0.0
        %1090 = vadd.xlane.f32.xlu0 %v1089
        %v1091 = vpop.xlane.xlu0 %1090
        %v1092 = vrcp.pop %v1088
        %v1093 = vmul.f32 %v1083, %v1092
        %v1094 = vrcp.pop %v1091
        %v1095 = vmul.f32 %v1085, %v1094
        %v1096 = vpack.c.bf16 %v1095, %v1093
        %v1098 = vsel %vm1073, %v1096, 0
        %1100 = vmatprep.subr.bf16.mxu0 0
        %1101 = vmatpush1.bf16.msra.mxu0 %v1010
        %1102 = vmatprep.subr.bf16.mxu0 0
        %1103 = vmatpush1.bf16.msra.mxu0 0
        %1104 = vmatprep.subr.bf16.mxu0 0
        %1105 = vmatpush1.bf16.msra.mxu0 0
        %1106 = vmatprep.subr.bf16.mxu0 0
        %1107 = vmatpush1.bf16.msra.mxu0 0
        %1108 = vmatprep.subr.bf16.mxu0 0
        %1109 = vmatpush1.bf16.msra.mxu0 0
        %1110 = vmatprep.subr.bf16.mxu0 0
        %1111 = vmatpush1.bf16.msra.mxu0 0
        %1112 = vmatprep.subr.bf16.mxu0 0
        %1113 = vmatpush1.bf16.msra.mxu0 0
        %1114 = vmatprep.subr.bf16.mxu0 0
        %1115 = vmatpush1.bf16.msra.mxu0 0
        %1116 = vmatprep.subr.bf16.mxu0 0
        %1117 = vmatpush1.bf16.msra.mxu0 0
        %1118 = vmatprep.subr.bf16.mxu0 0
        %1119 = vmatpush1.bf16.msra.mxu0 0
        %1120 = vmatprep.subr.bf16.mxu0 0
        %1121 = vmatpush1.bf16.msra.mxu0 0
        %1122 = vmatprep.subr.bf16.mxu0 0
        %1123 = vmatpush1.bf16.msra.mxu0 0
        %1124 = vmatprep.subr.bf16.mxu0 0
        %1125 = vmatpush1.bf16.msra.mxu0 0
        %1126 = vmatprep.subr.bf16.mxu0 0
        %1127 = vmatpush1.bf16.msra.mxu0 0
        %1128 = vmatprep.subr.bf16.mxu0 0
        %1129 = vmatpush1.bf16.msra.mxu0 0
        %1130 = vmatprep.subr.bf16.mxu0 0
        %1131 = vmatpush1.bf16.msra.mxu0 0
        %1132 = vmatprep.mubr.bf16.mxu0 0
        %1133 = vmatmul.mubr.bf16.gmra.mrb[0].mxu0 %v1098
        %v1134 = vpop.f32.mrb[0].mxu0
        %v1135 = vadd.f32 0.0, %v1134
        %v1136 = vpop.f32.mrb[0].mxu0
        %v1137 = vpop.f32.mrb[0].mxu0
        %v1138 = vadd.f32 0.0, %v1137
        %v1139 = vpop.f32.mrb[0].mxu0
        %1140 = vdwg.mxu0
        %1142 = vrot.lane.b32.xlu0 %v1008, 96
        %v1143 = vpop.permute.xlu0 %1142
        %1145 = vrot.lane.b32.xlu0 %v1009, 96
        %v1146 = vpop.permute.xlu0 %1145
        %v1148 = vsel %vm1015, %v1143, 0
        %v1151 = vsel %vm1015, %v1146, 0
        %1153 = vmatprep.subr.bf16.mxu0 0
        %1154 = vmatpush1.bf16.xpose.msra.mxu0 %v1151
        %1155 = vmatprep.subr.bf16.mxu0 0
        %1156 = vmatpush1.bf16.xpose.msra.mxu0 0
        %1157 = vmatprep.subr.bf16.mxu0 0
        %1158 = vmatpush1.bf16.xpose.msra.mxu0 0
        %1159 = vmatprep.subr.bf16.mxu0 0
        %1160 = vmatpush1.bf16.xpose.msra.mxu0 0
        %1161 = vmatprep.subr.bf16.mxu0 0
        %1162 = vmatpush1.bf16.xpose.msra.mxu0 0
        %1163 = vmatprep.subr.bf16.mxu0 0
        %1164 = vmatpush1.bf16.xpose.msra.mxu0 0
        %1165 = vmatprep.subr.bf16.mxu0 0
        %1166 = vmatpush1.bf16.xpose.msra.mxu0 0
        %1167 = vmatprep.subr.bf16.mxu0 0
        %1168 = vmatpush1.bf16.xpose.msra.mxu0 0
        %1169 = vmatprep.subr.bf16.mxu0 0
        %1170 = vmatpush1.bf16.xpose.msra.mxu0 0
        %1171 = vmatprep.subr.bf16.mxu0 0
        %1172 = vmatpush1.bf16.xpose.msra.mxu0 0
        %1173 = vmatprep.subr.bf16.mxu0 0
        %1174 = vmatpush1.bf16.xpose.msra.mxu0 0
        %1175 = vmatprep.subr.bf16.mxu0 0
        %1176 = vmatpush1.bf16.xpose.msra.mxu0 0
        %1177 = vmatprep.subr.bf16.mxu0 0
        %1178 = vmatpush1.bf16.xpose.msra.mxu0 0
        %1179 = vmatprep.subr.bf16.mxu0 0
        %1180 = vmatpush1.bf16.xpose.msra.mxu0 0
        %1181 = vmatprep.subr.bf16.mxu0 0
        %1182 = vmatpush1.bf16.xpose.msra.mxu0 0
        %1183 = vmatprep.subr.bf16.mxu0 0
        %1184 = vmatpush1.bf16.xpose.msra.mxu0 0
        %1185 = vmatprep.mubr.bf16.mxu0 0
        %1186 = vmatmul.mubr.bf16.gmra.mrb[0].mxu0 %v1148
        %v1187 = vpop.f32.mrb[0].mxu0
        %v1188 = vadd.f32 0.0, %v1187
        %v1189 = vpop.f32.mrb[0].mxu0
        %v1190 = vpop.f32.mrb[0].mxu0
        %v1191 = vadd.f32 0.0, %v1190
        %v1192 = vpop.f32.mrb[0].mxu0
        %1193 = vdwg.mxu0
        %v1194 = vmul.f32 %v1188, 0.17677669
        %v1195 = vmul.f32 %v1191, 0.17677669
        %v1196 = vadd.f32 %v1194, %v1069
        %v1197 = vadd.f32 %v1195, %v1069
        %v1198 = vsel %vm1073, %v1196, -inf
        %1199 = vmax.xlane.f32.xlu0 %v1198
        %v1200 = vpop.xlane.xlu0 %1199
        %v1201 = vsel %vm1073, %v1197, -inf
        %1202 = vmax.xlane.f32.xlu0 %v1201
        %v1203 = vpop.xlane.xlu0 %1202
        %v1204 = vsub.f32 %v1196, %v1200
        %v1205 = vsub.f32 %v1197, %v1203
        %v1206 = vmul.f32 %v1204, 1.442695
        %v1207 = vpow.pop %v1206
        %v1208 = vmul.f32 %v1205, 1.442695
        %v1209 = vpow.pop %v1208
        %v1210 = vsel %vm1073, %v1207, 0.0
        %1211 = vadd.xlane.f32.xlu0 %v1210
        %v1212 = vpop.xlane.xlu0 %1211
        %v1213 = vsel %vm1073, %v1209, 0.0
        %1214 = vadd.xlane.f32.xlu0 %v1213
        %v1215 = vpop.xlane.xlu0 %1214
        %v1216 = vrcp.pop %v1212
        %v1217 = vmul.f32 %v1207, %v1216
        %v1218 = vrcp.pop %v1215
        %v1219 = vmul.f32 %v1209, %v1218
        %v1220 = vpack.c.bf16 %v1219, %v1217
        %1222 = vrot.lane.b32.xlu0 %v1010, 96
        %v1223 = vpop.permute.xlu0 %1222
        %v1226 = vsel %vm1073, %v1220, 0
        %1228 = vmatprep.subr.bf16.mxu0 0
        %1229 = vmatpush1.bf16.msra.mxu0 %v1223
        %1230 = vmatprep.subr.bf16.mxu0 0
        %1231 = vmatpush1.bf16.msra.mxu0 0
        %1232 = vmatprep.subr.bf16.mxu0 0
        %1233 = vmatpush1.bf16.msra.mxu0 0
        %1234 = vmatprep.subr.bf16.mxu0 0
        %1235 = vmatpush1.bf16.msra.mxu0 0
        %1236 = vmatprep.subr.bf16.mxu0 0
        %1237 = vmatpush1.bf16.msra.mxu0 0
        %1238 = vmatprep.subr.bf16.mxu0 0
        %1239 = vmatpush1.bf16.msra.mxu0 0
        %1240 = vmatprep.subr.bf16.mxu0 0
        %1241 = vmatpush1.bf16.msra.mxu0 0
        %1242 = vmatprep.subr.bf16.mxu0 0
        %1243 = vmatpush1.bf16.msra.mxu0 0
        %1244 = vmatprep.subr.bf16.mxu0 0
        %1245 = vmatpush1.bf16.msra.mxu0 0
        %1246 = vmatprep.subr.bf16.mxu0 0
        %1247 = vmatpush1.bf16.msra.mxu0 0
        %1248 = vmatprep.subr.bf16.mxu0 0
        %1249 = vmatpush1.bf16.msra.mxu0 0
        %1250 = vmatprep.subr.bf16.mxu0 0
        %1251 = vmatpush1.bf16.msra.mxu0 0
        %1252 = vmatprep.subr.bf16.mxu0 0
        %1253 = vmatpush1.bf16.msra.mxu0 0
        %1254 = vmatprep.subr.bf16.mxu0 0
        %1255 = vmatpush1.bf16.msra.mxu0 0
        %1256 = vmatprep.subr.bf16.mxu0 0
        %1257 = vmatpush1.bf16.msra.mxu0 0
        %1258 = vmatprep.subr.bf16.mxu0 0
        %1259 = vmatpush1.bf16.msra.mxu0 0
        %1260 = vmatprep.mubr.bf16.mxu0 0
        %1261 = vmatmul.mubr.bf16.gmra.mrb[0].mxu0 %v1226
        %v1262 = vpop.f32.mrb[0].mxu0
        %v1263 = vadd.f32 0.0, %v1262
        %v1264 = vpop.f32.mrb[0].mxu0
        %v1265 = vpop.f32.mrb[0].mxu0
        %v1266 = vadd.f32 0.0, %v1265
        %v1267 = vpop.f32.mrb[0].mxu0
        %1268 = vdwg.mxu0
        %1269 = vrot.lane.b32.xlu0 %v1008, 64
        %v1270 = vpop.permute.xlu0 %1269
        %1271 = vrot.lane.b32.xlu0 %v1009, 64
        %v1272 = vpop.permute.xlu0 %1271
        %v1274 = vsel %vm1015, %v1270, 0
        %v1277 = vsel %vm1015, %v1272, 0
        %1279 = vmatprep.subr.bf16.mxu0 0
        %1280 = vmatpush1.bf16.xpose.msra.mxu0 %v1277
        %1281 = vmatprep.subr.bf16.mxu0 0
        %1282 = vmatpush1.bf16.xpose.msra.mxu0 0
        %1283 = vmatprep.subr.bf16.mxu0 0
        %1284 = vmatpush1.bf16.xpose.msra.mxu0 0
        %1285 = vmatprep.subr.bf16.mxu0 0
        %1286 = vmatpush1.bf16.xpose.msra.mxu0 0
        %1287 = vmatprep.subr.bf16.mxu0 0
        %1288 = vmatpush1.bf16.xpose.msra.mxu0 0
        %1289 = vmatprep.subr.bf16.mxu0 0
        %1290 = vmatpush1.bf16.xpose.msra.mxu0 0
        %1291 = vmatprep.subr.bf16.mxu0 0
        %1292 = vmatpush1.bf16.xpose.msra.mxu0 0
        %1293 = vmatprep.subr.bf16.mxu0 0
        %1294 = vmatpush1.bf16.xpose.msra.mxu0 0
        %1295 = vmatprep.subr.bf16.mxu0 0
        %1296 = vmatpush1.bf16.xpose.msra.mxu0 0
        %1297 = vmatprep.subr.bf16.mxu0 0
        %1298 = vmatpush1.bf16.xpose.msra.mxu0 0
        %1299 = vmatprep.subr.bf16.mxu0 0
        %1300 = vmatpush1.bf16.xpose.msra.mxu0 0
        %1301 = vmatprep.subr.bf16.mxu0 0
        %1302 = vmatpush1.bf16.xpose.msra.mxu0 0
        %1303 = vmatprep.subr.bf16.mxu0 0
        %1304 = vmatpush1.bf16.xpose.msra.mxu0 0
        %1305 = vmatprep.subr.bf16.mxu0 0
        %1306 = vmatpush1.bf16.xpose.msra.mxu0 0
        %1307 = vmatprep.subr.bf16.mxu0 0
        %1308 = vmatpush1.bf16.xpose.msra.mxu0 0
        %1309 = vmatprep.subr.bf16.mxu0 0
        %1310 = vmatpush1.bf16.xpose.msra.mxu0 0
        %1311 = vmatprep.mubr.bf16.mxu0 0
        %1312 = vmatmul.mubr.bf16.gmra.mrb[0].mxu0 %v1274
        %v1313 = vpop.f32.mrb[0].mxu0
        %v1314 = vadd.f32 0.0, %v1313
        %v1315 = vpop.f32.mrb[0].mxu0
        %v1316 = vpop.f32.mrb[0].mxu0
        %v1317 = vadd.f32 0.0, %v1316
        %v1318 = vpop.f32.mrb[0].mxu0
        %1319 = vdwg.mxu0
        %v1320 = vmul.f32 %v1314, 0.17677669
        %v1321 = vmul.f32 %v1317, 0.17677669
        %v1322 = vadd.f32 %v1320, %v1069
        %v1323 = vadd.f32 %v1321, %v1069
        %v1324 = vsel %vm1073, %v1322, -inf
        %1325 = vmax.xlane.f32.xlu0 %v1324
        %v1326 = vpop.xlane.xlu0 %1325
        %v1327 = vsel %vm1073, %v1323, -inf
        %1328 = vmax.xlane.f32.xlu0 %v1327
        %v1329 = vpop.xlane.xlu0 %1328
        %v1330 = vsub.f32 %v1322, %v1326
        %v1331 = vsub.f32 %v1323, %v1329
        %v1332 = vmul.f32 %v1330, 1.442695
        %v1333 = vpow.pop %v1332
        %v1334 = vmul.f32 %v1331, 1.442695
        %v1335 = vpow.pop %v1334
        %v1336 = vsel %vm1073, %v1333, 0.0
        %1337 = vadd.xlane.f32.xlu0 %v1336
        %v1338 = vpop.xlane.xlu0 %1337
        %v1339 = vsel %vm1073, %v1335, 0.0
        %1340 = vadd.xlane.f32.xlu0 %v1339
        %v1341 = vpop.xlane.xlu0 %1340
        %v1342 = vrcp.pop %v1338
        %v1343 = vmul.f32 %v1333, %v1342
        %v1344 = vrcp.pop %v1341
        %v1345 = vmul.f32 %v1335, %v1344
        %v1346 = vpack.c.bf16 %v1345, %v1343
        %1347 = vrot.lane.b32.xlu0 %v1010, 64
        %v1348 = vpop.permute.xlu0 %1347
        %v1351 = vsel %vm1073, %v1346, 0
        %1353 = vmatprep.subr.bf16.mxu0 0
        %1354 = vmatpush1.bf16.msra.mxu0 %v1348
        %1355 = vmatprep.subr.bf16.mxu0 0
        %1356 = vmatpush1.bf16.msra.mxu0 0
        %1357 = vmatprep.subr.bf16.mxu0 0
        %1358 = vmatpush1.bf16.msra.mxu0 0
        %1359 = vmatprep.subr.bf16.mxu0 0
        %1360 = vmatpush1.bf16.msra.mxu0 0
        %1361 = vmatprep.subr.bf16.mxu0 0
        %1362 = vmatpush1.bf16.msra.mxu0 0
        %1363 = vmatprep.subr.bf16.mxu0 0
        %1364 = vmatpush1.bf16.msra.mxu0 0
        %1365 = vmatprep.subr.bf16.mxu0 0
        %1366 = vmatpush1.bf16.msra.mxu0 0
        %1367 = vmatprep.subr.bf16.mxu0 0
        %1368 = vmatpush1.bf16.msra.mxu0 0
        %1369 = vmatprep.subr.bf16.mxu0 0
        %1370 = vmatpush1.bf16.msra.mxu0 0
        %1371 = vmatprep.subr.bf16.mxu0 0
        %1372 = vmatpush1.bf16.msra.mxu0 0
        %1373 = vmatprep.subr.bf16.mxu0 0
        %1374 = vmatpush1.bf16.msra.mxu0 0
        %1375 = vmatprep.subr.bf16.mxu0 0
        %1376 = vmatpush1.bf16.msra.mxu0 0
        %1377 = vmatprep.subr.bf16.mxu0 0
        %1378 = vmatpush1.bf16.msra.mxu0 0
        %1379 = vmatprep.subr.bf16.mxu0 0
        %1380 = vmatpush1.bf16.msra.mxu0 0
        %1381 = vmatprep.subr.bf16.mxu0 0
        %1382 = vmatpush1.bf16.msra.mxu0 0
        %1383 = vmatprep.subr.bf16.mxu0 0
        %1384 = vmatpush1.bf16.msra.mxu0 0
        %1385 = vmatprep.mubr.bf16.mxu0 0
        %1386 = vmatmul.mubr.bf16.gmra.mrb[0].mxu0 %v1351
        %v1387 = vpop.f32.mrb[0].mxu0
        %v1388 = vadd.f32 0.0, %v1387
        %v1389 = vpop.f32.mrb[0].mxu0
        %v1390 = vpop.f32.mrb[0].mxu0
        %v1391 = vadd.f32 0.0, %v1390
        %v1392 = vpop.f32.mrb[0].mxu0
        %1393 = vdwg.mxu0
        %1394 = vrot.lane.b32.xlu0 %v1008, 32
        %v1395 = vpop.permute.xlu0 %1394
        %1396 = vrot.lane.b32.xlu0 %v1009, 32
        %v1397 = vpop.permute.xlu0 %1396
        %v1399 = vsel %vm1015, %v1395, 0
        %v1402 = vsel %vm1015, %v1397, 0
        %1404 = vmatprep.subr.bf16.mxu0 0
        %1405 = vmatpush1.bf16.xpose.msra.mxu0 %v1402
        %1406 = vmatprep.subr.bf16.mxu0 0
        %1407 = vmatpush1.bf16.xpose.msra.mxu0 0
        %1408 = vmatprep.subr.bf16.mxu0 0
        %1409 = vmatpush1.bf16.xpose.msra.mxu0 0
        %1410 = vmatprep.subr.bf16.mxu0 0
        %1411 = vmatpush1.bf16.xpose.msra.mxu0 0
        %1412 = vmatprep.subr.bf16.mxu0 0
        %1413 = vmatpush1.bf16.xpose.msra.mxu0 0
        %1414 = vmatprep.subr.bf16.mxu0 0
        %1415 = vmatpush1.bf16.xpose.msra.mxu0 0
        %1416 = vmatprep.subr.bf16.mxu0 0
        %1417 = vmatpush1.bf16.xpose.msra.mxu0 0
        %1418 = vmatprep.subr.bf16.mxu0 0
        %1419 = vmatpush1.bf16.xpose.msra.mxu0 0
        %1420 = vmatprep.subr.bf16.mxu0 0
        %1421 = vmatpush1.bf16.xpose.msra.mxu0 0
        %1422 = vmatprep.subr.bf16.mxu0 0
        %1423 = vmatpush1.bf16.xpose.msra.mxu0 0
        %1424 = vmatprep.subr.bf16.mxu0 0
        %1425 = vmatpush1.bf16.xpose.msra.mxu0 0
        %1426 = vmatprep.subr.bf16.mxu0 0
        %1427 = vmatpush1.bf16.xpose.msra.mxu0 0
        %1428 = vmatprep.subr.bf16.mxu0 0
        %1429 = vmatpush1.bf16.xpose.msra.mxu0 0
        %1430 = vmatprep.subr.bf16.mxu0 0
        %1431 = vmatpush1.bf16.xpose.msra.mxu0 0
        %1432 = vmatprep.subr.bf16.mxu0 0
        %1433 = vmatpush1.bf16.xpose.msra.mxu0 0
        %1434 = vmatprep.subr.bf16.mxu0 0
        %1435 = vmatpush1.bf16.xpose.msra.mxu0 0
        %1436 = vmatprep.mubr.bf16.mxu0 0
        %1437 = vmatmul.mubr.bf16.gmra.mrb[0].mxu0 %v1399
        %v1438 = vpop.f32.mrb[0].mxu0
        %v1439 = vadd.f32 0.0, %v1438
        %v1440 = vpop.f32.mrb[0].mxu0
        %v1441 = vpop.f32.mrb[0].mxu0
        %v1442 = vadd.f32 0.0, %v1441
        %v1443 = vpop.f32.mrb[0].mxu0
        %1444 = vdwg.mxu0
        %v1445 = vmul.f32 %v1439, 0.17677669
        %v1446 = vmul.f32 %v1442, 0.17677669
        %v1447 = vadd.f32 %v1445, %v1069
        %v1448 = vadd.f32 %v1446, %v1069
        %v1449 = vsel %vm1073, %v1447, -inf
        %1450 = vmax.xlane.f32.xlu0 %v1449
        %v1451 = vpop.xlane.xlu0 %1450
        %v1452 = vsel %vm1073, %v1448, -inf
        %1453 = vmax.xlane.f32.xlu0 %v1452
        %v1454 = vpop.xlane.xlu0 %1453
        %v1455 = vsub.f32 %v1447, %v1451
        %v1456 = vsub.f32 %v1448, %v1454
        %v1457 = vmul.f32 %v1455, 1.442695
        %v1458 = vpow.pop %v1457
        %v1459 = vmul.f32 %v1456, 1.442695
        %v1460 = vpow.pop %v1459
        %v1461 = vsel %vm1073, %v1458, 0.0
        %1462 = vadd.xlane.f32.xlu0 %v1461
        %v1463 = vpop.xlane.xlu0 %1462
        %v1464 = vsel %vm1073, %v1460, 0.0
        %1465 = vadd.xlane.f32.xlu0 %v1464
        %v1466 = vpop.xlane.xlu0 %1465
        %v1467 = vrcp.pop %v1463
        %v1468 = vmul.f32 %v1458, %v1467
        %v1469 = vrcp.pop %v1466
        %v1470 = vmul.f32 %v1460, %v1469
        %v1471 = vpack.c.bf16 %v1470, %v1468
        %1472 = vrot.lane.b32.xlu0 %v1010, 32
        %v1473 = vpop.permute.xlu0 %1472
        %v1476 = vsel %vm1073, %v1471, 0
        %1478 = vmatprep.subr.bf16.mxu0 0
        %1479 = vmatpush1.bf16.msra.mxu0 %v1473
        %1480 = vmatprep.subr.bf16.mxu0 0
        %1481 = vmatpush1.bf16.msra.mxu0 0
        %1482 = vmatprep.subr.bf16.mxu0 0
        %1483 = vmatpush1.bf16.msra.mxu0 0
        %1484 = vmatprep.subr.bf16.mxu0 0
        %1485 = vmatpush1.bf16.msra.mxu0 0
        %1486 = vmatprep.subr.bf16.mxu0 0
        %1487 = vmatpush1.bf16.msra.mxu0 0
        %1488 = vmatprep.subr.bf16.mxu0 0
        %1489 = vmatpush1.bf16.msra.mxu0 0
        %1490 = vmatprep.subr.bf16.mxu0 0
        %1491 = vmatpush1.bf16.msra.mxu0 0
        %1492 = vmatprep.subr.bf16.mxu0 0
        %1493 = vmatpush1.bf16.msra.mxu0 0
        %1494 = vmatprep.subr.bf16.mxu0 0
        %1495 = vmatpush1.bf16.msra.mxu0 0
        %1496 = vmatprep.subr.bf16.mxu0 0
        %1497 = vmatpush1.bf16.msra.mxu0 0
        %1498 = vmatprep.subr.bf16.mxu0 0
        %1499 = vmatpush1.bf16.msra.mxu0 0
        %1500 = vmatprep.subr.bf16.mxu0 0
        %1501 = vmatpush1.bf16.msra.mxu0 0
        %1502 = vmatprep.subr.bf16.mxu0 0
        %1503 = vmatpush1.bf16.msra.mxu0 0
        %1504 = vmatprep.subr.bf16.mxu0 0
        %1505 = vmatpush1.bf16.msra.mxu0 0
        %1506 = vmatprep.subr.bf16.mxu0 0
        %1507 = vmatpush1.bf16.msra.mxu0 0
        %1508 = vmatprep.subr.bf16.mxu0 0
        %1509 = vmatpush1.bf16.msra.mxu0 0
        %1510 = vmatprep.mubr.bf16.mxu0 0
        %1511 = vmatmul.mubr.bf16.gmra.mrb[0].mxu0 %v1476
        %v1512 = vpop.f32.mrb[0].mxu0
        %v1513 = vadd.f32 0.0, %v1512
        %v1514 = vpop.f32.mrb[0].mxu0
        %v1515 = vpop.f32.mrb[0].mxu0
        %v1516 = vadd.f32 0.0, %v1515
        %v1517 = vpop.f32.mrb[0].mxu0
        %1518 = vdwg.mxu0
        %1521 = vrot.lane.b32.xlu0 %v1263, 32
        %v1522 = vpop.permute.xlu0 %1521
        %1523 = vrot.lane.b32.xlu0 %v1266, 32
        %v1524 = vpop.permute.xlu0 %1523
        %1529 = vrot.lane.b32.xlu0 %v1388, 64
        %v1530 = vpop.permute.xlu0 %1529
        %1531 = vrot.lane.b32.xlu0 %v1391, 64
        %v1532 = vpop.permute.xlu0 %1531
        %1537 = vrot.lane.b32.xlu0 %v1513, 96
        %v1538 = vpop.permute.xlu0 %1537
        %1539 = vrot.lane.b32.xlu0 %v1516, 96
        %v1540 = vpop.permute.xlu0 %1539
        %v1543 = vsel %vm1015, %v1135, %v1522
        %v1544 = vsel %vm1015, %v1138, %v1524
        %vm1545 = vcmask 523264
        %v1546 = vsel %vm1545, %v1543, %v1530
        %v1547 = vsel %vm1545, %v1544, %v1532
        %vm1548 = vcmask 785408
        %v1549 = vsel %vm1548, %v1546, %v1538
        %v1550 = vsel %vm1548, %v1547, %v1540
        %s1551 = scalar_lea.vmem %s1, 1
        %v1552 = vld [vmem:[%s1551] sm:$0x1]
        %v1554 = vsel %vm1015, %v1011, 0
        %v1557 = vsel %vm1015, %v1012, 0
        %1559 = vmatprep.subr.bf16.mxu0 0
        %1560 = vmatpush1.bf16.xpose.msra.mxu0 %v1557
        %1561 = vmatprep.subr.bf16.mxu0 0
        %1562 = vmatpush1.bf16.xpose.msra.mxu0 0
        %1563 = vmatprep.subr.bf16.mxu0 0
        %1564 = vmatpush1.bf16.xpose.msra.mxu0 0
        %1565 = vmatprep.subr.bf16.mxu0 0
        %1566 = vmatpush1.bf16.xpose.msra.mxu0 0
        %1567 = vmatprep.subr.bf16.mxu0 0
        %1568 = vmatpush1.bf16.xpose.msra.mxu0 0
        %1569 = vmatprep.subr.bf16.mxu0 0
        %1570 = vmatpush1.bf16.xpose.msra.mxu0 0
        %1571 = vmatprep.subr.bf16.mxu0 0
        %1572 = vmatpush1.bf16.xpose.msra.mxu0 0
        %1573 = vmatprep.subr.bf16.mxu0 0
        %1574 = vmatpush1.bf16.xpose.msra.mxu0 0
        %1575 = vmatprep.subr.bf16.mxu0 0
        %1576 = vmatpush1.bf16.xpose.msra.mxu0 0
        %1577 = vmatprep.subr.bf16.mxu0 0
        %1578 = vmatpush1.bf16.xpose.msra.mxu0 0
        %1579 = vmatprep.subr.bf16.mxu0 0
        %1580 = vmatpush1.bf16.xpose.msra.mxu0 0
        %1581 = vmatprep.subr.bf16.mxu0 0
        %1582 = vmatpush1.bf16.xpose.msra.mxu0 0
        %1583 = vmatprep.subr.bf16.mxu0 0
        %1584 = vmatpush1.bf16.xpose.msra.mxu0 0
        %1585 = vmatprep.subr.bf16.mxu0 0
        %1586 = vmatpush1.bf16.xpose.msra.mxu0 0
        %1587 = vmatprep.subr.bf16.mxu0 0
        %1588 = vmatpush1.bf16.xpose.msra.mxu0 0
        %1589 = vmatprep.subr.bf16.mxu0 0
        %1590 = vmatpush1.bf16.xpose.msra.mxu0 0
        %1591 = vmatprep.mubr.bf16.mxu0 0
        %1592 = vmatmul.mubr.bf16.gmra.mrb[0].mxu0 %v1554
        %v1593 = vpop.f32.mrb[0].mxu0
        %v1594 = vadd.f32 0.0, %v1593
        %v1595 = vpop.f32.mrb[0].mxu0
        %v1596 = vpop.f32.mrb[0].mxu0
        %v1597 = vadd.f32 0.0, %v1596
        %v1598 = vpop.f32.mrb[0].mxu0
        %1599 = vdwg.mxu0
        %v1600 = vmul.f32 %v1594, 0.17677669
        %v1601 = vmul.f32 %v1597, 0.17677669
        %v1603 = vlaneseq
        %v1604 = vshrl.u32 %v1603, 7
        %v1605 = vsub.s32 0, %v1604
        %v1606 = vrot.slane %v1552, %v1605
        %v1608 = vadd.f32 %v1600, %v1606
        %v1609 = vadd.f32 %v1601, %v1606
        %v1610 = vsel %vm1073, %v1608, -inf
        %1611 = vmax.xlane.f32.xlu0 %v1610
        %v1612 = vpop.xlane.xlu0 %1611
        %v1613 = vsel %vm1073, %v1609, -inf
        %1614 = vmax.xlane.f32.xlu0 %v1613
        %v1615 = vpop.xlane.xlu0 %1614
        %v1616 = vsub.f32 %v1608, %v1612
        %v1617 = vsub.f32 %v1609, %v1615
        %v1618 = vmul.f32 %v1616, 1.442695
        %v1619 = vpow.pop %v1618
        %v1620 = vmul.f32 %v1617, 1.442695
        %v1621 = vpow.pop %v1620
        %v1622 = vsel %vm1073, %v1619, 0.0
        %1623 = vadd.xlane.f32.xlu0 %v1622
        %v1624 = vpop.xlane.xlu0 %1623
        %v1625 = vsel %vm1073, %v1621, 0.0
        %1626 = vadd.xlane.f32.xlu0 %v1625
        %v1627 = vpop.xlane.xlu0 %1626
        %v1628 = vrcp.pop %v1624
        %v1629 = vmul.f32 %v1619, %v1628
        %v1630 = vrcp.pop %v1627
        %v1631 = vmul.f32 %v1621, %v1630
        %v1632 = vpack.c.bf16 %v1631, %v1629
        %v1634 = vsel %vm1073, %v1632, 0
        %1636 = vmatprep.subr.bf16.mxu0 0
        %1637 = vmatpush1.bf16.msra.mxu0 %v1013
        %1638 = vmatprep.subr.bf16.mxu0 0
        %1639 = vmatpush1.bf16.msra.mxu0 0
        %1640 = vmatprep.subr.bf16.mxu0 0
        %1641 = vmatpush1.bf16.msra.mxu0 0
        %1642 = vmatprep.subr.bf16.mxu0 0
        %1643 = vmatpush1.bf16.msra.mxu0 0
        %1644 = vmatprep.subr.bf16.mxu0 0
        %1645 = vmatpush1.bf16.msra.mxu0 0
        %1646 = vmatprep.subr.bf16.mxu0 0
        %1647 = vmatpush1.bf16.msra.mxu0 0
        %1648 = vmatprep.subr.bf16.mxu0 0
        %1649 = vmatpush1.bf16.msra.mxu0 0
        %1650 = vmatprep.subr.bf16.mxu0 0
        %1651 = vmatpush1.bf16.msra.mxu0 0
        %1652 = vmatprep.subr.bf16.mxu0 0
        %1653 = vmatpush1.bf16.msra.mxu0 0
        %1654 = vmatprep.subr.bf16.mxu0 0
        %1655 = vmatpush1.bf16.msra.mxu0 0
        %1656 = vmatprep.subr.bf16.mxu0 0
        %1657 = vmatpush1.bf16.msra.mxu0 0
        %1658 = vmatprep.subr.bf16.mxu0 0
        %1659 = vmatpush1.bf16.msra.mxu0 0
        %1660 = vmatprep.subr.bf16.mxu0 0
        %1661 = vmatpush1.bf16.msra.mxu0 0
        %1662 = vmatprep.subr.bf16.mxu0 0
        %1663 = vmatpush1.bf16.msra.mxu0 0
        %1664 = vmatprep.subr.bf16.mxu0 0
        %1665 = vmatpush1.bf16.msra.mxu0 0
        %1666 = vmatprep.subr.bf16.mxu0 0
        %1667 = vmatpush1.bf16.msra.mxu0 0
        %1668 = vmatprep.mubr.bf16.mxu0 0
        %1669 = vmatmul.mubr.bf16.gmra.mrb[0].mxu0 %v1634
        %v1670 = vpop.f32.mrb[0].mxu0
        %v1671 = vadd.f32 0.0, %v1670
        %v1672 = vpop.f32.mrb[0].mxu0
        %v1673 = vpop.f32.mrb[0].mxu0
        %v1674 = vadd.f32 0.0, %v1673
        %v1675 = vpop.f32.mrb[0].mxu0
        %1676 = vdwg.mxu0
        %1678 = vrot.lane.b32.xlu0 %v1011, 96
        %v1679 = vpop.permute.xlu0 %1678
        %1681 = vrot.lane.b32.xlu0 %v1012, 96
        %v1682 = vpop.permute.xlu0 %1681
        %v1684 = vsel %vm1015, %v1679, 0
        %v1687 = vsel %vm1015, %v1682, 0
        %1689 = vmatprep.subr.bf16.mxu0 0
        %1690 = vmatpush1.bf16.xpose.msra.mxu0 %v1687
        %1691 = vmatprep.subr.bf16.mxu0 0
        %1692 = vmatpush1.bf16.xpose.msra.mxu0 0
        %1693 = vmatprep.subr.bf16.mxu0 0
        %1694 = vmatpush1.bf16.xpose.msra.mxu0 0
        %1695 = vmatprep.subr.bf16.mxu0 0
        %1696 = vmatpush1.bf16.xpose.msra.mxu0 0
        %1697 = vmatprep.subr.bf16.mxu0 0
        %1698 = vmatpush1.bf16.xpose.msra.mxu0 0
        %1699 = vmatprep.subr.bf16.mxu0 0
        %1700 = vmatpush1.bf16.xpose.msra.mxu0 0
        %1701 = vmatprep.subr.bf16.mxu0 0
        %1702 = vmatpush1.bf16.xpose.msra.mxu0 0
        %1703 = vmatprep.subr.bf16.mxu0 0
        %1704 = vmatpush1.bf16.xpose.msra.mxu0 0
        %1705 = vmatprep.subr.bf16.mxu0 0
        %1706 = vmatpush1.bf16.xpose.msra.mxu0 0
        %1707 = vmatprep.subr.bf16.mxu0 0
        %1708 = vmatpush1.bf16.xpose.msra.mxu0 0
        %1709 = vmatprep.subr.bf16.mxu0 0
        %1710 = vmatpush1.bf16.xpose.msra.mxu0 0
        %1711 = vmatprep.subr.bf16.mxu0 0
        %1712 = vmatpush1.bf16.xpose.msra.mxu0 0
        %1713 = vmatprep.subr.bf16.mxu0 0
        %1714 = vmatpush1.bf16.xpose.msra.mxu0 0
        %1715 = vmatprep.subr.bf16.mxu0 0
        %1716 = vmatpush1.bf16.xpose.msra.mxu0 0
        %1717 = vmatprep.subr.bf16.mxu0 0
        %1718 = vmatpush1.bf16.xpose.msra.mxu0 0
        %1719 = vmatprep.subr.bf16.mxu0 0
        %1720 = vmatpush1.bf16.xpose.msra.mxu0 0
        %1721 = vmatprep.mubr.bf16.mxu0 0
        %1722 = vmatmul.mubr.bf16.gmra.mrb[0].mxu0 %v1684
        %v1723 = vpop.f32.mrb[0].mxu0
        %v1724 = vadd.f32 0.0, %v1723
        %v1725 = vpop.f32.mrb[0].mxu0
        %v1726 = vpop.f32.mrb[0].mxu0
        %v1727 = vadd.f32 0.0, %v1726
        %v1728 = vpop.f32.mrb[0].mxu0
        %1729 = vdwg.mxu0
        %v1730 = vmul.f32 %v1724, 0.17677669
        %v1731 = vmul.f32 %v1727, 0.17677669
        %v1732 = vadd.f32 %v1730, %v1606
        %v1733 = vadd.f32 %v1731, %v1606
        %v1734 = vsel %vm1073, %v1732, -inf
        %1735 = vmax.xlane.f32.xlu0 %v1734
        %v1736 = vpop.xlane.xlu0 %1735
        %v1737 = vsel %vm1073, %v1733, -inf
        %1738 = vmax.xlane.f32.xlu0 %v1737
        %v1739 = vpop.xlane.xlu0 %1738
        %v1740 = vsub.f32 %v1732, %v1736
        %v1741 = vsub.f32 %v1733, %v1739
        %v1742 = vmul.f32 %v1740, 1.442695
        %v1743 = vpow.pop %v1742
        %v1744 = vmul.f32 %v1741, 1.442695
        %v1745 = vpow.pop %v1744
        %v1746 = vsel %vm1073, %v1743, 0.0
        %1747 = vadd.xlane.f32.xlu0 %v1746
        %v1748 = vpop.xlane.xlu0 %1747
        %v1749 = vsel %vm1073, %v1745, 0.0
        %1750 = vadd.xlane.f32.xlu0 %v1749
        %v1751 = vpop.xlane.xlu0 %1750
        %v1752 = vrcp.pop %v1748
        %v1753 = vmul.f32 %v1743, %v1752
        %v1754 = vrcp.pop %v1751
        %v1755 = vmul.f32 %v1745, %v1754
        %v1756 = vpack.c.bf16 %v1755, %v1753
        %1758 = vrot.lane.b32.xlu0 %v1013, 96
        %v1759 = vpop.permute.xlu0 %1758
        %v1762 = vsel %vm1073, %v1756, 0
        %1764 = vmatprep.subr.bf16.mxu0 0
        %1765 = vmatpush1.bf16.msra.mxu0 %v1759
        %1766 = vmatprep.subr.bf16.mxu0 0
        %1767 = vmatpush1.bf16.msra.mxu0 0
        %1768 = vmatprep.subr.bf16.mxu0 0
        %1769 = vmatpush1.bf16.msra.mxu0 0
        %1770 = vmatprep.subr.bf16.mxu0 0
        %1771 = vmatpush1.bf16.msra.mxu0 0
        %1772 = vmatprep.subr.bf16.mxu0 0
        %1773 = vmatpush1.bf16.msra.mxu0 0
        %1774 = vmatprep.subr.bf16.mxu0 0
        %1775 = vmatpush1.bf16.msra.mxu0 0
        %1776 = vmatprep.subr.bf16.mxu0 0
        %1777 = vmatpush1.bf16.msra.mxu0 0
        %1778 = vmatprep.subr.bf16.mxu0 0
        %1779 = vmatpush1.bf16.msra.mxu0 0
        %1780 = vmatprep.subr.bf16.mxu0 0
        %1781 = vmatpush1.bf16.msra.mxu0 0
        %1782 = vmatprep.subr.bf16.mxu0 0
        %1783 = vmatpush1.bf16.msra.mxu0 0
        %1784 = vmatprep.subr.bf16.mxu0 0
        %1785 = vmatpush1.bf16.msra.mxu0 0
        %1786 = vmatprep.subr.bf16.mxu0 0
        %1787 = vmatpush1.bf16.msra.mxu0 0
        %1788 = vmatprep.subr.bf16.mxu0 0
        %1789 = vmatpush1.bf16.msra.mxu0 0
        %1790 = vmatprep.subr.bf16.mxu0 0
        %1791 = vmatpush1.bf16.msra.mxu0 0
        %1792 = vmatprep.subr.bf16.mxu0 0
        %1793 = vmatpush1.bf16.msra.mxu0 0
        %1794 = vmatprep.subr.bf16.mxu0 0
        %1795 = vmatpush1.bf16.msra.mxu0 0
        %1796 = vmatprep.mubr.bf16.mxu0 0
        %1797 = vmatmul.mubr.bf16.gmra.mrb[0].mxu0 %v1762
        %v1798 = vpop.f32.mrb[0].mxu0
        %v1799 = vadd.f32 0.0, %v1798
        %v1800 = vpop.f32.mrb[0].mxu0
        %v1801 = vpop.f32.mrb[0].mxu0
        %v1802 = vadd.f32 0.0, %v1801
        %v1803 = vpop.f32.mrb[0].mxu0
        %1804 = vdwg.mxu0
        %1805 = vrot.lane.b32.xlu0 %v1011, 64
        %v1806 = vpop.permute.xlu0 %1805
        %1807 = vrot.lane.b32.xlu0 %v1012, 64
        %v1808 = vpop.permute.xlu0 %1807
        %v1810 = vsel %vm1015, %v1806, 0
        %v1813 = vsel %vm1015, %v1808, 0
        %1815 = vmatprep.subr.bf16.mxu0 0
        %1816 = vmatpush1.bf16.xpose.msra.mxu0 %v1813
        %1817 = vmatprep.subr.bf16.mxu0 0
        %1818 = vmatpush1.bf16.xpose.msra.mxu0 0
        %1819 = vmatprep.subr.bf16.mxu0 0
        %1820 = vmatpush1.bf16.xpose.msra.mxu0 0
        %1821 = vmatprep.subr.bf16.mxu0 0
        %1822 = vmatpush1.bf16.xpose.msra.mxu0 0
        %1823 = vmatprep.subr.bf16.mxu0 0
        %1824 = vmatpush1.bf16.xpose.msra.mxu0 0
        %1825 = vmatprep.subr.bf16.mxu0 0
        %1826 = vmatpush1.bf16.xpose.msra.mxu0 0
        %1827 = vmatprep.subr.bf16.mxu0 0
        %1828 = vmatpush1.bf16.xpose.msra.mxu0 0
        %1829 = vmatprep.subr.bf16.mxu0 0
        %1830 = vmatpush1.bf16.xpose.msra.mxu0 0
        %1831 = vmatprep.subr.bf16.mxu0 0
        %1832 = vmatpush1.bf16.xpose.msra.mxu0 0
        %1833 = vmatprep.subr.bf16.mxu0 0
        %1834 = vmatpush1.bf16.xpose.msra.mxu0 0
        %1835 = vmatprep.subr.bf16.mxu0 0
        %1836 = vmatpush1.bf16.xpose.msra.mxu0 0
        %1837 = vmatprep.subr.bf16.mxu0 0
        %1838 = vmatpush1.bf16.xpose.msra.mxu0 0
        %1839 = vmatprep.subr.bf16.mxu0 0
        %1840 = vmatpush1.bf16.xpose.msra.mxu0 0
        %1841 = vmatprep.subr.bf16.mxu0 0
        %1842 = vmatpush1.bf16.xpose.msra.mxu0 0
        %1843 = vmatprep.subr.bf16.mxu0 0
        %1844 = vmatpush1.bf16.xpose.msra.mxu0 0
        %1845 = vmatprep.subr.bf16.mxu0 0
        %1846 = vmatpush1.bf16.xpose.msra.mxu0 0
        %1847 = vmatprep.mubr.bf16.mxu0 0
        %1848 = vmatmul.mubr.bf16.gmra.mrb[0].mxu0 %v1810
        %v1849 = vpop.f32.mrb[0].mxu0
        %v1850 = vadd.f32 0.0, %v1849
        %v1851 = vpop.f32.mrb[0].mxu0
        %v1852 = vpop.f32.mrb[0].mxu0
        %v1853 = vadd.f32 0.0, %v1852
        %v1854 = vpop.f32.mrb[0].mxu0
        %1855 = vdwg.mxu0
        %v1856 = vmul.f32 %v1850, 0.17677669
        %v1857 = vmul.f32 %v1853, 0.17677669
        %v1858 = vadd.f32 %v1856, %v1606
        %v1859 = vadd.f32 %v1857, %v1606
        %v1860 = vsel %vm1073, %v1858, -inf
        %1861 = vmax.xlane.f32.xlu0 %v1860
        %v1862 = vpop.xlane.xlu0 %1861
        %v1863 = vsel %vm1073, %v1859, -inf
        %1864 = vmax.xlane.f32.xlu0 %v1863
        %v1865 = vpop.xlane.xlu0 %1864
        %v1866 = vsub.f32 %v1858, %v1862
        %v1867 = vsub.f32 %v1859, %v1865
        %v1868 = vmul.f32 %v1866, 1.442695
        %v1869 = vpow.pop %v1868
        %v1870 = vmul.f32 %v1867, 1.442695
        %v1871 = vpow.pop %v1870
        %v1872 = vsel %vm1073, %v1869, 0.0
        %1873 = vadd.xlane.f32.xlu0 %v1872
        %v1874 = vpop.xlane.xlu0 %1873
        %v1875 = vsel %vm1073, %v1871, 0.0
        %1876 = vadd.xlane.f32.xlu0 %v1875
        %v1877 = vpop.xlane.xlu0 %1876
        %v1878 = vrcp.pop %v1874
        %v1879 = vmul.f32 %v1869, %v1878
        %v1880 = vrcp.pop %v1877
        %v1881 = vmul.f32 %v1871, %v1880
        %v1882 = vpack.c.bf16 %v1881, %v1879
        %1883 = vrot.lane.b32.xlu0 %v1013, 64
        %v1884 = vpop.permute.xlu0 %1883
        %v1887 = vsel %vm1073, %v1882, 0
        %1889 = vmatprep.subr.bf16.mxu0 0
        %1890 = vmatpush1.bf16.msra.mxu0 %v1884
        %1891 = vmatprep.subr.bf16.mxu0 0
        %1892 = vmatpush1.bf16.msra.mxu0 0
        %1893 = vmatprep.subr.bf16.mxu0 0
        %1894 = vmatpush1.bf16.msra.mxu0 0
        %1895 = vmatprep.subr.bf16.mxu0 0
        %1896 = vmatpush1.bf16.msra.mxu0 0
        %1897 = vmatprep.subr.bf16.mxu0 0
        %1898 = vmatpush1.bf16.msra.mxu0 0
        %1899 = vmatprep.subr.bf16.mxu0 0
        %1900 = vmatpush1.bf16.msra.mxu0 0
        %1901 = vmatprep.subr.bf16.mxu0 0
        %1902 = vmatpush1.bf16.msra.mxu0 0
        %1903 = vmatprep.subr.bf16.mxu0 0
        %1904 = vmatpush1.bf16.msra.mxu0 0
        %1905 = vmatprep.subr.bf16.mxu0 0
        %1906 = vmatpush1.bf16.msra.mxu0 0
        %1907 = vmatprep.subr.bf16.mxu0 0
        %1908 = vmatpush1.bf16.msra.mxu0 0
        %1909 = vmatprep.subr.bf16.mxu0 0
        %1910 = vmatpush1.bf16.msra.mxu0 0
        %1911 = vmatprep.subr.bf16.mxu0 0
        %1912 = vmatpush1.bf16.msra.mxu0 0
        %1913 = vmatprep.subr.bf16.mxu0 0
        %1914 = vmatpush1.bf16.msra.mxu0 0
        %1915 = vmatprep.subr.bf16.mxu0 0
        %1916 = vmatpush1.bf16.msra.mxu0 0
        %1917 = vmatprep.subr.bf16.mxu0 0
        %1918 = vmatpush1.bf16.msra.mxu0 0
        %1919 = vmatprep.subr.bf16.mxu0 0
        %1920 = vmatpush1.bf16.msra.mxu0 0
        %1921 = vmatprep.mubr.bf16.mxu0 0
        %1922 = vmatmul.mubr.bf16.gmra.mrb[0].mxu0 %v1887
        %v1923 = vpop.f32.mrb[0].mxu0
        %v1924 = vadd.f32 0.0, %v1923
        %v1925 = vpop.f32.mrb[0].mxu0
        %v1926 = vpop.f32.mrb[0].mxu0
        %v1927 = vadd.f32 0.0, %v1926
        %v1928 = vpop.f32.mrb[0].mxu0
        %1929 = vdwg.mxu0
        %1930 = vrot.lane.b32.xlu0 %v1011, 32
        %v1931 = vpop.permute.xlu0 %1930
        %1932 = vrot.lane.b32.xlu0 %v1012, 32
        %v1933 = vpop.permute.xlu0 %1932
        %v1935 = vsel %vm1015, %v1931, 0
        %v1938 = vsel %vm1015, %v1933, 0
        %1940 = vmatprep.subr.bf16.mxu0 0
        %1941 = vmatpush1.bf16.xpose.msra.mxu0 %v1938
        %1942 = vmatprep.subr.bf16.mxu0 0
        %1943 = vmatpush1.bf16.xpose.msra.mxu0 0
        %1944 = vmatprep.subr.bf16.mxu0 0
        %1945 = vmatpush1.bf16.xpose.msra.mxu0 0
        %1946 = vmatprep.subr.bf16.mxu0 0
        %1947 = vmatpush1.bf16.xpose.msra.mxu0 0
        %1948 = vmatprep.subr.bf16.mxu0 0
        %1949 = vmatpush1.bf16.xpose.msra.mxu0 0
        %1950 = vmatprep.subr.bf16.mxu0 0
        %1951 = vmatpush1.bf16.xpose.msra.mxu0 0
        %1952 = vmatprep.subr.bf16.mxu0 0
        %1953 = vmatpush1.bf16.xpose.msra.mxu0 0
        %1954 = vmatprep.subr.bf16.mxu0 0
        %1955 = vmatpush1.bf16.xpose.msra.mxu0 0
        %1956 = vmatprep.subr.bf16.mxu0 0
        %1957 = vmatpush1.bf16.xpose.msra.mxu0 0
        %1958 = vmatprep.subr.bf16.mxu0 0
        %1959 = vmatpush1.bf16.xpose.msra.mxu0 0
        %1960 = vmatprep.subr.bf16.mxu0 0
        %1961 = vmatpush1.bf16.xpose.msra.mxu0 0
        %1962 = vmatprep.subr.bf16.mxu0 0
        %1963 = vmatpush1.bf16.xpose.msra.mxu0 0
        %1964 = vmatprep.subr.bf16.mxu0 0
        %1965 = vmatpush1.bf16.xpose.msra.mxu0 0
        %1966 = vmatprep.subr.bf16.mxu0 0
        %1967 = vmatpush1.bf16.xpose.msra.mxu0 0
        %1968 = vmatprep.subr.bf16.mxu0 0
        %1969 = vmatpush1.bf16.xpose.msra.mxu0 0
        %1970 = vmatprep.subr.bf16.mxu0 0
        %1971 = vmatpush1.bf16.xpose.msra.mxu0 0
        %1972 = vmatprep.mubr.bf16.mxu0 0
        %1973 = vmatmul.mubr.bf16.gmra.mrb[0].mxu0 %v1935
        %v1974 = vpop.f32.mrb[0].mxu0
        %v1975 = vadd.f32 0.0, %v1974
        %v1976 = vpop.f32.mrb[0].mxu0
        %v1977 = vpop.f32.mrb[0].mxu0
        %v1978 = vadd.f32 0.0, %v1977
        %v1979 = vpop.f32.mrb[0].mxu0
        %1980 = vdwg.mxu0
        %v1981 = vmul.f32 %v1975, 0.17677669
        %v1982 = vmul.f32 %v1978, 0.17677669
        %v1983 = vadd.f32 %v1981, %v1606
        %v1984 = vadd.f32 %v1982, %v1606
        %v1985 = vsel %vm1073, %v1983, -inf
        %1986 = vmax.xlane.f32.xlu0 %v1985
        %v1987 = vpop.xlane.xlu0 %1986
        %v1988 = vsel %vm1073, %v1984, -inf
        %1989 = vmax.xlane.f32.xlu0 %v1988
        %v1990 = vpop.xlane.xlu0 %1989
        %v1991 = vsub.f32 %v1983, %v1987
        %v1992 = vsub.f32 %v1984, %v1990
        %v1993 = vmul.f32 %v1991, 1.442695
        %v1994 = vpow.pop %v1993
        %v1995 = vmul.f32 %v1992, 1.442695
        %v1996 = vpow.pop %v1995
        %v1997 = vsel %vm1073, %v1994, 0.0
        %1998 = vadd.xlane.f32.xlu0 %v1997
        %v1999 = vpop.xlane.xlu0 %1998
        %v2000 = vsel %vm1073, %v1996, 0.0
        %2001 = vadd.xlane.f32.xlu0 %v2000
        %v2002 = vpop.xlane.xlu0 %2001
        %v2003 = vrcp.pop %v1999
        %v2004 = vmul.f32 %v1994, %v2003
        %v2005 = vrcp.pop %v2002
        %v2006 = vmul.f32 %v1996, %v2005
        %v2007 = vpack.c.bf16 %v2006, %v2004
        %2008 = vrot.lane.b32.xlu0 %v1013, 32
        %v2009 = vpop.permute.xlu0 %2008
        %v2012 = vsel %vm1073, %v2007, 0
        %2014 = vmatprep.subr.bf16.mxu0 0
        %2015 = vmatpush1.bf16.msra.mxu0 %v2009
        %2016 = vmatprep.subr.bf16.mxu0 0
        %2017 = vmatpush1.bf16.msra.mxu0 0
        %2018 = vmatprep.subr.bf16.mxu0 0
        %2019 = vmatpush1.bf16.msra.mxu0 0
        %2020 = vmatprep.subr.bf16.mxu0 0
        %2021 = vmatpush1.bf16.msra.mxu0 0
        %2022 = vmatprep.subr.bf16.mxu0 0
        %2023 = vmatpush1.bf16.msra.mxu0 0
        %2024 = vmatprep.subr.bf16.mxu0 0
        %2025 = vmatpush1.bf16.msra.mxu0 0
        %2026 = vmatprep.subr.bf16.mxu0 0
        %2027 = vmatpush1.bf16.msra.mxu0 0
        %2028 = vmatprep.subr.bf16.mxu0 0
        %2029 = vmatpush1.bf16.msra.mxu0 0
        %2030 = vmatprep.subr.bf16.mxu0 0
        %2031 = vmatpush1.bf16.msra.mxu0 0
        %2032 = vmatprep.subr.bf16.mxu0 0
        %2033 = vmatpush1.bf16.msra.mxu0 0
        %2034 = vmatprep.subr.bf16.mxu0 0
        %2035 = vmatpush1.bf16.msra.mxu0 0
        %2036 = vmatprep.subr.bf16.mxu0 0
        %2037 = vmatpush1.bf16.msra.mxu0 0
        %2038 = vmatprep.subr.bf16.mxu0 0
        %2039 = vmatpush1.bf16.msra.mxu0 0
        %2040 = vmatprep.subr.bf16.mxu0 0
        %2041 = vmatpush1.bf16.msra.mxu0 0
        %2042 = vmatprep.subr.bf16.mxu0 0
        %2043 = vmatpush1.bf16.msra.mxu0 0
        %2044 = vmatprep.subr.bf16.mxu0 0
        %2045 = vmatpush1.bf16.msra.mxu0 0
        %2046 = vmatprep.mubr.bf16.mxu0 0
        %2047 = vmatmul.mubr.bf16.gmra.mrb[0].mxu0 %v2012
        %v2048 = vpop.f32.mrb[0].mxu0
        %v2049 = vadd.f32 0.0, %v2048
        %v2050 = vpop.f32.mrb[0].mxu0
        %v2051 = vpop.f32.mrb[0].mxu0
        %v2052 = vadd.f32 0.0, %v2051
        %v2053 = vpop.f32.mrb[0].mxu0
        %2054 = vdwg.mxu0
        %2057 = vrot.lane.b32.xlu0 %v1799, 32
        %v2058 = vpop.permute.xlu0 %2057
        %2059 = vrot.lane.b32.xlu0 %v1802, 32
        %v2060 = vpop.permute.xlu0 %2059
        %2065 = vrot.lane.b32.xlu0 %v1924, 64
        %v2066 = vpop.permute.xlu0 %2065
        %2067 = vrot.lane.b32.xlu0 %v1927, 64
        %v2068 = vpop.permute.xlu0 %2067
        %2073 = vrot.lane.b32.xlu0 %v2049, 96
        %v2074 = vpop.permute.xlu0 %2073
        %2075 = vrot.lane.b32.xlu0 %v2052, 96
        %v2076 = vpop.permute.xlu0 %2075
        %v2079 = vsel %vm1015, %v1671, %v2058
        %v2080 = vsel %vm1015, %v1674, %v2060
        %v2081 = vsel %vm1545, %v2079, %v2066
        %v2082 = vsel %vm1545, %v2080, %v2068
        %v2083 = vsel %vm1548, %v2081, %v2074
        %v2084 = vsel %vm1548, %v2082, %v2076
        %v2085 = vpack.c.bf16 %v1550, %v1549
        %v2086 = vpack.c.bf16 %v2084, %v2083
        %v2087 = vld [vmem:[%s621] sm:$0xf]
        %v2088 = vld [vmem:[%s621 + $0x4] sm:$0xf]
        %v2089 = vld [vmem:[%s621 + $0x8] sm:$0xf]
        %v2090 = vld [vmem:[%s621 + $0xc] sm:$0xf]
        %v2091 = vld [vmem:[%s621 + $0x10] sm:$0xf]
        %v2092 = vld [vmem:[%s621 + $0x14] sm:$0xf]
        %v2093 = vld [vmem:[%s621 + $0x18] sm:$0xf]
        %v2094 = vld [vmem:[%s621 + $0x1c] sm:$0xf]
        %v2095 = vld [vmem:[%s621 + $0x20] sm:$0xf]
        %v2096 = vld [vmem:[%s621 + $0x24] sm:$0xf]
        %v2097 = vld [vmem:[%s621 + $0x28] sm:$0xf]
        %v2098 = vld [vmem:[%s621 + $0x2c] sm:$0xf]
        %v2099 = vld [vmem:[%s621 + $0x30] sm:$0xf]
        %v2100 = vld [vmem:[%s621 + $0x34] sm:$0xf]
        %v2101 = vld [vmem:[%s621 + $0x38] sm:$0xf]
        %v2102 = vld [vmem:[%s621 + $0x3c] sm:$0xf]
        %v2103 = vld [vmem:[%s624] sm:$0x1]
        %v2105 = vlaneseq
        %v2106 = vshrl.u32 %v2105, 7
        %v2107 = vsub.s32 0, %v2106
        %v2108 = vrot.slane %v2103, %v2107
        %v2126 = vunpack.c.l.b16 %v2087
        %v2127 = vunpack.c.l.b16 %v2088
        %v2128 = vunpack.c.l.b16 %v2089
        %v2129 = vunpack.c.l.b16 %v2090
        %v2130 = vunpack.c.l.b16 %v2091
        %v2131 = vunpack.c.l.b16 %v2092
        %v2132 = vunpack.c.l.b16 %v2093
        %v2133 = vunpack.c.l.b16 %v2094
        %v2134 = vunpack.c.l.b16 %v2095
        %v2135 = vunpack.c.l.b16 %v2096
        %v2136 = vunpack.c.l.b16 %v2097
        %v2137 = vunpack.c.l.b16 %v2098
        %v2138 = vunpack.c.l.b16 %v2099
        %v2139 = vunpack.c.l.b16 %v2100
        %v2140 = vunpack.c.l.b16 %v2101
        %v2141 = vunpack.c.l.b16 %v2102
        %v2142 = vpack.c.b16 %v2127, %v2126
        %v2143 = vpack.c.b16 %v2129, %v2128
        %v2144 = vpack.c.b16 %v2131, %v2130
        %v2145 = vpack.c.b16 %v2133, %v2132
        %v2146 = vpack.c.b16 %v2135, %v2134
        %v2147 = vpack.c.b16 %v2137, %v2136
        %v2148 = vpack.c.b16 %v2139, %v2138
        %v2149 = vpack.c.b16 %v2141, %v2140
        %2158 = vmatprep.subr.bf16.mxu0 0
        %2159 = vmatpush1.bf16.msra.mxu0 %v2142
        %2160 = vmatprep.subr.bf16.mxu0 0
        %2161 = vmatpush1.bf16.msra.mxu0 %v2143
        %2162 = vmatprep.subr.bf16.mxu0 0
        %2163 = vmatpush1.bf16.msra.mxu0 %v2144
        %2164 = vmatprep.subr.bf16.mxu0 0
        %2165 = vmatpush1.bf16.msra.mxu0 %v2145
        %2166 = vmatprep.subr.bf16.mxu0 0
        %2167 = vmatpush1.bf16.msra.mxu0 %v2146
        %2168 = vmatprep.subr.bf16.mxu0 0
        %2169 = vmatpush1.bf16.msra.mxu0 %v2147
        %2170 = vmatprep.subr.bf16.mxu0 0
        %2171 = vmatpush1.bf16.msra.mxu0 %v2148
        %2172 = vmatprep.subr.bf16.mxu0 0
        %2173 = vmatpush1.bf16.msra.mxu0 %v2149
        %2174 = vmatprep.subr.bf16.mxu0 0
        %2175 = vmatpush1.bf16.msra.mxu0 0
        %2176 = vmatprep.subr.bf16.mxu0 0
        %2177 = vmatpush1.bf16.msra.mxu0 0
        %2178 = vmatprep.subr.bf16.mxu0 0
        %2179 = vmatpush1.bf16.msra.mxu0 0
        %2180 = vmatprep.subr.bf16.mxu0 0
        %2181 = vmatpush1.bf16.msra.mxu0 0
        %2182 = vmatprep.subr.bf16.mxu0 0
        %2183 = vmatpush1.bf16.msra.mxu0 0
        %2184 = vmatprep.subr.bf16.mxu0 0
        %2185 = vmatpush1.bf16.msra.mxu0 0
        %2186 = vmatprep.subr.bf16.mxu0 0
        %2187 = vmatpush1.bf16.msra.mxu0 0
        %2188 = vmatprep.subr.bf16.mxu0 0
        %2189 = vmatpush1.bf16.msra.mxu0 0
        %2190 = vmatprep.mubr.bf16.mxu0 0
        %2191 = vmatmul.mubr.bf16.gmra.mrb[0].mxu0 %v2085
        %v2192 = vpop.f32.mrb[0].mxu0
        %v2193 = vadd.f32 %v2108, %v2192
        %v2194 = vpop.f32.mrb[0].mxu0
        %v2195 = vpop.f32.mrb[0].mxu0
        %v2196 = vadd.f32 %v2108, %v2195
        %v2197 = vpop.f32.mrb[0].mxu0
        %2198 = vmatprep.mubr.bf16.mxu0 0
        %2199 = vmatmul.mubr.bf16.gmra.mrb[0].mxu0 %v2086
        %v2200 = vpop.f32.mrb[0].mxu0
        %v2201 = vadd.f32 %v2108, %v2200
        %v2202 = vpop.f32.mrb[0].mxu0
        %v2203 = vpop.f32.mrb[0].mxu0
        %v2204 = vadd.f32 %v2108, %v2203
        %v2205 = vpop.f32.mrb[0].mxu0
        %2206 = vdwg.mxu0
        %v2207 = vadd.f32 %v2193, %v723
        %v2208 = vadd.f32 %v2196, %v724
        %v2209 = vadd.f32 %v2201, %v725
        %v2210 = vadd.f32 %v2204, %v726
        %v2211 = vld [vmem:[%s627] sm:$0x1]
        %v2212 = vld [vmem:[%s630] sm:$0x1]
        %2213 = vadd.xlane.f32.xlu0 %v2207
        %v2214 = vpop.xlane.xlu0 %2213
        %2215 = vadd.xlane.f32.xlu0 %v2208
        %v2216 = vpop.xlane.xlu0 %2215
        %2217 = vadd.xlane.f32.xlu0 %v2209
        %v2218 = vpop.xlane.xlu0 %2217
        %2219 = vadd.xlane.f32.xlu0 %v2210
        %v2220 = vpop.xlane.xlu0 %2219
        %v2221 = vrcp.pop 128.0
        %v2222 = vmul.f32 %v2214, %v2221
        %v2223 = vmul.f32 %v2216, %v2221
        %v2224 = vmul.f32 %v2218, %v2221
        %v2225 = vmul.f32 %v2220, %v2221
        %v2226 = vsub.f32 %v2207, %v2222
        %v2227 = vsub.f32 %v2208, %v2223
        %v2228 = vsub.f32 %v2209, %v2224
        %v2229 = vsub.f32 %v2210, %v2225
        %v2230 = vmul.f32 %v2226, %v2226
        %v2231 = vmul.f32 %v2227, %v2227
        %v2232 = vmul.f32 %v2228, %v2228
        %v2233 = vmul.f32 %v2229, %v2229
        %2234 = vadd.xlane.f32.xlu0 %v2230
        %v2235 = vpop.xlane.xlu0 %2234
        %2236 = vadd.xlane.f32.xlu0 %v2231
        %v2237 = vpop.xlane.xlu0 %2236
        %2238 = vadd.xlane.f32.xlu0 %v2232
        %v2239 = vpop.xlane.xlu0 %2238
        %2240 = vadd.xlane.f32.xlu0 %v2233
        %v2241 = vpop.xlane.xlu0 %2240
        %v2242 = vmul.f32 %v2235, %v2221
        %v2243 = vmul.f32 %v2237, %v2221
        %v2244 = vmul.f32 %v2239, %v2221
        %v2245 = vmul.f32 %v2241, %v2221
        %v2246 = vadd.f32 %v2242, 1e-05
        %v2247 = vadd.f32 %v2243, 1e-05
        %v2248 = vadd.f32 %v2244, 1e-05
        %v2249 = vadd.f32 %v2245, 1e-05
        %v2250 = vrsqrt.pop %v2246
        %v2251 = vrsqrt.pop %v2247
        %v2252 = vrsqrt.pop %v2248
        %v2253 = vrsqrt.pop %v2249
        %v2254 = vmul.f32 %v2226, %v2250
        %v2255 = vmul.f32 %v2227, %v2251
        %v2256 = vmul.f32 %v2228, %v2252
        %v2257 = vmul.f32 %v2229, %v2253
        %v2259 = vlaneseq
        %v2260 = vshrl.u32 %v2259, 7
        %v2261 = vsub.s32 0, %v2260
        %v2262 = vrot.slane %v2211, %v2261
        %v2264 = vmul.f32 %v2254, %v2262
        %v2265 = vmul.f32 %v2255, %v2262
        %v2266 = vmul.f32 %v2256, %v2262
        %v2267 = vmul.f32 %v2257, %v2262
        %v2269 = vlaneseq
        %v2270 = vshrl.u32 %v2269, 7
        %v2271 = vsub.s32 0, %v2270
        %v2272 = vrot.slane %v2212, %v2271
        %v2274 = vadd.f32 %v2264, %v2272
        %v2275 = vadd.f32 %v2265, %v2272
        %v2276 = vadd.f32 %v2266, %v2272
        %v2277 = vadd.f32 %v2267, %v2272
        %v2278 = vpack.c.bf16 %v2275, %v2274
        %v2279 = vpack.c.bf16 %v2277, %v2276
        %v2280 = vld [vmem:[%s635] sm:$0xff]
        %v2281 = vld [vmem:[%s635 + $0x8] sm:$0xff]
        %v2282 = vld [vmem:[%s635 + $0x10] sm:$0xff]
        %v2283 = vld [vmem:[%s635 + $0x18] sm:$0xff]
        %v2284 = vld [vmem:[%s635 + $0x20] sm:$0xff]
        %v2285 = vld [vmem:[%s635 + $0x28] sm:$0xff]
        %v2286 = vld [vmem:[%s635 + $0x30] sm:$0xff]
        %v2287 = vld [vmem:[%s635 + $0x38] sm:$0xff]
        %v2288 = vld [vmem:[%s635 + $0x40] sm:$0xff]
        %v2289 = vld [vmem:[%s635 + $0x48] sm:$0xff]
        %v2290 = vld [vmem:[%s635 + $0x50] sm:$0xff]
        %v2291 = vld [vmem:[%s635 + $0x58] sm:$0xff]
        %v2292 = vld [vmem:[%s635 + $0x60] sm:$0xff]
        %v2293 = vld [vmem:[%s635 + $0x68] sm:$0xff]
        %v2294 = vld [vmem:[%s635 + $0x70] sm:$0xff]
        %v2295 = vld [vmem:[%s635 + $0x78] sm:$0xff]
        %v2296 = vld [vmem:[%s635 + $0x80] sm:$0xff]
        %v2297 = vld [vmem:[%s635 + $0x88] sm:$0xff]
        %v2298 = vld [vmem:[%s635 + $0x90] sm:$0xff]
        %v2299 = vld [vmem:[%s635 + $0x98] sm:$0xff]
        %v2300 = vld [vmem:[%s635 + $0xa0] sm:$0xff]
        %v2301 = vld [vmem:[%s635 + $0xa8] sm:$0xff]
        %v2302 = vld [vmem:[%s635 + $0xb0] sm:$0xff]
        %v2303 = vld [vmem:[%s635 + $0xb8] sm:$0xff]
        %v2304 = vld [vmem:[%s635 + $0xc0] sm:$0xff]
        %v2305 = vld [vmem:[%s635 + $0xc8] sm:$0xff]
        %v2306 = vld [vmem:[%s635 + $0xd0] sm:$0xff]
        %v2307 = vld [vmem:[%s635 + $0xd8] sm:$0xff]
        %v2308 = vld [vmem:[%s635 + $0xe0] sm:$0xff]
        %v2309 = vld [vmem:[%s635 + $0xe8] sm:$0xff]
        %v2310 = vld [vmem:[%s635 + $0xf0] sm:$0xff]
        %v2311 = vld [vmem:[%s635 + $0xf8] sm:$0xff]
        %v2312 = vld [vmem:[%s639] sm:$0xf]
        %v2314 = vlaneseq
        %v2315 = vshrl.u32 %v2314, 7
        %v2316 = vsub.s32 0, %v2315
        %v2317 = vrot.slane %v2312, %v2316
        %v2318 = vlaneseq
        %v2319 = vshrl.u32 %v2318, 7
        %v2320 = vsub.s32 1, %v2319
        %v2321 = vrot.slane %v2312, %v2320
        %v2322 = vlaneseq
        %v2323 = vshrl.u32 %v2322, 7
        %v2324 = vsub.s32 2, %v2323
        %v2325 = vrot.slane %v2312, %v2324
        %v2326 = vlaneseq
        %v2327 = vshrl.u32 %v2326, 7
        %v2328 = vsub.s32 3, %v2327
        %v2329 = vrot.slane %v2312, %v2328
        %v2366 = vunpack.c.l.b16 %v2280
        %v2367 = vunpack.c.h.b16 %v2280
        %v2368 = vunpack.c.l.b16 %v2281
        %v2369 = vunpack.c.h.b16 %v2281
        %v2370 = vunpack.c.l.b16 %v2282
        %v2371 = vunpack.c.h.b16 %v2282
        %v2372 = vunpack.c.l.b16 %v2283
        %v2373 = vunpack.c.h.b16 %v2283
        %v2374 = vunpack.c.l.b16 %v2284
        %v2375 = vunpack.c.h.b16 %v2284
        %v2376 = vunpack.c.l.b16 %v2285
        %v2377 = vunpack.c.h.b16 %v2285
        %v2378 = vunpack.c.l.b16 %v2286
        %v2379 = vunpack.c.h.b16 %v2286
        %v2380 = vunpack.c.l.b16 %v2287
        %v2381 = vunpack.c.h.b16 %v2287
        %v2382 = vunpack.c.l.b16 %v2288
        %v2383 = vunpack.c.h.b16 %v2288
        %v2384 = vunpack.c.l.b16 %v2289
        %v2385 = vunpack.c.h.b16 %v2289
        %v2386 = vunpack.c.l.b16 %v2290
        %v2387 = vunpack.c.h.b16 %v2290
        %v2388 = vunpack.c.l.b16 %v2291
        %v2389 = vunpack.c.h.b16 %v2291
        %v2390 = vunpack.c.l.b16 %v2292
        %v2391 = vunpack.c.h.b16 %v2292
        %v2392 = vunpack.c.l.b16 %v2293
        %v2393 = vunpack.c.h.b16 %v2293
        %v2394 = vunpack.c.l.b16 %v2294
        %v2395 = vunpack.c.h.b16 %v2294
        %v2396 = vunpack.c.l.b16 %v2295
        %v2397 = vunpack.c.h.b16 %v2295
        %v2398 = vunpack.c.l.b16 %v2296
        %v2399 = vunpack.c.h.b16 %v2296
        %v2400 = vunpack.c.l.b16 %v2297
        %v2401 = vunpack.c.h.b16 %v2297
        %v2402 = vunpack.c.l.b16 %v2298
        %v2403 = vunpack.c.h.b16 %v2298
        %v2404 = vunpack.c.l.b16 %v2299
        %v2405 = vunpack.c.h.b16 %v2299
        %v2406 = vunpack.c.l.b16 %v2300
        %v2407 = vunpack.c.h.b16 %v2300
        %v2408 = vunpack.c.l.b16 %v2301
        %v2409 = vunpack.c.h.b16 %v2301
        %v2410 = vunpack.c.l.b16 %v2302
        %v2411 = vunpack.c.h.b16 %v2302
        %v2412 = vunpack.c.l.b16 %v2303
        %v2413 = vunpack.c.h.b16 %v2303
        %v2414 = vunpack.c.l.b16 %v2304
        %v2415 = vunpack.c.h.b16 %v2304
        %v2416 = vunpack.c.l.b16 %v2305
        %v2417 = vunpack.c.h.b16 %v2305
        %v2418 = vunpack.c.l.b16 %v2306
        %v2419 = vunpack.c.h.b16 %v2306
        %v2420 = vunpack.c.l.b16 %v2307
        %v2421 = vunpack.c.h.b16 %v2307
        %v2422 = vunpack.c.l.b16 %v2308
        %v2423 = vunpack.c.h.b16 %v2308
        %v2424 = vunpack.c.l.b16 %v2309
        %v2425 = vunpack.c.h.b16 %v2309
        %v2426 = vunpack.c.l.b16 %v2310
        %v2427 = vunpack.c.h.b16 %v2310
        %v2428 = vunpack.c.l.b16 %v2311
        %v2429 = vunpack.c.h.b16 %v2311
        %v2430 = vpack.c.b16 %v2370, %v2366
        %v2431 = vpack.c.b16 %v2371, %v2367
        %v2432 = vpack.c.b16 %v2372, %v2368
        %v2433 = vpack.c.b16 %v2373, %v2369
        %v2434 = vpack.c.b16 %v2378, %v2374
        %v2435 = vpack.c.b16 %v2379, %v2375
        %v2436 = vpack.c.b16 %v2380, %v2376
        %v2437 = vpack.c.b16 %v2381, %v2377
        %v2438 = vpack.c.b16 %v2386, %v2382
        %v2439 = vpack.c.b16 %v2387, %v2383
        %v2440 = vpack.c.b16 %v2388, %v2384
        %v2441 = vpack.c.b16 %v2389, %v2385
        %v2442 = vpack.c.b16 %v2394, %v2390
        %v2443 = vpack.c.b16 %v2395, %v2391
        %v2444 = vpack.c.b16 %v2396, %v2392
        %v2445 = vpack.c.b16 %v2397, %v2393
        %v2446 = vpack.c.b16 %v2402, %v2398
        %v2447 = vpack.c.b16 %v2403, %v2399
        %v2448 = vpack.c.b16 %v2404, %v2400
        %v2449 = vpack.c.b16 %v2405, %v2401
        %v2450 = vpack.c.b16 %v2410, %v2406
        %v2451 = vpack.c.b16 %v2411, %v2407
        %v2452 = vpack.c.b16 %v2412, %v2408
        %v2453 = vpack.c.b16 %v2413, %v2409
        %v2454 = vpack.c.b16 %v2418, %v2414
        %v2455 = vpack.c.b16 %v2419, %v2415
        %v2456 = vpack.c.b16 %v2420, %v2416
        %v2457 = vpack.c.b16 %v2421, %v2417
        %v2458 = vpack.c.b16 %v2426, %v2422
        %v2459 = vpack.c.b16 %v2427, %v2423
        %v2460 = vpack.c.b16 %v2428, %v2424
        %v2461 = vpack.c.b16 %v2429, %v2425
        %2494 = vmatprep.subr.bf16.mxu0 %v2431
        %2495 = vmatpush1.bf16.msra.mxu0 %v2430
        %2496 = vmatprep.subr.bf16.mxu0 %v2435
        %2497 = vmatpush1.bf16.msra.mxu0 %v2434
        %2498 = vmatprep.subr.bf16.mxu0 %v2439
        %2499 = vmatpush1.bf16.msra.mxu0 %v2438
        %2500 = vmatprep.subr.bf16.mxu0 %v2443
        %2501 = vmatpush1.bf16.msra.mxu0 %v2442
        %2502 = vmatprep.subr.bf16.mxu0 %v2447
        %2503 = vmatpush1.bf16.msra.mxu0 %v2446
        %2504 = vmatprep.subr.bf16.mxu0 %v2451
        %2505 = vmatpush1.bf16.msra.mxu0 %v2450
        %2506 = vmatprep.subr.bf16.mxu0 %v2455
        %2507 = vmatpush1.bf16.msra.mxu0 %v2454
        %2508 = vmatprep.subr.bf16.mxu0 %v2459
        %2509 = vmatpush1.bf16.msra.mxu0 %v2458
        %2510 = vmatprep.subr.bf16.mxu0 0
        %2511 = vmatpush1.bf16.msra.mxu0 0
        %2512 = vmatprep.subr.bf16.mxu0 0
        %2513 = vmatpush1.bf16.msra.mxu0 0
        %2514 = vmatprep.subr.bf16.mxu0 0
        %2515 = vmatpush1.bf16.msra.mxu0 0
        %2516 = vmatprep.subr.bf16.mxu0 0
        %2517 = vmatpush1.bf16.msra.mxu0 0
        %2518 = vmatprep.subr.bf16.mxu0 0
        %2519 = vmatpush1.bf16.msra.mxu0 0
        %2520 = vmatprep.subr.bf16.mxu0 0
        %2521 = vmatpush1.bf16.msra.mxu0 0
        %2522 = vmatprep.subr.bf16.mxu0 0
        %2523 = vmatpush1.bf16.msra.mxu0 0
        %2524 = vmatprep.subr.bf16.mxu0 0
        %2525 = vmatpush1.bf16.msra.mxu0 0
        %2526 = vmatprep.mubr.bf16.mxu0 0
        %2527 = vmatmul.mubr.bf16.gmra.mrb[0].mxu0 %v2278
        %v2528 = vpop.f32.mrb[0].mxu0
        %v2529 = vadd.f32 %v2317, %v2528
        %v2530 = vpop.f32.mrb[0].mxu0
        %v2531 = vadd.f32 %v2321, %v2530
        %v2532 = vpop.f32.mrb[0].mxu0
        %v2533 = vadd.f32 %v2317, %v2532
        %v2534 = vpop.f32.mrb[0].mxu0
        %v2535 = vadd.f32 %v2321, %v2534
        %2536 = vmatprep.mubr.bf16.mxu0 0
        %2537 = vmatmul.mubr.bf16.gmra.mrb[0].mxu0 %v2279
        %v2538 = vpop.f32.mrb[0].mxu0
        %v2539 = vadd.f32 %v2317, %v2538
        %v2540 = vpop.f32.mrb[0].mxu0
        %v2541 = vadd.f32 %v2321, %v2540
        %v2542 = vpop.f32.mrb[0].mxu0
        %v2543 = vadd.f32 %v2317, %v2542
        %v2544 = vpop.f32.mrb[0].mxu0
        %v2545 = vadd.f32 %v2321, %v2544
        %2546 = vdwg.mxu0
        %2547 = vmatprep.subr.bf16.mxu0 %v2433
        %2548 = vmatpush1.bf16.msra.mxu0 %v2432
        %2549 = vmatprep.subr.bf16.mxu0 %v2437
        %2550 = vmatpush1.bf16.msra.mxu0 %v2436
        %2551 = vmatprep.subr.bf16.mxu0 %v2441
        %2552 = vmatpush1.bf16.msra.mxu0 %v2440
        %2553 = vmatprep.subr.bf16.mxu0 %v2445
        %2554 = vmatpush1.bf16.msra.mxu0 %v2444
        %2555 = vmatprep.subr.bf16.mxu0 %v2449
        %2556 = vmatpush1.bf16.msra.mxu0 %v2448
        %2557 = vmatprep.subr.bf16.mxu0 %v2453
        %2558 = vmatpush1.bf16.msra.mxu0 %v2452
        %2559 = vmatprep.subr.bf16.mxu0 %v2457
        %2560 = vmatpush1.bf16.msra.mxu0 %v2456
        %2561 = vmatprep.subr.bf16.mxu0 %v2461
        %2562 = vmatpush1.bf16.msra.mxu0 %v2460
        %2563 = vmatprep.subr.bf16.mxu0 0
        %2564 = vmatpush1.bf16.msra.mxu0 0
        %2565 = vmatprep.subr.bf16.mxu0 0
        %2566 = vmatpush1.bf16.msra.mxu0 0
        %2567 = vmatprep.subr.bf16.mxu0 0
        %2568 = vmatpush1.bf16.msra.mxu0 0
        %2569 = vmatprep.subr.bf16.mxu0 0
        %2570 = vmatpush1.bf16.msra.mxu0 0
        %2571 = vmatprep.subr.bf16.mxu0 0
        %2572 = vmatpush1.bf16.msra.mxu0 0
        %2573 = vmatprep.subr.bf16.mxu0 0
        %2574 = vmatpush1.bf16.msra.mxu0 0
        %2575 = vmatprep.subr.bf16.mxu0 0
        %2576 = vmatpush1.bf16.msra.mxu0 0
        %2577 = vmatprep.subr.bf16.mxu0 0
        %2578 = vmatpush1.bf16.msra.mxu0 0
        %2579 = vmatprep.mubr.bf16.mxu0 0
        %2580 = vmatmul.mubr.bf16.gmra.mrb[0].mxu0 %v2278
        %v2581 = vpop.f32.mrb[0].mxu0
        %v2582 = vadd.f32 %v2325, %v2581
        %v2583 = vpop.f32.mrb[0].mxu0
        %v2584 = vadd.f32 %v2329, %v2583
        %v2585 = vpop.f32.mrb[0].mxu0
        %v2586 = vadd.f32 %v2325, %v2585
        %v2587 = vpop.f32.mrb[0].mxu0
        %v2588 = vadd.f32 %v2329, %v2587
        %2589 = vmatprep.mubr.bf16.mxu0 0
        %2590 = vmatmul.mubr.bf16.gmra.mrb[0].mxu0 %v2279
        %v2591 = vpop.f32.mrb[0].mxu0
        %v2592 = vadd.f32 %v2325, %v2591
        %v2593 = vpop.f32.mrb[0].mxu0
        %v2594 = vadd.f32 %v2329, %v2593
        %v2595 = vpop.f32.mrb[0].mxu0
        %v2596 = vadd.f32 %v2325, %v2595
        %v2597 = vpop.f32.mrb[0].mxu0
        %v2598 = vadd.f32 %v2329, %v2597
        %2599 = vdwg.mxu0
        %v2600 = vmul.f32 %v2529, 0.5
        %v2601 = vmul.f32 %v2531, 0.5
        %v2602 = vmul.f32 %v2582, 0.5
        %v2603 = vmul.f32 %v2584, 0.5
        %v2604 = vmul.f32 %v2533, 0.5
        %v2605 = vmul.f32 %v2535, 0.5
        %v2606 = vmul.f32 %v2586, 0.5
        %v2607 = vmul.f32 %v2588, 0.5
        %v2608 = vmul.f32 %v2539, 0.5
        %v2609 = vmul.f32 %v2541, 0.5
        %v2610 = vmul.f32 %v2592, 0.5
        %v2611 = vmul.f32 %v2594, 0.5
        %v2612 = vmul.f32 %v2543, 0.5
        %v2613 = vmul.f32 %v2545, 0.5
        %v2614 = vmul.f32 %v2596, 0.5
        %v2615 = vmul.f32 %v2598, 0.5
        %v2616 = vrcp.pop 1.4142135
        %v2617 = vmul.f32 %v2529, %v2616
        %v2618 = vmul.f32 %v2531, %v2616
        %v2619 = vmul.f32 %v2582, %v2616
        %v2620 = vmul.f32 %v2584, %v2616
        %v2621 = vmul.f32 %v2533, %v2616
        %v2622 = vmul.f32 %v2535, %v2616
        %v2623 = vmul.f32 %v2586, %v2616
        %v2624 = vmul.f32 %v2588, %v2616
        %v2625 = vmul.f32 %v2539, %v2616
        %v2626 = vmul.f32 %v2541, %v2616
        %v2627 = vmul.f32 %v2592, %v2616
        %v2628 = vmul.f32 %v2594, %v2616
        %v2629 = vmul.f32 %v2543, %v2616
        %v2630 = vmul.f32 %v2545, %v2616
        %v2631 = vmul.f32 %v2596, %v2616
        %v2632 = vmul.f32 %v2598, %v2616
        %v2633 = verf.f32.pop %v2617
        %v2634 = verf.f32.pop %v2618
        %v2635 = verf.f32.pop %v2619
        %v2636 = verf.f32.pop %v2620
        %v2637 = verf.f32.pop %v2621
        %v2638 = verf.f32.pop %v2622
        %v2639 = verf.f32.pop %v2623
        %v2640 = verf.f32.pop %v2624
        %v2641 = verf.f32.pop %v2625
        %v2642 = verf.f32.pop %v2626
        %v2643 = verf.f32.pop %v2627
        %v2644 = verf.f32.pop %v2628
        %v2645 = verf.f32.pop %v2629
        %v2646 = verf.f32.pop %v2630
        %v2647 = verf.f32.pop %v2631
        %v2648 = verf.f32.pop %v2632
        %v2649 = vadd.f32 %v2633, 1.0
        %v2650 = vadd.f32 %v2634, 1.0
        %v2651 = vadd.f32 %v2635, 1.0
        %v2652 = vadd.f32 %v2636, 1.0
        %v2653 = vadd.f32 %v2637, 1.0
        %v2654 = vadd.f32 %v2638, 1.0
        %v2655 = vadd.f32 %v2639, 1.0
        %v2656 = vadd.f32 %v2640, 1.0
        %v2657 = vadd.f32 %v2641, 1.0
        %v2658 = vadd.f32 %v2642, 1.0
        %v2659 = vadd.f32 %v2643, 1.0
        %v2660 = vadd.f32 %v2644, 1.0
        %v2661 = vadd.f32 %v2645, 1.0
        %v2662 = vadd.f32 %v2646, 1.0
        %v2663 = vadd.f32 %v2647, 1.0
        %v2664 = vadd.f32 %v2648, 1.0
        %v2665 = vmul.f32 %v2600, %v2649
        %v2666 = vmul.f32 %v2601, %v2650
        %v2667 = vmul.f32 %v2602, %v2651
        %v2668 = vmul.f32 %v2603, %v2652
        %v2669 = vmul.f32 %v2604, %v2653
        %v2670 = vmul.f32 %v2605, %v2654
        %v2671 = vmul.f32 %v2606, %v2655
        %v2672 = vmul.f32 %v2607, %v2656
        %v2673 = vmul.f32 %v2608, %v2657
        %v2674 = vmul.f32 %v2609, %v2658
        %v2675 = vmul.f32 %v2610, %v2659
        %v2676 = vmul.f32 %v2611, %v2660
        %v2677 = vmul.f32 %v2612, %v2661
        %v2678 = vmul.f32 %v2613, %v2662
        %v2679 = vmul.f32 %v2614, %v2663
        %v2680 = vmul.f32 %v2615, %v2664
        %v2681 = vpack.c.bf16 %v2669, %v2665
        %v2682 = vpack.c.bf16 %v2670, %v2666
        %v2683 = vpack.c.bf16 %v2671, %v2667
        %v2684 = vpack.c.bf16 %v2672, %v2668
        %v2685 = vpack.c.bf16 %v2677, %v2673
        %v2686 = vpack.c.bf16 %v2678, %v2674
        %v2687 = vpack.c.bf16 %v2679, %v2675
        %v2688 = vpack.c.bf16 %v2680, %v2676
        %v2689 = vld [vmem:[%s538] sm:$0xf]
        %v2690 = vld [vmem:[%s538 + $0x4] sm:$0xf]
        %v2691 = vld [vmem:[%s538 + $0x8] sm:$0xf]
        %v2692 = vld [vmem:[%s538 + $0xc] sm:$0xf]
        %v2693 = vld [vmem:[%s538 + $0x10] sm:$0xf]
        %v2694 = vld [vmem:[%s538 + $0x14] sm:$0xf]
        %v2695 = vld [vmem:[%s538 + $0x18] sm:$0xf]
        %v2696 = vld [vmem:[%s538 + $0x1c] sm:$0xf]
        %v2697 = vld [vmem:[%s538 + $0x20] sm:$0xf]
        %v2698 = vld [vmem:[%s538 + $0x24] sm:$0xf]
        %v2699 = vld [vmem:[%s538 + $0x28] sm:$0xf]
        %v2700 = vld [vmem:[%s538 + $0x2c] sm:$0xf]
        %v2701 = vld [vmem:[%s538 + $0x30] sm:$0xf]
        %v2702 = vld [vmem:[%s538 + $0x34] sm:$0xf]
        %v2703 = vld [vmem:[%s538 + $0x38] sm:$0xf]
        %v2704 = vld [vmem:[%s538 + $0x3c] sm:$0xf]
        %v2705 = vld [vmem:[%s538 + $0x40] sm:$0xf]
        %v2706 = vld [vmem:[%s538 + $0x44] sm:$0xf]
        %v2707 = vld [vmem:[%s538 + $0x48] sm:$0xf]
        %v2708 = vld [vmem:[%s538 + $0x4c] sm:$0xf]
        %v2709 = vld [vmem:[%s538 + $0x50] sm:$0xf]
        %v2710 = vld [vmem:[%s538 + $0x54] sm:$0xf]
        %v2711 = vld [vmem:[%s538 + $0x58] sm:$0xf]
        %v2712 = vld [vmem:[%s538 + $0x5c] sm:$0xf]
        %v2713 = vld [vmem:[%s538 + $0x60] sm:$0xf]
        %v2714 = vld [vmem:[%s538 + $0x64] sm:$0xf]
        %v2715 = vld [vmem:[%s538 + $0x68] sm:$0xf]
        %v2716 = vld [vmem:[%s538 + $0x6c] sm:$0xf]
        %v2717 = vld [vmem:[%s538 + $0x70] sm:$0xf]
        %v2718 = vld [vmem:[%s538 + $0x74] sm:$0xf]
        %v2719 = vld [vmem:[%s538 + $0x78] sm:$0xf]
        %v2720 = vld [vmem:[%s538 + $0x7c] sm:$0xf]
        %v2721 = vld [vmem:[%s538 + $0x80] sm:$0xf]
        %v2722 = vld [vmem:[%s538 + $0x84] sm:$0xf]
        %v2723 = vld [vmem:[%s538 + $0x88] sm:$0xf]
        %v2724 = vld [vmem:[%s538 + $0x8c] sm:$0xf]
        %v2725 = vld [vmem:[%s538 + $0x90] sm:$0xf]
        %v2726 = vld [vmem:[%s538 + $0x94] sm:$0xf]
        %v2727 = vld [vmem:[%s538 + $0x98] sm:$0xf]
        %v2728 = vld [vmem:[%s538 + $0x9c] sm:$0xf]
        %v2729 = vld [vmem:[%s538 + $0xa0] sm:$0xf]
        %v2730 = vld [vmem:[%s538 + $0xa4] sm:$0xf]
        %v2731 = vld [vmem:[%s538 + $0xa8] sm:$0xf]
        %v2732 = vld [vmem:[%s538 + $0xac] sm:$0xf]
        %v2733 = vld [vmem:[%s538 + $0xb0] sm:$0xf]
        %v2734 = vld [vmem:[%s538 + $0xb4] sm:$0xf]
        %v2735 = vld [vmem:[%s538 + $0xb8] sm:$0xf]
        %v2736 = vld [vmem:[%s538 + $0xbc] sm:$0xf]
        %v2737 = vld [vmem:[%s538 + $0xc0] sm:$0xf]
        %v2738 = vld [vmem:[%s538 + $0xc4] sm:$0xf]
        %v2739 = vld [vmem:[%s538 + $0xc8] sm:$0xf]
        %v2740 = vld [vmem:[%s538 + $0xcc] sm:$0xf]
        %v2741 = vld [vmem:[%s538 + $0xd0] sm:$0xf]
        %v2742 = vld [vmem:[%s538 + $0xd4] sm:$0xf]
        %v2743 = vld [vmem:[%s538 + $0xd8] sm:$0xf]
        %v2744 = vld [vmem:[%s538 + $0xdc] sm:$0xf]
        %v2745 = vld [vmem:[%s538 + $0xe0] sm:$0xf]
        %v2746 = vld [vmem:[%s538 + $0xe4] sm:$0xf]
        %v2747 = vld [vmem:[%s538 + $0xe8] sm:$0xf]
        %v2748 = vld [vmem:[%s538 + $0xec] sm:$0xf]
        %v2749 = vld [vmem:[%s538 + $0xf0] sm:$0xf]
        %v2750 = vld [vmem:[%s538 + $0xf4] sm:$0xf]
        %v2751 = vld [vmem:[%s538 + $0xf8] sm:$0xf]
        %v2752 = vld [vmem:[%s538 + $0xfc] sm:$0xf]
        %v2753 = vld [vmem:[%s642] sm:$0x1]
        %v2755 = vlaneseq
        %v2756 = vshrl.u32 %v2755, 7
        %v2757 = vsub.s32 0, %v2756
        %v2758 = vrot.slane %v2753, %v2757
        %v2824 = vunpack.c.l.b16 %v2689
        %v2825 = vunpack.c.l.b16 %v2690
        %v2826 = vunpack.c.l.b16 %v2691
        %v2827 = vunpack.c.l.b16 %v2692
        %v2828 = vunpack.c.l.b16 %v2693
        %v2829 = vunpack.c.l.b16 %v2694
        %v2830 = vunpack.c.l.b16 %v2695
        %v2831 = vunpack.c.l.b16 %v2696
        %v2832 = vunpack.c.l.b16 %v2697
        %v2833 = vunpack.c.l.b16 %v2698
        %v2834 = vunpack.c.l.b16 %v2699
        %v2835 = vunpack.c.l.b16 %v2700
        %v2836 = vunpack.c.l.b16 %v2701
        %v2837 = vunpack.c.l.b16 %v2702
        %v2838 = vunpack.c.l.b16 %v2703
        %v2839 = vunpack.c.l.b16 %v2704
        %v2840 = vunpack.c.l.b16 %v2705
        %v2841 = vunpack.c.l.b16 %v2706
        %v2842 = vunpack.c.l.b16 %v2707
        %v2843 = vunpack.c.l.b16 %v2708
        %v2844 = vunpack.c.l.b16 %v2709
        %v2845 = vunpack.c.l.b16 %v2710
        %v2846 = vunpack.c.l.b16 %v2711
        %v2847 = vunpack.c.l.b16 %v2712
        %v2848 = vunpack.c.l.b16 %v2713
        %v2849 = vunpack.c.l.b16 %v2714
        %v2850 = vunpack.c.l.b16 %v2715
        %v2851 = vunpack.c.l.b16 %v2716
        %v2852 = vunpack.c.l.b16 %v2717
        %v2853 = vunpack.c.l.b16 %v2718
        %v2854 = vunpack.c.l.b16 %v2719
        %v2855 = vunpack.c.l.b16 %v2720
        %v2856 = vunpack.c.l.b16 %v2721
        %v2857 = vunpack.c.l.b16 %v2722
        %v2858 = vunpack.c.l.b16 %v2723
        %v2859 = vunpack.c.l.b16 %v2724
        %v2860 = vunpack.c.l.b16 %v2725
        %v2861 = vunpack.c.l.b16 %v2726
        %v2862 = vunpack.c.l.b16 %v2727
        %v2863 = vunpack.c.l.b16 %v2728
        %v2864 = vunpack.c.l.b16 %v2729
        %v2865 = vunpack.c.l.b16 %v2730
        %v2866 = vunpack.c.l.b16 %v2731
        %v2867 = vunpack.c.l.b16 %v2732
        %v2868 = vunpack.c.l.b16 %v2733
        %v2869 = vunpack.c.l.b16 %v2734
        %v2870 = vunpack.c.l.b16 %v2735
        %v2871 = vunpack.c.l.b16 %v2736
        %v2872 = vunpack.c.l.b16 %v2737
        %v2873 = vunpack.c.l.b16 %v2738
        %v2874 = vunpack.c.l.b16 %v2739
        %v2875 = vunpack.c.l.b16 %v2740
        %v2876 = vunpack.c.l.b16 %v2741
        %v2877 = vunpack.c.l.b16 %v2742
        %v2878 = vunpack.c.l.b16 %v2743
        %v2879 = vunpack.c.l.b16 %v2744
        %v2880 = vunpack.c.l.b16 %v2745
        %v2881 = vunpack.c.l.b16 %v2746
        %v2882 = vunpack.c.l.b16 %v2747
        %v2883 = vunpack.c.l.b16 %v2748
        %v2884 = vunpack.c.l.b16 %v2749
        %v2885 = vunpack.c.l.b16 %v2750
        %v2886 = vunpack.c.l.b16 %v2751
        %v2887 = vunpack.c.l.b16 %v2752
        %v2888 = vpack.c.b16 %v2825, %v2824
        %v2889 = vpack.c.b16 %v2827, %v2826
        %v2890 = vpack.c.b16 %v2829, %v2828
        %v2891 = vpack.c.b16 %v2831, %v2830
        %v2892 = vpack.c.b16 %v2833, %v2832
        %v2893 = vpack.c.b16 %v2835, %v2834
        %v2894 = vpack.c.b16 %v2837, %v2836
        %v2895 = vpack.c.b16 %v2839, %v2838
        %v2896 = vpack.c.b16 %v2841, %v2840
        %v2897 = vpack.c.b16 %v2843, %v2842
        %v2898 = vpack.c.b16 %v2845, %v2844
        %v2899 = vpack.c.b16 %v2847, %v2846
        %v2900 = vpack.c.b16 %v2849, %v2848
        %v2901 = vpack.c.b16 %v2851, %v2850
        %v2902 = vpack.c.b16 %v2853, %v2852
        %v2903 = vpack.c.b16 %v2855, %v2854
        %v2904 = vpack.c.b16 %v2857, %v2856
        %v2905 = vpack.c.b16 %v2859, %v2858
        %v2906 = vpack.c.b16 %v2861, %v2860
        %v2907 = vpack.c.b16 %v2863, %v2862
        %v2908 = vpack.c.b16 %v2865, %v2864
        %v2909 = vpack.c.b16 %v2867, %v2866
        %v2910 = vpack.c.b16 %v2869, %v2868
        %v2911 = vpack.c.b16 %v2871, %v2870
        %v2912 = vpack.c.b16 %v2873, %v2872
        %v2913 = vpack.c.b16 %v2875, %v2874
        %v2914 = vpack.c.b16 %v2877, %v2876
        %v2915 = vpack.c.b16 %v2879, %v2878
        %v2916 = vpack.c.b16 %v2881, %v2880
        %v2917 = vpack.c.b16 %v2883, %v2882
        %v2918 = vpack.c.b16 %v2885, %v2884
        %v2919 = vpack.c.b16 %v2887, %v2886
        %2952 = vmatprep.subr.bf16.mxu0 0
        %2953 = vmatpush1.bf16.msra.mxu0 %v2888
        %2954 = vmatprep.subr.bf16.mxu0 0
        %2955 = vmatpush1.bf16.msra.mxu0 %v2889
        %2956 = vmatprep.subr.bf16.mxu0 0
        %2957 = vmatpush1.bf16.msra.mxu0 %v2890
        %2958 = vmatprep.subr.bf16.mxu0 0
        %2959 = vmatpush1.bf16.msra.mxu0 %v2891
        %2960 = vmatprep.subr.bf16.mxu0 0
        %2961 = vmatpush1.bf16.msra.mxu0 %v2892
        %2962 = vmatprep.subr.bf16.mxu0 0
        %2963 = vmatpush1.bf16.msra.mxu0 %v2893
        %2964 = vmatprep.subr.bf16.mxu0 0
        %2965 = vmatpush1.bf16.msra.mxu0 %v2894
        %2966 = vmatprep.subr.bf16.mxu0 0
        %2967 = vmatpush1.bf16.msra.mxu0 %v2895
        %2968 = vmatprep.subr.bf16.mxu0 0
        %2969 = vmatpush1.bf16.msra.mxu0 %v2896
        %2970 = vmatprep.subr.bf16.mxu0 0
        %2971 = vmatpush1.bf16.msra.mxu0 %v2897
        %2972 = vmatprep.subr.bf16.mxu0 0
        %2973 = vmatpush1.bf16.msra.mxu0 %v2898
        %2974 = vmatprep.subr.bf16.mxu0 0
        %2975 = vmatpush1.bf16.msra.mxu0 %v2899
        %2976 = vmatprep.subr.bf16.mxu0 0
        %2977 = vmatpush1.bf16.msra.mxu0 %v2900
        %2978 = vmatprep.subr.bf16.mxu0 0
        %2979 = vmatpush1.bf16.msra.mxu0 %v2901
        %2980 = vmatprep.subr.bf16.mxu0 0
        %2981 = vmatpush1.bf16.msra.mxu0 %v2902
        %2982 = vmatprep.subr.bf16.mxu0 0
        %2983 = vmatpush1.bf16.msra.mxu0 %v2903
        %2984 = vmatprep.mubr.bf16.mxu0 %v2682
        %2985 = vmatmul.mubr.bf16.gmra.mrb[0].mxu0 %v2681
        %v2986 = vpop.f32.mrb[0].mxu0
        %v2987 = vadd.f32 %v2758, %v2986
        %v2988 = vpop.f32.mrb[0].mxu0
        %v2989 = vpop.f32.mrb[0].mxu0
        %v2990 = vadd.f32 %v2758, %v2989
        %v2991 = vpop.f32.mrb[0].mxu0
        %2992 = vmatprep.mubr.bf16.mxu0 %v2686
        %2993 = vmatmul.mubr.bf16.gmra.mrb[0].mxu0 %v2685
        %v2994 = vpop.f32.mrb[0].mxu0
        %v2995 = vadd.f32 %v2758, %v2994
        %v2996 = vpop.f32.mrb[0].mxu0
        %v2997 = vpop.f32.mrb[0].mxu0
        %v2998 = vadd.f32 %v2758, %v2997
        %v2999 = vpop.f32.mrb[0].mxu0
        %3000 = vdwg.mxu0
        %3001 = vmatprep.subr.bf16.mxu0 0
        %3002 = vmatpush1.bf16.msra.mxu0 %v2904
        %3003 = vmatprep.subr.bf16.mxu0 0
        %3004 = vmatpush1.bf16.msra.mxu0 %v2905
        %3005 = vmatprep.subr.bf16.mxu0 0
        %3006 = vmatpush1.bf16.msra.mxu0 %v2906
        %3007 = vmatprep.subr.bf16.mxu0 0
        %3008 = vmatpush1.bf16.msra.mxu0 %v2907
        %3009 = vmatprep.subr.bf16.mxu0 0
        %3010 = vmatpush1.bf16.msra.mxu0 %v2908
        %3011 = vmatprep.subr.bf16.mxu0 0
        %3012 = vmatpush1.bf16.msra.mxu0 %v2909
        %3013 = vmatprep.subr.bf16.mxu0 0
        %3014 = vmatpush1.bf16.msra.mxu0 %v2910
        %3015 = vmatprep.subr.bf16.mxu0 0
        %3016 = vmatpush1.bf16.msra.mxu0 %v2911
        %3017 = vmatprep.subr.bf16.mxu0 0
        %3018 = vmatpush1.bf16.msra.mxu0 %v2912
        %3019 = vmatprep.subr.bf16.mxu0 0
        %3020 = vmatpush1.bf16.msra.mxu0 %v2913
        %3021 = vmatprep.subr.bf16.mxu0 0
        %3022 = vmatpush1.bf16.msra.mxu0 %v2914
        %3023 = vmatprep.subr.bf16.mxu0 0
        %3024 = vmatpush1.bf16.msra.mxu0 %v2915
        %3025 = vmatprep.subr.bf16.mxu0 0
        %3026 = vmatpush1.bf16.msra.mxu0 %v2916
        %3027 = vmatprep.subr.bf16.mxu0 0
        %3028 = vmatpush1.bf16.msra.mxu0 %v2917
        %3029 = vmatprep.subr.bf16.mxu0 0
        %3030 = vmatpush1.bf16.msra.mxu0 %v2918
        %3031 = vmatprep.subr.bf16.mxu0 0
        %3032 = vmatpush1.bf16.msra.mxu0 %v2919
        %3033 = vmatprep.mubr.bf16.mxu0 %v2684
        %3034 = vmatmul.mubr.bf16.gmra.mrb[0].mxu0 %v2683
        %v3035 = vpop.f32.mrb[0].mxu0
        %v3036 = vadd.f32 %v2987, %v3035
        %v3037 = vpop.f32.mrb[0].mxu0
        %v3038 = vpop.f32.mrb[0].mxu0
        %v3039 = vadd.f32 %v2990, %v3038
        %v3040 = vpop.f32.mrb[0].mxu0
        %3041 = vmatprep.mubr.bf16.mxu0 %v2688
        %3042 = vmatmul.mubr.bf16.gmra.mrb[0].mxu0 %v2687
        %v3043 = vpop.f32.mrb[0].mxu0
        %v3044 = vadd.f32 %v2995, %v3043
        %v3045 = vpop.f32.mrb[0].mxu0
        %v3046 = vpop.f32.mrb[0].mxu0
        %v3047 = vadd.f32 %v2998, %v3046
        %v3048 = vpop.f32.mrb[0].mxu0
        %3049 = vdwg.mxu0
        %3050 = vst [vmem:[#allocation2] sm:$0xff] %v3036
        %3051 = vst [vmem:[#allocation2 + $0x8] sm:$0xff] %v3039
        %3052 = vst [vmem:[#allocation2 + $0x10] sm:$0xff] %v3044
        %3053 = vst [vmem:[#allocation2 + $0x18] sm:$0xff] %v3047
        %3054 = vst [vmem:[%s14] sm:$0xff] %v3036
        %3055 = vst [vmem:[%s14 + $0x8] sm:$0xff] %v3039
        %3056 = vst [vmem:[%s14 + $0x10] sm:$0xff] %v3044
        %3057 = vst [vmem:[%s14 + $0x18] sm:$0xff] %v3047
        // Predicated region
        $region89: #{bert_forward.2} parent=75 // pred_check
          %p3058 = pneg %p388
        $region90: #{bert_forward.2} parent=75 // pred_check_branch
          %3060 = sbr.rel (%p3058) target = $region92
        $region91: #{bert_forward.2} parent=75 // pred_region
          _
        $region92: #{bert_forward.2} parent=75 // pred_fallthru
          _
        // Predicated region
        $region93: #{bert_forward.2} parent=75 // pred_check
          %p3061 = pneg %p388
        $region94: #{bert_forward.2} parent=75 // pred_check_branch
          %3063 = sbr.rel (%p3061) target = $region96
        $region95: #{bert_forward.2} parent=75 // pred_region
          _
        $region96: #{bert_forward.2} parent=75 // pred_fallthru
          _
      $region76: #{bert_forward.2} parent=5 // pred_fallthru
        _
      %p3064 = scmp.le.s32.totalorder 2, %s26
      // Predicated region
      $region97: #{bert_forward.2} parent=5 // pred_check
        %p3065 = pneg %p3064
      $region98: #{bert_forward.2} parent=5 // pred_check_branch
        %3067 = sbr.rel (%p3065) target = $region100
      $region99: #{bert_forward.2} parent=5 // pred_region
        %s3068 = ssub.s32 %s26, 2
      $region100: #{bert_forward.2} parent=5 // pred_fallthru
        _
    $region6: #{bert_forward.2} parent=1 // loop_footer
      %s30 = sadd.s32 1, %s26
    $region7: #{bert_forward.2} parent=1 // loop_footer_branch
      %25 = sbr.rel target = $region3
    $region8: #{bert_forward.2} parent=1 // loop_exit
      _
    %3069 = vsyncpa [#allocation4], 1
    %s3070 = scalar_lea.sflag [#allocation4], 1
    %3071 = vsyncpa %s3070, 1
    %3072 = vsyncpa [#allocation6], 1
    %s3073 = scalar_lea.sflag [#allocation6], 1
    %3074 = vsyncpa %s3073, 1

</llo_original>
